<compile_context>
chip_gen: v5e
topology: v5e:2x2
jax: 0.10.0
libtpu: 0.0.40
codegen_flags: <defaults>
</compile_context>

<pallas_src>
import math

import jax
import jax.numpy as jnp
from jax.experimental import pallas as pl
from jax.experimental.pallas import tpu as pltpu  # noqa: F401

# ---- model hyper-parameters (small, consistent with the module) -------------
B = 2            # batch
ST = 8           # target sequence length
SS = 8           # source (encoder) sequence length
D = 32           # d_model
H = 4            # attention heads
DH = D // H      # head dim
DFF = 64         # feed-forward hidden dim
N_LAYER = 2      # number of decoder blocks
EPS = 1e-5
NEG_INF = -1e9
SCALE = 1.0 / math.sqrt(DH)

MT = B * ST      # batch folded into matmul M dim (target rows)
MS = B * SS      # folded source rows

# Flip to False to drop the per-row max subtraction in softmax (removes one
# cross-lane XLU reduce per attention from the serial chain).  Kept True so the
# softmax numerics match the PyTorch reference exactly.
STABLE_SOFTMAX = True

# lane offsets inside the packed per-layer weight slab (D, SLAB_W)
C_QKV = 0             # [0, 3D)      fused self-attn Q|K|V projection
C_WOS = 3 * D         # [3D, 4D)     self-attn output projection
C_WQC = 4 * D         # [4D, 5D)     cross-attn Q projection
C_WOC = 5 * D         # [5D, 6D)     cross-attn output projection
C_WF1 = 6 * D         # [6D, 6D+DFF) FFN first layer
SLAB_W = 6 * D + DFF  # 256

# rows of the packed per-layer bias / LayerNorm tensor (N_LAYER, 5, 3D)
R_BQKV = 0    # [0,3D)  : bq|bk|bv (self)
R_BF1Q = 1    # [0,DFF) : bf1       | [DFF,DFF+D) : bq (cross)
R_SELF = 2    # [0,D) bo_self  | [D,2D) ln1 gamma | [2D,3D) ln1 beta
R_CROSS = 3   # [0,D) bo_cross | [D,2D) ln2 gamma | [2D,3D) ln2 beta
R_FFN = 4     # [0,D) bf2      | [D,2D) ln3 gamma | [2D,3D) ln3 beta


# ----------------------------- kernel helpers --------------------------------
def _layer_norm(v, g, b):
    mu = jnp.mean(v, axis=-1, keepdims=True)
    # one-pass variance: the two XLU reductions are independent
    var = jnp.mean(v * v, axis=-1, keepdims=True) - mu * mu
    return (v - mu) * jax.lax.rsqrt(var + EPS) * g + b


def _split_heads(t):
    """(M, H*DH) -> (H, M, DH) via lane slices + stack (relayout-safe form)."""
    return jnp.stack([t[:, h * DH:(h + 1) * DH] for h in range(H)], axis=0)


def _attend(q, k, v, bias):
    """Head-batched attention.  q:(Mq,D) k,v:(Mk,D) bias:(Mq,Mk) additive."""
    bf16 = jnp.bfloat16
    qh = _split_heads(q).astype(bf16)                 # (H, Mq, DH)
    kh = _split_heads(k).astype(bf16)                 # (H, Mk, DH)
    vh = _split_heads(v).astype(bf16)                 # (H, Mk, DH)
    s = jnp.einsum('hqd,hkd->hqk', qh, kh,
                   preferred_element_type=jnp.float32) * SCALE
    s = s + bias[None, :, :]
    if STABLE_SOFTMAX:
        s = s - jnp.max(s, axis=-1, keepdims=True)
    p = jnp.exp(s)
    p = p * pl.reciprocal(jnp.sum(p, axis=-1, keepdims=True), approx=True)
    o = jnp.einsum('hqk,hkd->hqd', p.astype(bf16), vh,
                   preferred_element_type=jnp.float32)  # (H, Mq, DH)
    # merge heads once (lane concatenate) -> single output projection outside
    return jnp.concatenate([o[h] for h in range(H)], axis=-1)  # (Mq, D)


# ----------------------------- fused decoder kernel --------------------------
def decoder_kernel(x_ref, enc_ref, bias_ref, wslab_ref, wkv_all_ref, wf2_ref,
                   vecs_ref, misc_ref, out_ref):
    bf16 = jnp.bfloat16
    f32 = jnp.float32

    x = x_ref[...]                               # (MT, D) f32
    sbias = bias_ref[:, 0:MT]                    # (MT, MT) additive self-attn bias
    cbias = bias_ref[:, MT:MT + MS]              # (MT, MS) additive cross-attn bias

    # ---- hoisted, layer-invariant encoder K/V projection: one 128-lane matmul
    kv_all = jnp.dot(enc_ref[...].astype(bf16), wkv_all_ref[...],
                     preferred_element_type=f32) + misc_ref[0:1, :]   # (MS, L*2D)

    for l in range(N_LAYER):   # static unroll over the stacked layer axis
        wl = wslab_ref[l]      # (D, SLAB_W) bf16 packed weight slab
        vec = vecs_ref[l]      # (5, 3D) f32 packed biases / LN vectors

        # ---- masked self-attention (fused QKV projection, fused bias add) ----
        qkv = jnp.dot(x.astype(bf16), wl[:, C_QKV:C_QKV + 3 * D],
                      preferred_element_type=f32) + vec[R_BQKV:R_BQKV + 1, :]
        q, k, v = qkv[:, 0:D], qkv[:, D:2 * D], qkv[:, 2 * D:3 * D]
        ctx = _attend(q, k, v, sbias)
        a = (jnp.dot(ctx.astype(bf16), wl[:, C_WOS:C_WOS + D],
                     preferred_element_type=f32)
             + vec[R_SELF:R_SELF + 1, 0:D])
        x = _layer_norm(x + a, vec[R_SELF:R_SELF + 1, D:2 * D],
                        vec[R_SELF:R_SELF + 1, 2 * D:3 * D])

        # ---- cross-attention (K/V precomputed above; lane slices per layer) --
        q = (jnp.dot(x.astype(bf16), wl[:, C_WQC:C_WQC + D],
                     preferred_element_type=f32)
             + vec[R_BF1Q:R_BF1Q + 1, DFF:DFF + D])
        k = kv_all[:, l * 2 * D:l * 2 * D + D]
        v = kv_all[:, l * 2 * D + D:l * 2 * D + 2 * D]
        ctx = _attend(q, k, v, cbias)
        a = (jnp.dot(ctx.astype(bf16), wl[:, C_WOC:C_WOC + D],
                     preferred_element_type=f32)
             + vec[R_CROSS:R_CROSS + 1, 0:D])
        x = _layer_norm(x + a, vec[R_CROSS:R_CROSS + 1, D:2 * D],
                        vec[R_CROSS:R_CROSS + 1, 2 * D:3 * D])

        # ---- position-wise feed-forward ----
        h = jnp.maximum(
            jnp.dot(x.astype(bf16), wl[:, C_WF1:C_WF1 + DFF],
                    preferred_element_type=f32)
            + vec[R_BF1Q:R_BF1Q + 1, 0:DFF], 0.0)
        ff = (jnp.dot(h.astype(bf16), wf2_ref[l],
                      preferred_element_type=f32)
              + vec[R_FFN:R_FFN + 1, 0:D])
        x = _layer_norm(x + ff, vec[R_FFN:R_FFN + 1, D:2 * D],
                        vec[R_FFN:R_FFN + 1, 2 * D:3 * D])

    # Final Decoder LayerNorm.
    out_ref[...] = _layer_norm(x, misc_ref[1:2, 0:D], misc_ref[2:3, 0:D])


# ----------------------------- wrapper ---------------------------------------
def _additive_block_diag_bias(mask):
    """(B, Sq, Sk) mask (>0 = attend) -> (B*Sq, B*Sk) additive bias.

    Folding batch into the matmul M dimension requires forbidding cross-batch
    attention: off-diagonal batch blocks get NEG_INF, in-block entries get
    0 / NEG_INF according to the original mask (exp underflows cleanly to 0).
    """
    b, sq, sk = mask.shape
    bias = jnp.where(mask > 0, 0.0, NEG_INF).astype(jnp.float32)     # (B,Sq,Sk)
    eye = jnp.eye(b, dtype=jnp.float32)
    full = (bias[:, :, None, :] * eye[:, None, :, None]
            + NEG_INF * (1.0 - eye)[:, None, :, None])               # (B,Sq,B,Sk)
    return full.reshape(b * sq, b * sk)


@jax.jit
def decoder_forward(tgt, encoder_out, tgt_mask, src_tgt_mask, params):
    x = tgt.reshape(MT, D)
    enc = encoder_out.reshape(MS, D)
    # both masks fused into a single lane-concatenated input
    bias_all = jnp.concatenate(
        [_additive_block_diag_bias(tgt_mask),
         _additive_block_diag_bias(src_tgt_mask)], axis=1)           # (MT, MT+MS)

    out = pl.pallas_call(
        decoder_kernel,
        out_shape=jax.ShapeDtypeStruct((MT, D), jnp.float32),
    )(x, enc, bias_all,
      params["w_slab"], params["wkv_all"], params["wf2"],
      params["vecs"], params["misc"])
    return out.reshape(B, ST, D)


# ----------------------------- parameter init --------------------------------
def init_params(key):
    def lin(k, fan_in, fan_out):
        s = 1.0 / math.sqrt(fan_in)
        return jax.random.uniform(k, (fan_in, fan_out), jnp.float32, -s, s)

    def bvec(k, fan_in, n):
        s = 1.0 / math.sqrt(fan_in)
        return jax.random.uniform(k, (n,), jnp.float32, -s, s)

    ones = jnp.ones((D,), jnp.float32)
    zeros = jnp.zeros((D,), jnp.float32)

    slabs, wf2s, vecs, wkv_blocks, bkv_blocks = [], [], [], [], []
    for li in range(N_LAYER):
        ks = jax.random.split(jax.random.fold_in(key, li), 20)
        wq_s, wk_s, wv_s, wo_s = (lin(ks[i], D, D) for i in range(0, 4))
        wq_c, wk_c, wv_c, wo_c = (lin(ks[i], D, D) for i in range(4, 8))
        wf1, wf2 = lin(ks[8], D, DFF), lin(ks[9], DFF, D)
        bq_s, bk_s, bv_s, bo_s = (bvec(ks[i], D, D) for i in range(10, 14))
        bq_c, bk_c, bv_c, bo_c = (bvec(ks[i], D, D) for i in range(14, 18))
        bf1, bf2 = bvec(ks[18], D, DFF), bvec(ks[19], DFF, D)

        # packed weight slab (D, 256): order must match C_* lane offsets
        slabs.append(jnp.concatenate(
            [wq_s, wk_s, wv_s, wo_s, wq_c, wo_c, wf1], axis=1))
        wf2s.append(wf2)
        # layer-invariant cross-attn K/V projection, hoisted out of the loop
        wkv_blocks.append(jnp.concatenate([wk_c, wv_c], axis=1))     # (D, 2D)
        bkv_blocks.append(jnp.concatenate([bk_c, bv_c]))             # (2D,)

        # packed bias / LayerNorm rows (5, 3D): order must match R_* constants
        rows = [
            jnp.concatenate([bq_s, bk_s, bv_s]),          # R_BQKV
            jnp.concatenate([bf1, bq_c]),                 # R_BF1Q
            jnp.concatenate([bo_s, ones, zeros]),         # R_SELF
            jnp.concatenate([bo_c, ones, zeros]),         # R_CROSS
            jnp.concatenate([bf2, ones, zeros]),          # R_FFN
        ]
        vecs.append(jnp.stack(rows, axis=0))

    # misc (3, L*2D): row0 = fused cross K/V bias, row1/2 = final LN gamma/beta
    misc = jnp.zeros((3, N_LAYER * 2 * D), jnp.float32)
    misc = misc.at[0].set(jnp.concatenate(bkv_blocks))
    misc = misc.at[1, 0:D].set(ones)
    misc = misc.at[2, 0:D].set(zeros)

    return {
        "w_slab":  jnp.stack(slabs).astype(jnp.bfloat16),             # (L, D, 256)
        "wkv_all": jnp.concatenate(wkv_blocks, axis=1).astype(jnp.bfloat16),  # (D, L*2D)
        "wf2":     jnp.stack(wf2s).astype(jnp.bfloat16),              # (L, DFF, D)
        "vecs":    jnp.stack(vecs),                                   # (L, 5, 3D) f32
        "misc":    misc,                                              # (3, L*2D) f32
    }


# ----------------------------- main -------------------------------------------
if __name__ == "__main__":
    key = jax.random.PRNGKey(0)
    k_tgt, k_enc, k_par = jax.random.split(key, 3)

    tgt = jax.random.normal(k_tgt, (B, ST, D), jnp.float32)
    encoder_out = jax.random.normal(k_enc, (B, SS, D), jnp.float32)

    # causal mask for self-attention, all-ones mask for cross-attention
    tgt_mask = jnp.tril(jnp.ones((ST, ST), jnp.float32))[None].repeat(B, axis=0)
    src_tgt_mask = jnp.ones((B, ST, SS), jnp.float32)

    params = init_params(k_par)

    out = decoder_forward(tgt, encoder_out, tgt_mask, src_tgt_mask, params)
    jax.block_until_ready(out)

    assert out.shape == (B, ST, D) and out.dtype == jnp.float32
    assert bool(jnp.all(jnp.isfinite(out)))
    print("KERNEL_OK")
</pallas_src>

<mosaic_0001>
module attributes {stable_mosaic.version = 11 : i64} {
  func.func @decoder_kernel(%arg0: memref<16x32xf32, #tpu.memory_space<vmem>>, %arg1: memref<16x32xf32, #tpu.memory_space<vmem>>, %arg2: memref<16x32xf32, #tpu.memory_space<vmem>>, %arg3: memref<2x32x256xbf16, #tpu.memory_space<vmem>>, %arg4: memref<32x128xbf16, #tpu.memory_space<vmem>>, %arg5: memref<2x64x32xbf16, #tpu.memory_space<vmem>>, %arg6: memref<2x5x96xf32, #tpu.memory_space<vmem>>, %arg7: memref<3x128xf32, #tpu.memory_space<vmem>>, %arg8: memref<16x32xf32, #tpu.memory_space<vmem>>) attributes {dimension_semantics = [], scalar_prefetch = 0 : i64, scratch_operands = 0 : i64, tpu.core_type = #tpu.core_type<tc>} {
    %c0 = arith.constant 0 : index
    %c0_0 = arith.constant 0 : index
    %0 = vector.load %arg0[%c0, %c0_0] : memref<16x32xf32, #tpu.memory_space<vmem>>, vector<16x32xf32>
    %c0_1 = arith.constant 0 : index
    %c0_2 = arith.constant 0 : index
    %1 = vector.load %arg2[%c0_1, %c0_2] : memref<16x32xf32, #tpu.memory_space<vmem>>, vector<16x16xf32>
    %c0_3 = arith.constant 0 : index
    %c16 = arith.constant 16 : index
    %2 = vector.load %arg2[%c0_3, %c16] : memref<16x32xf32, #tpu.memory_space<vmem>>, vector<16x16xf32>
    %c0_4 = arith.constant 0 : index
    %c0_5 = arith.constant 0 : index
    %3 = vector.load %arg1[%c0_4, %c0_5] : memref<16x32xf32, #tpu.memory_space<vmem>>, vector<16x32xf32>
    %4 = arith.truncf %3 : vector<16x32xf32> to vector<16x32xbf16>
    %c0_6 = arith.constant 0 : index
    %c0_7 = arith.constant 0 : index
    %5 = vector.load %arg4[%c0_6, %c0_7] : memref<32x128xbf16, #tpu.memory_space<vmem>>, vector<32x128xbf16>
    %cst = arith.constant dense<0.000000e+00> : vector<16x128xf32>
    %6 = tpu.matmul %4, %5, %cst {dimension_numbers = #tpu.dot_dimension_numbers<[1], [0], [0], [1], [0, 0, 1, 1], [], []>} : vector<16x32xbf16>, vector<32x128xbf16>, vector<16x128xf32> -> vector<16x128xf32>
    %c0_8 = arith.constant 0 : index
    %c0_9 = arith.constant 0 : index
    %7 = vector.load %arg7[%c0_8, %c0_9] : memref<3x128xf32, #tpu.memory_space<vmem>>, vector<1x128xf32>
    %8 = vector.broadcast %7 : vector<1x128xf32> to vector<16x128xf32>
    %9 = arith.addf %6, %8 : vector<16x128xf32>
    %c0_10 = arith.constant 0 : index
    %c0_11 = arith.constant 0 : index
    %c0_12 = arith.constant 0 : index
    %10 = vector.load %arg3[%c0_10, %c0_11, %c0_12] : memref<2x32x256xbf16, #tpu.memory_space<vmem>>, vector<1x32x256xbf16>
    %11 = vector.shape_cast %10 : vector<1x32x256xbf16> to vector<32x256xbf16>
    %c0_13 = arith.constant 0 : index
    %c0_14 = arith.constant 0 : index
    %c0_15 = arith.constant 0 : index
    %12 = vector.load %arg6[%c0_13, %c0_14, %c0_15] : memref<2x5x96xf32, #tpu.memory_space<vmem>>, vector<1x5x96xf32>
    %13 = vector.shape_cast %12 : vector<1x5x96xf32> to vector<5x96xf32>
    %14 = arith.truncf %0 : vector<16x32xf32> to vector<16x32xbf16>
    %15 = vector.extract_strided_slice %11 {offsets = [0, 0], sizes = [32, 96], strides = [1, 1]} : vector<32x256xbf16> to vector<32x96xbf16>
    %cst_16 = arith.constant dense<0.000000e+00> : vector<16x96xf32>
    %16 = tpu.matmul %14, %15, %cst_16 {dimension_numbers = #tpu.dot_dimension_numbers<[1], [0], [0], [1], [0, 0, 1, 1], [], []>} : vector<16x32xbf16>, vector<32x96xbf16>, vector<16x96xf32> -> vector<16x96xf32>
    %17 = vector.extract_strided_slice %13 {offsets = [0, 0], sizes = [1, 96], strides = [1, 1]} : vector<5x96xf32> to vector<1x96xf32>
    %18 = vector.broadcast %17 : vector<1x96xf32> to vector<16x96xf32>
    %19 = arith.addf %16, %18 : vector<16x96xf32>
    %20 = vector.extract_strided_slice %19 {offsets = [0, 0], sizes = [16, 32], strides = [1, 1]} : vector<16x96xf32> to vector<16x32xf32>
    %21 = vector.extract_strided_slice %19 {offsets = [0, 32], sizes = [16, 32], strides = [1, 1]} : vector<16x96xf32> to vector<16x32xf32>
    %22 = vector.extract_strided_slice %19 {offsets = [0, 64], sizes = [16, 32], strides = [1, 1]} : vector<16x96xf32> to vector<16x32xf32>
    %23 = vector.extract_strided_slice %20 {offsets = [0, 0], sizes = [16, 8], strides = [1, 1]} : vector<16x32xf32> to vector<16x8xf32>
    %24 = vector.extract_strided_slice %20 {offsets = [0, 8], sizes = [16, 8], strides = [1, 1]} : vector<16x32xf32> to vector<16x8xf32>
    %25 = vector.extract_strided_slice %20 {offsets = [0, 16], sizes = [16, 8], strides = [1, 1]} : vector<16x32xf32> to vector<16x8xf32>
    %26 = vector.extract_strided_slice %20 {offsets = [0, 24], sizes = [16, 8], strides = [1, 1]} : vector<16x32xf32> to vector<16x8xf32>
    %27 = vector.shape_cast %23 : vector<16x8xf32> to vector<1x16x8xf32>
    %28 = vector.shape_cast %24 : vector<16x8xf32> to vector<1x16x8xf32>
    %29 = vector.shape_cast %25 : vector<16x8xf32> to vector<1x16x8xf32>
    %30 = vector.shape_cast %26 : vector<16x8xf32> to vector<1x16x8xf32>
    %31 = tpu.concatenate %27, %28, %29, %30 in 0 : vector<1x16x8xf32>, vector<1x16x8xf32>, vector<1x16x8xf32>, vector<1x16x8xf32> -> vector<4x16x8xf32>
    %32 = arith.truncf %31 : vector<4x16x8xf32> to vector<4x16x8xbf16>
    %33 = vector.extract_strided_slice %21 {offsets = [0, 0], sizes = [16, 8], strides = [1, 1]} : vector<16x32xf32> to vector<16x8xf32>
    %34 = vector.extract_strided_slice %21 {offsets = [0, 8], sizes = [16, 8], strides = [1, 1]} : vector<16x32xf32> to vector<16x8xf32>
    %35 = vector.extract_strided_slice %21 {offsets = [0, 16], sizes = [16, 8], strides = [1, 1]} : vector<16x32xf32> to vector<16x8xf32>
    %36 = vector.extract_strided_slice %21 {offsets = [0, 24], sizes = [16, 8], strides = [1, 1]} : vector<16x32xf32> to vector<16x8xf32>
    %37 = vector.shape_cast %33 : vector<16x8xf32> to vector<1x16x8xf32>
    %38 = vector.shape_cast %34 : vector<16x8xf32> to vector<1x16x8xf32>
    %39 = vector.shape_cast %35 : vector<16x8xf32> to vector<1x16x8xf32>
    %40 = vector.shape_cast %36 : vector<16x8xf32> to vector<1x16x8xf32>
    %41 = tpu.concatenate %37, %38, %39, %40 in 0 : vector<1x16x8xf32>, vector<1x16x8xf32>, vector<1x16x8xf32>, vector<1x16x8xf32> -> vector<4x16x8xf32>
    %42 = arith.truncf %41 : vector<4x16x8xf32> to vector<4x16x8xbf16>
    %43 = vector.extract_strided_slice %22 {offsets = [0, 0], sizes = [16, 8], strides = [1, 1]} : vector<16x32xf32> to vector<16x8xf32>
    %44 = vector.extract_strided_slice %22 {offsets = [0, 8], sizes = [16, 8], strides = [1, 1]} : vector<16x32xf32> to vector<16x8xf32>
    %45 = vector.extract_strided_slice %22 {offsets = [0, 16], sizes = [16, 8], strides = [1, 1]} : vector<16x32xf32> to vector<16x8xf32>
    %46 = vector.extract_strided_slice %22 {offsets = [0, 24], sizes = [16, 8], strides = [1, 1]} : vector<16x32xf32> to vector<16x8xf32>
    %47 = vector.shape_cast %43 : vector<16x8xf32> to vector<1x16x8xf32>
    %48 = vector.shape_cast %44 : vector<16x8xf32> to vector<1x16x8xf32>
    %49 = vector.shape_cast %45 : vector<16x8xf32> to vector<1x16x8xf32>
    %50 = vector.shape_cast %46 : vector<16x8xf32> to vector<1x16x8xf32>
    %51 = tpu.concatenate %47, %48, %49, %50 in 0 : vector<1x16x8xf32>, vector<1x16x8xf32>, vector<1x16x8xf32>, vector<1x16x8xf32> -> vector<4x16x8xf32>
    %52 = arith.truncf %51 : vector<4x16x8xf32> to vector<4x16x8xbf16>
    "tpu.trace_start"() <{level = 10 : i32, message = "hqd,hkd->hqk"}> : () -> ()
    %cst_17 = arith.constant dense<0.000000e+00> : vector<4x16x16xf32>
    %53 = tpu.matmul %32, %42, %cst_17 {dimension_numbers = #tpu.dot_dimension_numbers<[2], [2], [1], [1], [0, 0, 0, 1, 1, 1], [0], [0]>} : vector<4x16x8xbf16>, vector<4x16x8xbf16>, vector<4x16x16xf32> -> vector<4x16x16xf32>
    "tpu.trace_stop"() : () -> ()
    %cst_18 = arith.constant 0.353553385 : f32
    %54 = vector.broadcast %cst_18 : f32 to vector<4x16x16xf32>
    %55 = arith.mulf %53, %54 : vector<4x16x16xf32>
    %56 = vector.shape_cast %1 : vector<16x16xf32> to vector<1x16x16xf32>
    %57 = vector.broadcast %56 : vector<1x16x16xf32> to vector<4x16x16xf32>
    %58 = arith.addf %55, %57 : vector<4x16x16xf32>
    %cst_19 = arith.constant dense<0xFF800000> : vector<4x16xf32>
    %59 = vector.multi_reduction <maximumf>, %58, %cst_19 [2] : vector<4x16x16xf32> to vector<4x16xf32>
    %60 = vector.shape_cast %59 : vector<4x16xf32> to vector<4x16x1xf32>
    %61 = vector.broadcast %60 : vector<4x16x1xf32> to vector<4x16x16xf32>
    %62 = arith.subf %58, %61 : vector<4x16x16xf32>
    %63 = math.exp %62 : vector<4x16x16xf32>
    %cst_20 = arith.constant dense<0.000000e+00> : vector<4x16xf32>
    %64 = vector.multi_reduction <add>, %63, %cst_20 [2] : vector<4x16x16xf32> to vector<4x16xf32>
    %65 = vector.shape_cast %64 : vector<4x16xf32> to vector<4x16x1xf32>
    %66 = tpu.reciprocal %65 {approx = true} : vector<4x16x1xf32> -> vector<4x16x1xf32>
    %67 = vector.broadcast %66 : vector<4x16x1xf32> to vector<4x16x16xf32>
    %68 = arith.mulf %63, %67 : vector<4x16x16xf32>
    %69 = arith.truncf %68 : vector<4x16x16xf32> to vector<4x16x16xbf16>
    "tpu.trace_start"() <{level = 10 : i32, message = "hqk,hkd->hqd"}> : () -> ()
    %cst_21 = arith.constant dense<0.000000e+00> : vector<4x16x8xf32>
    %70 = tpu.matmul %69, %52, %cst_21 {dimension_numbers = #tpu.dot_dimension_numbers<[2], [1], [1], [2], [0, 0, 0, 1, 1, 2], [0], [0]>} : vector<4x16x16xbf16>, vector<4x16x8xbf16>, vector<4x16x8xf32> -> vector<4x16x8xf32>
    "tpu.trace_stop"() : () -> ()
    %71 = vector.extract_strided_slice %70 {offsets = [0, 0, 0], sizes = [1, 16, 8], strides = [1, 1, 1]} : vector<4x16x8xf32> to vector<1x16x8xf32>
    %72 = vector.shape_cast %71 : vector<1x16x8xf32> to vector<16x8xf32>
    %73 = vector.extract_strided_slice %70 {offsets = [1, 0, 0], sizes = [1, 16, 8], strides = [1, 1, 1]} : vector<4x16x8xf32> to vector<1x16x8xf32>
    %74 = vector.shape_cast %73 : vector<1x16x8xf32> to vector<16x8xf32>
    %75 = vector.extract_strided_slice %70 {offsets = [2, 0, 0], sizes = [1, 16, 8], strides = [1, 1, 1]} : vector<4x16x8xf32> to vector<1x16x8xf32>
    %76 = vector.shape_cast %75 : vector<1x16x8xf32> to vector<16x8xf32>
    %77 = vector.extract_strided_slice %70 {offsets = [3, 0, 0], sizes = [1, 16, 8], strides = [1, 1, 1]} : vector<4x16x8xf32> to vector<1x16x8xf32>
    %78 = vector.shape_cast %77 : vector<1x16x8xf32> to vector<16x8xf32>
    %79 = tpu.concatenate %72, %74, %76, %78 in 1 : vector<16x8xf32>, vector<16x8xf32>, vector<16x8xf32>, vector<16x8xf32> -> vector<16x32xf32>
    %80 = arith.truncf %79 : vector<16x32xf32> to vector<16x32xbf16>
    %81 = vector.extract_strided_slice %11 {offsets = [0, 96], sizes = [32, 32], strides = [1, 1]} : vector<32x256xbf16> to vector<32x32xbf16>
    %cst_22 = arith.constant dense<0.000000e+00> : vector<16x32xf32>
    %82 = tpu.matmul %80, %81, %cst_22 {dimension_numbers = #tpu.dot_dimension_numbers<[1], [0], [0], [1], [0, 0, 1, 1], [], []>} : vector<16x32xbf16>, vector<32x32xbf16>, vector<16x32xf32> -> vector<16x32xf32>
    %83 = vector.extract_strided_slice %13 {offsets = [2, 0], sizes = [1, 32], strides = [1, 1]} : vector<5x96xf32> to vector<1x32xf32>
    %84 = vector.broadcast %83 : vector<1x32xf32> to vector<16x32xf32>
    %85 = arith.addf %82, %84 : vector<16x32xf32>
    %86 = arith.addf %0, %85 : vector<16x32xf32>
    %87 = vector.extract_strided_slice %13 {offsets = [2, 32], sizes = [1, 32], strides = [1, 1]} : vector<5x96xf32> to vector<1x32xf32>
    %88 = vector.extract_strided_slice %13 {offsets = [2, 64], sizes = [1, 32], strides = [1, 1]} : vector<5x96xf32> to vector<1x32xf32>
    %cst_23 = arith.constant dense<0.000000e+00> : vector<16xf32>
    %89 = vector.multi_reduction <add>, %86, %cst_23 [1] : vector<16x32xf32> to vector<16xf32>
    %90 = vector.shape_cast %89 : vector<16xf32> to vector<16x1xf32>
    %cst_24 = arith.constant 3.200000e+01 : f32
    %91 = vector.broadcast %cst_24 : f32 to vector<16x1xf32>
    %92 = arith.divf %90, %91 : vector<16x1xf32>
    %93 = arith.mulf %86, %86 : vector<16x32xf32>
    %cst_25 = arith.constant dense<0.000000e+00> : vector<16xf32>
    %94 = vector.multi_reduction <add>, %93, %cst_25 [1] : vector<16x32xf32> to vector<16xf32>
    %95 = vector.shape_cast %94 : vector<16xf32> to vector<16x1xf32>
    %cst_26 = arith.constant 3.200000e+01 : f32
    %96 = vector.broadcast %cst_26 : f32 to vector<16x1xf32>
    %97 = arith.divf %95, %96 : vector<16x1xf32>
    %98 = arith.mulf %92, %92 : vector<16x1xf32>
    %99 = arith.subf %97, %98 : vector<16x1xf32>
    %100 = vector.broadcast %92 : vector<16x1xf32> to vector<16x32xf32>
    %101 = arith.subf %86, %100 : vector<16x32xf32>
    %cst_27 = arith.constant 9.99999974E-6 : f32
    %102 = vector.broadcast %cst_27 : f32 to vector<16x1xf32>
    %103 = arith.addf %99, %102 : vector<16x1xf32>
    %104 = math.rsqrt %103 : vector<16x1xf32>
    %105 = vector.broadcast %104 : vector<16x1xf32> to vector<16x32xf32>
    %106 = arith.mulf %101, %105 : vector<16x32xf32>
    %107 = vector.broadcast %87 : vector<1x32xf32> to vector<16x32xf32>
    %108 = arith.mulf %106, %107 : vector<16x32xf32>
    %109 = vector.broadcast %88 : vector<1x32xf32> to vector<16x32xf32>
    %110 = arith.addf %108, %109 : vector<16x32xf32>
    %111 = arith.truncf %110 : vector<16x32xf32> to vector<16x32xbf16>
    %112 = vector.extract_strided_slice %11 {offsets = [0, 128], sizes = [32, 32], strides = [1, 1]} : vector<32x256xbf16> to vector<32x32xbf16>
    %cst_28 = arith.constant dense<0.000000e+00> : vector<16x32xf32>
    %113 = tpu.matmul %111, %112, %cst_28 {dimension_numbers = #tpu.dot_dimension_numbers<[1], [0], [0], [1], [0, 0, 1, 1], [], []>} : vector<16x32xbf16>, vector<32x32xbf16>, vector<16x32xf32> -> vector<16x32xf32>
    %114 = vector.extract_strided_slice %13 {offsets = [1, 64], sizes = [1, 32], strides = [1, 1]} : vector<5x96xf32> to vector<1x32xf32>
    %115 = vector.broadcast %114 : vector<1x32xf32> to vector<16x32xf32>
    %116 = arith.addf %113, %115 : vector<16x32xf32>
    %117 = vector.extract_strided_slice %9 {offsets = [0, 0], sizes = [16, 32], strides = [1, 1]} : vector<16x128xf32> to vector<16x32xf32>
    %118 = vector.extract_strided_slice %9 {offsets = [0, 32], sizes = [16, 32], strides = [1, 1]} : vector<16x128xf32> to vector<16x32xf32>
    %119 = vector.extract_strided_slice %116 {offsets = [0, 0], sizes = [16, 8], strides = [1, 1]} : vector<16x32xf32> to vector<16x8xf32>
    %120 = vector.extract_strided_slice %116 {offsets = [0, 8], sizes = [16, 8], strides = [1, 1]} : vector<16x32xf32> to vector<16x8xf32>
    %121 = vector.extract_strided_slice %116 {offsets = [0, 16], sizes = [16, 8], strides = [1, 1]} : vector<16x32xf32> to vector<16x8xf32>
    %122 = vector.extract_strided_slice %116 {offsets = [0, 24], sizes = [16, 8], strides = [1, 1]} : vector<16x32xf32> to vector<16x8xf32>
    %123 = vector.shape_cast %119 : vector<16x8xf32> to vector<1x16x8xf32>
    %124 = vector.shape_cast %120 : vector<16x8xf32> to vector<1x16x8xf32>
    %125 = vector.shape_cast %121 : vector<16x8xf32> to vector<1x16x8xf32>
    %126 = vector.shape_cast %122 : vector<16x8xf32> to vector<1x16x8xf32>
    %127 = tpu.concatenate %123, %124, %125, %126 in 0 : vector<1x16x8xf32>, vector<1x16x8xf32>, vector<1x16x8xf32>, vector<1x16x8xf32> -> vector<4x16x8xf32>
    %128 = arith.truncf %127 : vector<4x16x8xf32> to vector<4x16x8xbf16>
    %129 = vector.extract_strided_slice %117 {offsets = [0, 0], sizes = [16, 8], strides = [1, 1]} : vector<16x32xf32> to vector<16x8xf32>
    %130 = vector.extract_strided_slice %117 {offsets = [0, 8], sizes = [16, 8], strides = [1, 1]} : vector<16x32xf32> to vector<16x8xf32>
    %131 = vector.extract_strided_slice %117 {offsets = [0, 16], sizes = [16, 8], strides = [1, 1]} : vector<16x32xf32> to vector<16x8xf32>
    %132 = vector.extract_strided_slice %117 {offsets = [0, 24], sizes = [16, 8], strides = [1, 1]} : vector<16x32xf32> to vector<16x8xf32>
    %133 = vector.shape_cast %129 : vector<16x8xf32> to vector<1x16x8xf32>
    %134 = vector.shape_cast %130 : vector<16x8xf32> to vector<1x16x8xf32>
    %135 = vector.shape_cast %131 : vector<16x8xf32> to vector<1x16x8xf32>
    %136 = vector.shape_cast %132 : vector<16x8xf32> to vector<1x16x8xf32>
    %137 = tpu.concatenate %133, %134, %135, %136 in 0 : vector<1x16x8xf32>, vector<1x16x8xf32>, vector<1x16x8xf32>, vector<1x16x8xf32> -> vector<4x16x8xf32>
    %138 = arith.truncf %137 : vector<4x16x8xf32> to vector<4x16x8xbf16>
    %139 = vector.extract_strided_slice %118 {offsets = [0, 0], sizes = [16, 8], strides = [1, 1]} : vector<16x32xf32> to vector<16x8xf32>
    %140 = vector.extract_strided_slice %118 {offsets = [0, 8], sizes = [16, 8], strides = [1, 1]} : vector<16x32xf32> to vector<16x8xf32>
    %141 = vector.extract_strided_slice %118 {offsets = [0, 16], sizes = [16, 8], strides = [1, 1]} : vector<16x32xf32> to vector<16x8xf32>
    %142 = vector.extract_strided_slice %118 {offsets = [0, 24], sizes = [16, 8], strides = [1, 1]} : vector<16x32xf32> to vector<16x8xf32>
    %143 = vector.shape_cast %139 : vector<16x8xf32> to vector<1x16x8xf32>
    %144 = vector.shape_cast %140 : vector<16x8xf32> to vector<1x16x8xf32>
    %145 = vector.shape_cast %141 : vector<16x8xf32> to vector<1x16x8xf32>
    %146 = vector.shape_cast %142 : vector<16x8xf32> to vector<1x16x8xf32>
    %147 = tpu.concatenate %143, %144, %145, %146 in 0 : vector<1x16x8xf32>, vector<1x16x8xf32>, vector<1x16x8xf32>, vector<1x16x8xf32> -> vector<4x16x8xf32>
    %148 = arith.truncf %147 : vector<4x16x8xf32> to vector<4x16x8xbf16>
    "tpu.trace_start"() <{level = 10 : i32, message = "hqd,hkd->hqk"}> : () -> ()
    %cst_29 = arith.constant dense<0.000000e+00> : vector<4x16x16xf32>
    %149 = tpu.matmul %128, %138, %cst_29 {dimension_numbers = #tpu.dot_dimension_numbers<[2], [2], [1], [1], [0, 0, 0, 1, 1, 1], [0], [0]>} : vector<4x16x8xbf16>, vector<4x16x8xbf16>, vector<4x16x16xf32> -> vector<4x16x16xf32>
    "tpu.trace_stop"() : () -> ()
    %cst_30 = arith.constant 0.353553385 : f32
    %150 = vector.broadcast %cst_30 : f32 to vector<4x16x16xf32>
    %151 = arith.mulf %149, %150 : vector<4x16x16xf32>
    %152 = vector.shape_cast %2 : vector<16x16xf32> to vector<1x16x16xf32>
    %153 = vector.broadcast %152 : vector<1x16x16xf32> to vector<4x16x16xf32>
    %154 = arith.addf %151, %153 : vector<4x16x16xf32>
    %cst_31 = arith.constant dense<0xFF800000> : vector<4x16xf32>
    %155 = vector.multi_reduction <maximumf>, %154, %cst_31 [2] : vector<4x16x16xf32> to vector<4x16xf32>
    %156 = vector.shape_cast %155 : vector<4x16xf32> to vector<4x16x1xf32>
    %157 = vector.broadcast %156 : vector<4x16x1xf32> to vector<4x16x16xf32>
    %158 = arith.subf %154, %157 : vector<4x16x16xf32>
    %159 = math.exp %158 : vector<4x16x16xf32>
    %cst_32 = arith.constant dense<0.000000e+00> : vector<4x16xf32>
    %160 = vector.multi_reduction <add>, %159, %cst_32 [2] : vector<4x16x16xf32> to vector<4x16xf32>
    %161 = vector.shape_cast %160 : vector<4x16xf32> to vector<4x16x1xf32>
    %162 = tpu.reciprocal %161 {approx = true} : vector<4x16x1xf32> -> vector<4x16x1xf32>
    %163 = vector.broadcast %162 : vector<4x16x1xf32> to vector<4x16x16xf32>
    %164 = arith.mulf %159, %163 : vector<4x16x16xf32>
    %165 = arith.truncf %164 : vector<4x16x16xf32> to vector<4x16x16xbf16>
    "tpu.trace_start"() <{level = 10 : i32, message = "hqk,hkd->hqd"}> : () -> ()
    %cst_33 = arith.constant dense<0.000000e+00> : vector<4x16x8xf32>
    %166 = tpu.matmul %165, %148, %cst_33 {dimension_numbers = #tpu.dot_dimension_numbers<[2], [1], [1], [2], [0, 0, 0, 1, 1, 2], [0], [0]>} : vector<4x16x16xbf16>, vector<4x16x8xbf16>, vector<4x16x8xf32> -> vector<4x16x8xf32>
    "tpu.trace_stop"() : () -> ()
    %167 = vector.extract_strided_slice %166 {offsets = [0, 0, 0], sizes = [1, 16, 8], strides = [1, 1, 1]} : vector<4x16x8xf32> to vector<1x16x8xf32>
    %168 = vector.shape_cast %167 : vector<1x16x8xf32> to vector<16x8xf32>
    %169 = vector.extract_strided_slice %166 {offsets = [1, 0, 0], sizes = [1, 16, 8], strides = [1, 1, 1]} : vector<4x16x8xf32> to vector<1x16x8xf32>
    %170 = vector.shape_cast %169 : vector<1x16x8xf32> to vector<16x8xf32>
    %171 = vector.extract_strided_slice %166 {offsets = [2, 0, 0], sizes = [1, 16, 8], strides = [1, 1, 1]} : vector<4x16x8xf32> to vector<1x16x8xf32>
    %172 = vector.shape_cast %171 : vector<1x16x8xf32> to vector<16x8xf32>
    %173 = vector.extract_strided_slice %166 {offsets = [3, 0, 0], sizes = [1, 16, 8], strides = [1, 1, 1]} : vector<4x16x8xf32> to vector<1x16x8xf32>
    %174 = vector.shape_cast %173 : vector<1x16x8xf32> to vector<16x8xf32>
    %175 = tpu.concatenate %168, %170, %172, %174 in 1 : vector<16x8xf32>, vector<16x8xf32>, vector<16x8xf32>, vector<16x8xf32> -> vector<16x32xf32>
    %176 = arith.truncf %175 : vector<16x32xf32> to vector<16x32xbf16>
    %177 = vector.extract_strided_slice %11 {offsets = [0, 160], sizes = [32, 32], strides = [1, 1]} : vector<32x256xbf16> to vector<32x32xbf16>
    %cst_34 = arith.constant dense<0.000000e+00> : vector<16x32xf32>
    %178 = tpu.matmul %176, %177, %cst_34 {dimension_numbers = #tpu.dot_dimension_numbers<[1], [0], [0], [1], [0, 0, 1, 1], [], []>} : vector<16x32xbf16>, vector<32x32xbf16>, vector<16x32xf32> -> vector<16x32xf32>
    %179 = vector.extract_strided_slice %13 {offsets = [3, 0], sizes = [1, 32], strides = [1, 1]} : vector<5x96xf32> to vector<1x32xf32>
    %180 = vector.broadcast %179 : vector<1x32xf32> to vector<16x32xf32>
    %181 = arith.addf %178, %180 : vector<16x32xf32>
    %182 = arith.addf %110, %181 : vector<16x32xf32>
    %183 = vector.extract_strided_slice %13 {offsets = [3, 32], sizes = [1, 32], strides = [1, 1]} : vector<5x96xf32> to vector<1x32xf32>
    %184 = vector.extract_strided_slice %13 {offsets = [3, 64], sizes = [1, 32], strides = [1, 1]} : vector<5x96xf32> to vector<1x32xf32>
    %cst_35 = arith.constant dense<0.000000e+00> : vector<16xf32>
    %185 = vector.multi_reduction <add>, %182, %cst_35 [1] : vector<16x32xf32> to vector<16xf32>
    %186 = vector.shape_cast %185 : vector<16xf32> to vector<16x1xf32>
    %cst_36 = arith.constant 3.200000e+01 : f32
    %187 = vector.broadcast %cst_36 : f32 to vector<16x1xf32>
    %188 = arith.divf %186, %187 : vector<16x1xf32>
    %189 = arith.mulf %182, %182 : vector<16x32xf32>
    %cst_37 = arith.constant dense<0.000000e+00> : vector<16xf32>
    %190 = vector.multi_reduction <add>, %189, %cst_37 [1] : vector<16x32xf32> to vector<16xf32>
    %191 = vector.shape_cast %190 : vector<16xf32> to vector<16x1xf32>
    %cst_38 = arith.constant 3.200000e+01 : f32
    %192 = vector.broadcast %cst_38 : f32 to vector<16x1xf32>
    %193 = arith.divf %191, %192 : vector<16x1xf32>
    %194 = arith.mulf %188, %188 : vector<16x1xf32>
    %195 = arith.subf %193, %194 : vector<16x1xf32>
    %196 = vector.broadcast %188 : vector<16x1xf32> to vector<16x32xf32>
    %197 = arith.subf %182, %196 : vector<16x32xf32>
    %cst_39 = arith.constant 9.99999974E-6 : f32
    %198 = vector.broadcast %cst_39 : f32 to vector<16x1xf32>
    %199 = arith.addf %195, %198 : vector<16x1xf32>
    %200 = math.rsqrt %199 : vector<16x1xf32>
    %201 = vector.broadcast %200 : vector<16x1xf32> to vector<16x32xf32>
    %202 = arith.mulf %197, %201 : vector<16x32xf32>
    %203 = vector.broadcast %183 : vector<1x32xf32> to vector<16x32xf32>
    %204 = arith.mulf %202, %203 : vector<16x32xf32>
    %205 = vector.broadcast %184 : vector<1x32xf32> to vector<16x32xf32>
    %206 = arith.addf %204, %205 : vector<16x32xf32>
    %207 = arith.truncf %206 : vector<16x32xf32> to vector<16x32xbf16>
    %208 = vector.extract_strided_slice %11 {offsets = [0, 192], sizes = [32, 64], strides = [1, 1]} : vector<32x256xbf16> to vector<32x64xbf16>
    %cst_40 = arith.constant dense<0.000000e+00> : vector<16x64xf32>
    %209 = tpu.matmul %207, %208, %cst_40 {dimension_numbers = #tpu.dot_dimension_numbers<[1], [0], [0], [1], [0, 0, 1, 1], [], []>} : vector<16x32xbf16>, vector<32x64xbf16>, vector<16x64xf32> -> vector<16x64xf32>
    %210 = vector.extract_strided_slice %13 {offsets = [1, 0], sizes = [1, 64], strides = [1, 1]} : vector<5x96xf32> to vector<1x64xf32>
    %211 = vector.broadcast %210 : vector<1x64xf32> to vector<16x64xf32>
    %212 = arith.addf %209, %211 : vector<16x64xf32>
    %cst_41 = arith.constant 0.000000e+00 : f32
    %213 = vector.broadcast %cst_41 : f32 to vector<16x64xf32>
    %214 = arith.maximumf %212, %213 : vector<16x64xf32>
    %215 = arith.truncf %214 : vector<16x64xf32> to vector<16x64xbf16>
    %c0_42 = arith.constant 0 : index
    %c0_43 = arith.constant 0 : index
    %c0_44 = arith.constant 0 : index
    %216 = vector.load %arg5[%c0_42, %c0_43, %c0_44] : memref<2x64x32xbf16, #tpu.memory_space<vmem>>, vector<1x64x32xbf16>
    %217 = vector.shape_cast %216 : vector<1x64x32xbf16> to vector<64x32xbf16>
    %cst_45 = arith.constant dense<0.000000e+00> : vector<16x32xf32>
    %218 = tpu.matmul %215, %217, %cst_45 {dimension_numbers = #tpu.dot_dimension_numbers<[1], [0], [0], [1], [0, 0, 1, 1], [], []>} : vector<16x64xbf16>, vector<64x32xbf16>, vector<16x32xf32> -> vector<16x32xf32>
    %219 = vector.extract_strided_slice %13 {offsets = [4, 0], sizes = [1, 32], strides = [1, 1]} : vector<5x96xf32> to vector<1x32xf32>
    %220 = vector.broadcast %219 : vector<1x32xf32> to vector<16x32xf32>
    %221 = arith.addf %218, %220 : vector<16x32xf32>
    %222 = arith.addf %206, %221 : vector<16x32xf32>
    %223 = vector.extract_strided_slice %13 {offsets = [4, 32], sizes = [1, 32], strides = [1, 1]} : vector<5x96xf32> to vector<1x32xf32>
    %224 = vector.extract_strided_slice %13 {offsets = [4, 64], sizes = [1, 32], strides = [1, 1]} : vector<5x96xf32> to vector<1x32xf32>
    %cst_46 = arith.constant dense<0.000000e+00> : vector<16xf32>
    %225 = vector.multi_reduction <add>, %222, %cst_46 [1] : vector<16x32xf32> to vector<16xf32>
    %226 = vector.shape_cast %225 : vector<16xf32> to vector<16x1xf32>
    %cst_47 = arith.constant 3.200000e+01 : f32
    %227 = vector.broadcast %cst_47 : f32 to vector<16x1xf32>
    %228 = arith.divf %226, %227 : vector<16x1xf32>
    %229 = arith.mulf %222, %222 : vector<16x32xf32>
    %cst_48 = arith.constant dense<0.000000e+00> : vector<16xf32>
    %230 = vector.multi_reduction <add>, %229, %cst_48 [1] : vector<16x32xf32> to vector<16xf32>
    %231 = vector.shape_cast %230 : vector<16xf32> to vector<16x1xf32>
    %cst_49 = arith.constant 3.200000e+01 : f32
    %232 = vector.broadcast %cst_49 : f32 to vector<16x1xf32>
    %233 = arith.divf %231, %232 : vector<16x1xf32>
    %234 = arith.mulf %228, %228 : vector<16x1xf32>
    %235 = arith.subf %233, %234 : vector<16x1xf32>
    %236 = vector.broadcast %228 : vector<16x1xf32> to vector<16x32xf32>
    %237 = arith.subf %222, %236 : vector<16x32xf32>
    %cst_50 = arith.constant 9.99999974E-6 : f32
    %238 = vector.broadcast %cst_50 : f32 to vector<16x1xf32>
    %239 = arith.addf %235, %238 : vector<16x1xf32>
    %240 = math.rsqrt %239 : vector<16x1xf32>
    %241 = vector.broadcast %240 : vector<16x1xf32> to vector<16x32xf32>
    %242 = arith.mulf %237, %241 : vector<16x32xf32>
    %243 = vector.broadcast %223 : vector<1x32xf32> to vector<16x32xf32>
    %244 = arith.mulf %242, %243 : vector<16x32xf32>
    %245 = vector.broadcast %224 : vector<1x32xf32> to vector<16x32xf32>
    %246 = arith.addf %244, %245 : vector<16x32xf32>
    %c1 = arith.constant 1 : index
    %c0_51 = arith.constant 0 : index
    %c0_52 = arith.constant 0 : index
    %247 = vector.load %arg3[%c1, %c0_51, %c0_52] : memref<2x32x256xbf16, #tpu.memory_space<vmem>>, vector<1x32x256xbf16>
    %248 = vector.shape_cast %247 : vector<1x32x256xbf16> to vector<32x256xbf16>
    %c1_53 = arith.constant 1 : index
    %c0_54 = arith.constant 0 : index
    %c0_55 = arith.constant 0 : index
    %249 = vector.load %arg6[%c1_53, %c0_54, %c0_55] : memref<2x5x96xf32, #tpu.memory_space<vmem>>, vector<1x5x96xf32>
    %250 = vector.shape_cast %249 : vector<1x5x96xf32> to vector<5x96xf32>
    %251 = arith.truncf %246 : vector<16x32xf32> to vector<16x32xbf16>
    %252 = vector.extract_strided_slice %248 {offsets = [0, 0], sizes = [32, 96], strides = [1, 1]} : vector<32x256xbf16> to vector<32x96xbf16>
    %cst_56 = arith.constant dense<0.000000e+00> : vector<16x96xf32>
    %253 = tpu.matmul %251, %252, %cst_56 {dimension_numbers = #tpu.dot_dimension_numbers<[1], [0], [0], [1], [0, 0, 1, 1], [], []>} : vector<16x32xbf16>, vector<32x96xbf16>, vector<16x96xf32> -> vector<16x96xf32>
    %254 = vector.extract_strided_slice %250 {offsets = [0, 0], sizes = [1, 96], strides = [1, 1]} : vector<5x96xf32> to vector<1x96xf32>
    %255 = vector.broadcast %254 : vector<1x96xf32> to vector<16x96xf32>
    %256 = arith.addf %253, %255 : vector<16x96xf32>
    %257 = vector.extract_strided_slice %256 {offsets = [0, 0], sizes = [16, 32], strides = [1, 1]} : vector<16x96xf32> to vector<16x32xf32>
    %258 = vector.extract_strided_slice %256 {offsets = [0, 32], sizes = [16, 32], strides = [1, 1]} : vector<16x96xf32> to vector<16x32xf32>
    %259 = vector.extract_strided_slice %256 {offsets = [0, 64], sizes = [16, 32], strides = [1, 1]} : vector<16x96xf32> to vector<16x32xf32>
    %260 = vector.extract_strided_slice %257 {offsets = [0, 0], sizes = [16, 8], strides = [1, 1]} : vector<16x32xf32> to vector<16x8xf32>
    %261 = vector.extract_strided_slice %257 {offsets = [0, 8], sizes = [16, 8], strides = [1, 1]} : vector<16x32xf32> to vector<16x8xf32>
    %262 = vector.extract_strided_slice %257 {offsets = [0, 16], sizes = [16, 8], strides = [1, 1]} : vector<16x32xf32> to vector<16x8xf32>
    %263 = vector.extract_strided_slice %257 {offsets = [0, 24], sizes = [16, 8], strides = [1, 1]} : vector<16x32xf32> to vector<16x8xf32>
    %264 = vector.shape_cast %260 : vector<16x8xf32> to vector<1x16x8xf32>
    %265 = vector.shape_cast %261 : vector<16x8xf32> to vector<1x16x8xf32>
    %266 = vector.shape_cast %262 : vector<16x8xf32> to vector<1x16x8xf32>
    %267 = vector.shape_cast %263 : vector<16x8xf32> to vector<1x16x8xf32>
    %268 = tpu.concatenate %264, %265, %266, %267 in 0 : vector<1x16x8xf32>, vector<1x16x8xf32>, vector<1x16x8xf32>, vector<1x16x8xf32> -> vector<4x16x8xf32>
    %269 = arith.truncf %268 : vector<4x16x8xf32> to vector<4x16x8xbf16>
    %270 = vector.extract_strided_slice %258 {offsets = [0, 0], sizes = [16, 8], strides = [1, 1]} : vector<16x32xf32> to vector<16x8xf32>
    %271 = vector.extract_strided_slice %258 {offsets = [0, 8], sizes = [16, 8], strides = [1, 1]} : vector<16x32xf32> to vector<16x8xf32>
    %272 = vector.extract_strided_slice %258 {offsets = [0, 16], sizes = [16, 8], strides = [1, 1]} : vector<16x32xf32> to vector<16x8xf32>
    %273 = vector.extract_strided_slice %258 {offsets = [0, 24], sizes = [16, 8], strides = [1, 1]} : vector<16x32xf32> to vector<16x8xf32>
    %274 = vector.shape_cast %270 : vector<16x8xf32> to vector<1x16x8xf32>
    %275 = vector.shape_cast %271 : vector<16x8xf32> to vector<1x16x8xf32>
    %276 = vector.shape_cast %272 : vector<16x8xf32> to vector<1x16x8xf32>
    %277 = vector.shape_cast %273 : vector<16x8xf32> to vector<1x16x8xf32>
    %278 = tpu.concatenate %274, %275, %276, %277 in 0 : vector<1x16x8xf32>, vector<1x16x8xf32>, vector<1x16x8xf32>, vector<1x16x8xf32> -> vector<4x16x8xf32>
    %279 = arith.truncf %278 : vector<4x16x8xf32> to vector<4x16x8xbf16>
    %280 = vector.extract_strided_slice %259 {offsets = [0, 0], sizes = [16, 8], strides = [1, 1]} : vector<16x32xf32> to vector<16x8xf32>
    %281 = vector.extract_strided_slice %259 {offsets = [0, 8], sizes = [16, 8], strides = [1, 1]} : vector<16x32xf32> to vector<16x8xf32>
    %282 = vector.extract_strided_slice %259 {offsets = [0, 16], sizes = [16, 8], strides = [1, 1]} : vector<16x32xf32> to vector<16x8xf32>
    %283 = vector.extract_strided_slice %259 {offsets = [0, 24], sizes = [16, 8], strides = [1, 1]} : vector<16x32xf32> to vector<16x8xf32>
    %284 = vector.shape_cast %280 : vector<16x8xf32> to vector<1x16x8xf32>
    %285 = vector.shape_cast %281 : vector<16x8xf32> to vector<1x16x8xf32>
    %286 = vector.shape_cast %282 : vector<16x8xf32> to vector<1x16x8xf32>
    %287 = vector.shape_cast %283 : vector<16x8xf32> to vector<1x16x8xf32>
    %288 = tpu.concatenate %284, %285, %286, %287 in 0 : vector<1x16x8xf32>, vector<1x16x8xf32>, vector<1x16x8xf32>, vector<1x16x8xf32> -> vector<4x16x8xf32>
    %289 = arith.truncf %288 : vector<4x16x8xf32> to vector<4x16x8xbf16>
    "tpu.trace_start"() <{level = 10 : i32, message = "hqd,hkd->hqk"}> : () -> ()
    %cst_57 = arith.constant dense<0.000000e+00> : vector<4x16x16xf32>
    %290 = tpu.matmul %269, %279, %cst_57 {dimension_numbers = #tpu.dot_dimension_numbers<[2], [2], [1], [1], [0, 0, 0, 1, 1, 1], [0], [0]>} : vector<4x16x8xbf16>, vector<4x16x8xbf16>, vector<4x16x16xf32> -> vector<4x16x16xf32>
    "tpu.trace_stop"() : () -> ()
    %cst_58 = arith.constant 0.353553385 : f32
    %291 = vector.broadcast %cst_58 : f32 to vector<4x16x16xf32>
    %292 = arith.mulf %290, %291 : vector<4x16x16xf32>
    %293 = vector.shape_cast %1 : vector<16x16xf32> to vector<1x16x16xf32>
    %294 = vector.broadcast %293 : vector<1x16x16xf32> to vector<4x16x16xf32>
    %295 = arith.addf %292, %294 : vector<4x16x16xf32>
    %cst_59 = arith.constant dense<0xFF800000> : vector<4x16xf32>
    %296 = vector.multi_reduction <maximumf>, %295, %cst_59 [2] : vector<4x16x16xf32> to vector<4x16xf32>
    %297 = vector.shape_cast %296 : vector<4x16xf32> to vector<4x16x1xf32>
    %298 = vector.broadcast %297 : vector<4x16x1xf32> to vector<4x16x16xf32>
    %299 = arith.subf %295, %298 : vector<4x16x16xf32>
    %300 = math.exp %299 : vector<4x16x16xf32>
    %cst_60 = arith.constant dense<0.000000e+00> : vector<4x16xf32>
    %301 = vector.multi_reduction <add>, %300, %cst_60 [2] : vector<4x16x16xf32> to vector<4x16xf32>
    %302 = vector.shape_cast %301 : vector<4x16xf32> to vector<4x16x1xf32>
    %303 = tpu.reciprocal %302 {approx = true} : vector<4x16x1xf32> -> vector<4x16x1xf32>
    %304 = vector.broadcast %303 : vector<4x16x1xf32> to vector<4x16x16xf32>
    %305 = arith.mulf %300, %304 : vector<4x16x16xf32>
    %306 = arith.truncf %305 : vector<4x16x16xf32> to vector<4x16x16xbf16>
    "tpu.trace_start"() <{level = 10 : i32, message = "hqk,hkd->hqd"}> : () -> ()
    %cst_61 = arith.constant dense<0.000000e+00> : vector<4x16x8xf32>
    %307 = tpu.matmul %306, %289, %cst_61 {dimension_numbers = #tpu.dot_dimension_numbers<[2], [1], [1], [2], [0, 0, 0, 1, 1, 2], [0], [0]>} : vector<4x16x16xbf16>, vector<4x16x8xbf16>, vector<4x16x8xf32> -> vector<4x16x8xf32>
    "tpu.trace_stop"() : () -> ()
    %308 = vector.extract_strided_slice %307 {offsets = [0, 0, 0], sizes = [1, 16, 8], strides = [1, 1, 1]} : vector<4x16x8xf32> to vector<1x16x8xf32>
    %309 = vector.shape_cast %308 : vector<1x16x8xf32> to vector<16x8xf32>
    %310 = vector.extract_strided_slice %307 {offsets = [1, 0, 0], sizes = [1, 16, 8], strides = [1, 1, 1]} : vector<4x16x8xf32> to vector<1x16x8xf32>
    %311 = vector.shape_cast %310 : vector<1x16x8xf32> to vector<16x8xf32>
    %312 = vector.extract_strided_slice %307 {offsets = [2, 0, 0], sizes = [1, 16, 8], strides = [1, 1, 1]} : vector<4x16x8xf32> to vector<1x16x8xf32>
    %313 = vector.shape_cast %312 : vector<1x16x8xf32> to vector<16x8xf32>
    %314 = vector.extract_strided_slice %307 {offsets = [3, 0, 0], sizes = [1, 16, 8], strides = [1, 1, 1]} : vector<4x16x8xf32> to vector<1x16x8xf32>
    %315 = vector.shape_cast %314 : vector<1x16x8xf32> to vector<16x8xf32>
    %316 = tpu.concatenate %309, %311, %313, %315 in 1 : vector<16x8xf32>, vector<16x8xf32>, vector<16x8xf32>, vector<16x8xf32> -> vector<16x32xf32>
    %317 = arith.truncf %316 : vector<16x32xf32> to vector<16x32xbf16>
    %318 = vector.extract_strided_slice %248 {offsets = [0, 96], sizes = [32, 32], strides = [1, 1]} : vector<32x256xbf16> to vector<32x32xbf16>
    %cst_62 = arith.constant dense<0.000000e+00> : vector<16x32xf32>
    %319 = tpu.matmul %317, %318, %cst_62 {dimension_numbers = #tpu.dot_dimension_numbers<[1], [0], [0], [1], [0, 0, 1, 1], [], []>} : vector<16x32xbf16>, vector<32x32xbf16>, vector<16x32xf32> -> vector<16x32xf32>
    %320 = vector.extract_strided_slice %250 {offsets = [2, 0], sizes = [1, 32], strides = [1, 1]} : vector<5x96xf32> to vector<1x32xf32>
    %321 = vector.broadcast %320 : vector<1x32xf32> to vector<16x32xf32>
    %322 = arith.addf %319, %321 : vector<16x32xf32>
    %323 = arith.addf %246, %322 : vector<16x32xf32>
    %324 = vector.extract_strided_slice %250 {offsets = [2, 32], sizes = [1, 32], strides = [1, 1]} : vector<5x96xf32> to vector<1x32xf32>
    %325 = vector.extract_strided_slice %250 {offsets = [2, 64], sizes = [1, 32], strides = [1, 1]} : vector<5x96xf32> to vector<1x32xf32>
    %cst_63 = arith.constant dense<0.000000e+00> : vector<16xf32>
    %326 = vector.multi_reduction <add>, %323, %cst_63 [1] : vector<16x32xf32> to vector<16xf32>
    %327 = vector.shape_cast %326 : vector<16xf32> to vector<16x1xf32>
    %cst_64 = arith.constant 3.200000e+01 : f32
    %328 = vector.broadcast %cst_64 : f32 to vector<16x1xf32>
    %329 = arith.divf %327, %328 : vector<16x1xf32>
    %330 = arith.mulf %323, %323 : vector<16x32xf32>
    %cst_65 = arith.constant dense<0.000000e+00> : vector<16xf32>
    %331 = vector.multi_reduction <add>, %330, %cst_65 [1] : vector<16x32xf32> to vector<16xf32>
    %332 = vector.shape_cast %331 : vector<16xf32> to vector<16x1xf32>
    %cst_66 = arith.constant 3.200000e+01 : f32
    %333 = vector.broadcast %cst_66 : f32 to vector<16x1xf32>
    %334 = arith.divf %332, %333 : vector<16x1xf32>
    %335 = arith.mulf %329, %329 : vector<16x1xf32>
    %336 = arith.subf %334, %335 : vector<16x1xf32>
    %337 = vector.broadcast %329 : vector<16x1xf32> to vector<16x32xf32>
    %338 = arith.subf %323, %337 : vector<16x32xf32>
    %cst_67 = arith.constant 9.99999974E-6 : f32
    %339 = vector.broadcast %cst_67 : f32 to vector<16x1xf32>
    %340 = arith.addf %336, %339 : vector<16x1xf32>
    %341 = math.rsqrt %340 : vector<16x1xf32>
    %342 = vector.broadcast %341 : vector<16x1xf32> to vector<16x32xf32>
    %343 = arith.mulf %338, %342 : vector<16x32xf32>
    %344 = vector.broadcast %324 : vector<1x32xf32> to vector<16x32xf32>
    %345 = arith.mulf %343, %344 : vector<16x32xf32>
    %346 = vector.broadcast %325 : vector<1x32xf32> to vector<16x32xf32>
    %347 = arith.addf %345, %346 : vector<16x32xf32>
    %348 = arith.truncf %347 : vector<16x32xf32> to vector<16x32xbf16>
    %349 = vector.extract_strided_slice %248 {offsets = [0, 128], sizes = [32, 32], strides = [1, 1]} : vector<32x256xbf16> to vector<32x32xbf16>
    %cst_68 = arith.constant dense<0.000000e+00> : vector<16x32xf32>
    %350 = tpu.matmul %348, %349, %cst_68 {dimension_numbers = #tpu.dot_dimension_numbers<[1], [0], [0], [1], [0, 0, 1, 1], [], []>} : vector<16x32xbf16>, vector<32x32xbf16>, vector<16x32xf32> -> vector<16x32xf32>
    %351 = vector.extract_strided_slice %250 {offsets = [1, 64], sizes = [1, 32], strides = [1, 1]} : vector<5x96xf32> to vector<1x32xf32>
    %352 = vector.broadcast %351 : vector<1x32xf32> to vector<16x32xf32>
    %353 = arith.addf %350, %352 : vector<16x32xf32>
    %354 = vector.extract_strided_slice %9 {offsets = [0, 64], sizes = [16, 32], strides = [1, 1]} : vector<16x128xf32> to vector<16x32xf32>
    %355 = vector.extract_strided_slice %9 {offsets = [0, 96], sizes = [16, 32], strides = [1, 1]} : vector<16x128xf32> to vector<16x32xf32>
    %356 = vector.extract_strided_slice %353 {offsets = [0, 0], sizes = [16, 8], strides = [1, 1]} : vector<16x32xf32> to vector<16x8xf32>
    %357 = vector.extract_strided_slice %353 {offsets = [0, 8], sizes = [16, 8], strides = [1, 1]} : vector<16x32xf32> to vector<16x8xf32>
    %358 = vector.extract_strided_slice %353 {offsets = [0, 16], sizes = [16, 8], strides = [1, 1]} : vector<16x32xf32> to vector<16x8xf32>
    %359 = vector.extract_strided_slice %353 {offsets = [0, 24], sizes = [16, 8], strides = [1, 1]} : vector<16x32xf32> to vector<16x8xf32>
    %360 = vector.shape_cast %356 : vector<16x8xf32> to vector<1x16x8xf32>
    %361 = vector.shape_cast %357 : vector<16x8xf32> to vector<1x16x8xf32>
    %362 = vector.shape_cast %358 : vector<16x8xf32> to vector<1x16x8xf32>
    %363 = vector.shape_cast %359 : vector<16x8xf32> to vector<1x16x8xf32>
    %364 = tpu.concatenate %360, %361, %362, %363 in 0 : vector<1x16x8xf32>, vector<1x16x8xf32>, vector<1x16x8xf32>, vector<1x16x8xf32> -> vector<4x16x8xf32>
    %365 = arith.truncf %364 : vector<4x16x8xf32> to vector<4x16x8xbf16>
    %366 = vector.extract_strided_slice %354 {offsets = [0, 0], sizes = [16, 8], strides = [1, 1]} : vector<16x32xf32> to vector<16x8xf32>
    %367 = vector.extract_strided_slice %354 {offsets = [0, 8], sizes = [16, 8], strides = [1, 1]} : vector<16x32xf32> to vector<16x8xf32>
    %368 = vector.extract_strided_slice %354 {offsets = [0, 16], sizes = [16, 8], strides = [1, 1]} : vector<16x32xf32> to vector<16x8xf32>
    %369 = vector.extract_strided_slice %354 {offsets = [0, 24], sizes = [16, 8], strides = [1, 1]} : vector<16x32xf32> to vector<16x8xf32>
    %370 = vector.shape_cast %366 : vector<16x8xf32> to vector<1x16x8xf32>
    %371 = vector.shape_cast %367 : vector<16x8xf32> to vector<1x16x8xf32>
    %372 = vector.shape_cast %368 : vector<16x8xf32> to vector<1x16x8xf32>
    %373 = vector.shape_cast %369 : vector<16x8xf32> to vector<1x16x8xf32>
    %374 = tpu.concatenate %370, %371, %372, %373 in 0 : vector<1x16x8xf32>, vector<1x16x8xf32>, vector<1x16x8xf32>, vector<1x16x8xf32> -> vector<4x16x8xf32>
    %375 = arith.truncf %374 : vector<4x16x8xf32> to vector<4x16x8xbf16>
    %376 = vector.extract_strided_slice %355 {offsets = [0, 0], sizes = [16, 8], strides = [1, 1]} : vector<16x32xf32> to vector<16x8xf32>
    %377 = vector.extract_strided_slice %355 {offsets = [0, 8], sizes = [16, 8], strides = [1, 1]} : vector<16x32xf32> to vector<16x8xf32>
    %378 = vector.extract_strided_slice %355 {offsets = [0, 16], sizes = [16, 8], strides = [1, 1]} : vector<16x32xf32> to vector<16x8xf32>
    %379 = vector.extract_strided_slice %355 {offsets = [0, 24], sizes = [16, 8], strides = [1, 1]} : vector<16x32xf32> to vector<16x8xf32>
    %380 = vector.shape_cast %376 : vector<16x8xf32> to vector<1x16x8xf32>
    %381 = vector.shape_cast %377 : vector<16x8xf32> to vector<1x16x8xf32>
    %382 = vector.shape_cast %378 : vector<16x8xf32> to vector<1x16x8xf32>
    %383 = vector.shape_cast %379 : vector<16x8xf32> to vector<1x16x8xf32>
    %384 = tpu.concatenate %380, %381, %382, %383 in 0 : vector<1x16x8xf32>, vector<1x16x8xf32>, vector<1x16x8xf32>, vector<1x16x8xf32> -> vector<4x16x8xf32>
    %385 = arith.truncf %384 : vector<4x16x8xf32> to vector<4x16x8xbf16>
    "tpu.trace_start"() <{level = 10 : i32, message = "hqd,hkd->hqk"}> : () -> ()
    %cst_69 = arith.constant dense<0.000000e+00> : vector<4x16x16xf32>
    %386 = tpu.matmul %365, %375, %cst_69 {dimension_numbers = #tpu.dot_dimension_numbers<[2], [2], [1], [1], [0, 0, 0, 1, 1, 1], [0], [0]>} : vector<4x16x8xbf16>, vector<4x16x8xbf16>, vector<4x16x16xf32> -> vector<4x16x16xf32>
    "tpu.trace_stop"() : () -> ()
    %cst_70 = arith.constant 0.353553385 : f32
    %387 = vector.broadcast %cst_70 : f32 to vector<4x16x16xf32>
    %388 = arith.mulf %386, %387 : vector<4x16x16xf32>
    %389 = vector.shape_cast %2 : vector<16x16xf32> to vector<1x16x16xf32>
    %390 = vector.broadcast %389 : vector<1x16x16xf32> to vector<4x16x16xf32>
    %391 = arith.addf %388, %390 : vector<4x16x16xf32>
    %cst_71 = arith.constant dense<0xFF800000> : vector<4x16xf32>
    %392 = vector.multi_reduction <maximumf>, %391, %cst_71 [2] : vector<4x16x16xf32> to vector<4x16xf32>
    %393 = vector.shape_cast %392 : vector<4x16xf32> to vector<4x16x1xf32>
    %394 = vector.broadcast %393 : vector<4x16x1xf32> to vector<4x16x16xf32>
    %395 = arith.subf %391, %394 : vector<4x16x16xf32>
    %396 = math.exp %395 : vector<4x16x16xf32>
    %cst_72 = arith.constant dense<0.000000e+00> : vector<4x16xf32>
    %397 = vector.multi_reduction <add>, %396, %cst_72 [2] : vector<4x16x16xf32> to vector<4x16xf32>
    %398 = vector.shape_cast %397 : vector<4x16xf32> to vector<4x16x1xf32>
    %399 = tpu.reciprocal %398 {approx = true} : vector<4x16x1xf32> -> vector<4x16x1xf32>
    %400 = vector.broadcast %399 : vector<4x16x1xf32> to vector<4x16x16xf32>
    %401 = arith.mulf %396, %400 : vector<4x16x16xf32>
    %402 = arith.truncf %401 : vector<4x16x16xf32> to vector<4x16x16xbf16>
    "tpu.trace_start"() <{level = 10 : i32, message = "hqk,hkd->hqd"}> : () -> ()
    %cst_73 = arith.constant dense<0.000000e+00> : vector<4x16x8xf32>
    %403 = tpu.matmul %402, %385, %cst_73 {dimension_numbers = #tpu.dot_dimension_numbers<[2], [1], [1], [2], [0, 0, 0, 1, 1, 2], [0], [0]>} : vector<4x16x16xbf16>, vector<4x16x8xbf16>, vector<4x16x8xf32> -> vector<4x16x8xf32>
    "tpu.trace_stop"() : () -> ()
    %404 = vector.extract_strided_slice %403 {offsets = [0, 0, 0], sizes = [1, 16, 8], strides = [1, 1, 1]} : vector<4x16x8xf32> to vector<1x16x8xf32>
    %405 = vector.shape_cast %404 : vector<1x16x8xf32> to vector<16x8xf32>
    %406 = vector.extract_strided_slice %403 {offsets = [1, 0, 0], sizes = [1, 16, 8], strides = [1, 1, 1]} : vector<4x16x8xf32> to vector<1x16x8xf32>
    %407 = vector.shape_cast %406 : vector<1x16x8xf32> to vector<16x8xf32>
    %408 = vector.extract_strided_slice %403 {offsets = [2, 0, 0], sizes = [1, 16, 8], strides = [1, 1, 1]} : vector<4x16x8xf32> to vector<1x16x8xf32>
    %409 = vector.shape_cast %408 : vector<1x16x8xf32> to vector<16x8xf32>
    %410 = vector.extract_strided_slice %403 {offsets = [3, 0, 0], sizes = [1, 16, 8], strides = [1, 1, 1]} : vector<4x16x8xf32> to vector<1x16x8xf32>
    %411 = vector.shape_cast %410 : vector<1x16x8xf32> to vector<16x8xf32>
    %412 = tpu.concatenate %405, %407, %409, %411 in 1 : vector<16x8xf32>, vector<16x8xf32>, vector<16x8xf32>, vector<16x8xf32> -> vector<16x32xf32>
    %413 = arith.truncf %412 : vector<16x32xf32> to vector<16x32xbf16>
    %414 = vector.extract_strided_slice %248 {offsets = [0, 160], sizes = [32, 32], strides = [1, 1]} : vector<32x256xbf16> to vector<32x32xbf16>
    %cst_74 = arith.constant dense<0.000000e+00> : vector<16x32xf32>
    %415 = tpu.matmul %413, %414, %cst_74 {dimension_numbers = #tpu.dot_dimension_numbers<[1], [0], [0], [1], [0, 0, 1, 1], [], []>} : vector<16x32xbf16>, vector<32x32xbf16>, vector<16x32xf32> -> vector<16x32xf32>
    %416 = vector.extract_strided_slice %250 {offsets = [3, 0], sizes = [1, 32], strides = [1, 1]} : vector<5x96xf32> to vector<1x32xf32>
    %417 = vector.broadcast %416 : vector<1x32xf32> to vector<16x32xf32>
    %418 = arith.addf %415, %417 : vector<16x32xf32>
    %419 = arith.addf %347, %418 : vector<16x32xf32>
    %420 = vector.extract_strided_slice %250 {offsets = [3, 32], sizes = [1, 32], strides = [1, 1]} : vector<5x96xf32> to vector<1x32xf32>
    %421 = vector.extract_strided_slice %250 {offsets = [3, 64], sizes = [1, 32], strides = [1, 1]} : vector<5x96xf32> to vector<1x32xf32>
    %cst_75 = arith.constant dense<0.000000e+00> : vector<16xf32>
    %422 = vector.multi_reduction <add>, %419, %cst_75 [1] : vector<16x32xf32> to vector<16xf32>
    %423 = vector.shape_cast %422 : vector<16xf32> to vector<16x1xf32>
    %cst_76 = arith.constant 3.200000e+01 : f32
    %424 = vector.broadcast %cst_76 : f32 to vector<16x1xf32>
    %425 = arith.divf %423, %424 : vector<16x1xf32>
    %426 = arith.mulf %419, %419 : vector<16x32xf32>
    %cst_77 = arith.constant dense<0.000000e+00> : vector<16xf32>
    %427 = vector.multi_reduction <add>, %426, %cst_77 [1] : vector<16x32xf32> to vector<16xf32>
    %428 = vector.shape_cast %427 : vector<16xf32> to vector<16x1xf32>
    %cst_78 = arith.constant 3.200000e+01 : f32
    %429 = vector.broadcast %cst_78 : f32 to vector<16x1xf32>
    %430 = arith.divf %428, %429 : vector<16x1xf32>
    %431 = arith.mulf %425, %425 : vector<16x1xf32>
    %432 = arith.subf %430, %431 : vector<16x1xf32>
    %433 = vector.broadcast %425 : vector<16x1xf32> to vector<16x32xf32>
    %434 = arith.subf %419, %433 : vector<16x32xf32>
    %cst_79 = arith.constant 9.99999974E-6 : f32
    %435 = vector.broadcast %cst_79 : f32 to vector<16x1xf32>
    %436 = arith.addf %432, %435 : vector<16x1xf32>
    %437 = math.rsqrt %436 : vector<16x1xf32>
    %438 = vector.broadcast %437 : vector<16x1xf32> to vector<16x32xf32>
    %439 = arith.mulf %434, %438 : vector<16x32xf32>
    %440 = vector.broadcast %420 : vector<1x32xf32> to vector<16x32xf32>
    %441 = arith.mulf %439, %440 : vector<16x32xf32>
    %442 = vector.broadcast %421 : vector<1x32xf32> to vector<16x32xf32>
    %443 = arith.addf %441, %442 : vector<16x32xf32>
    %444 = arith.truncf %443 : vector<16x32xf32> to vector<16x32xbf16>
    %445 = vector.extract_strided_slice %248 {offsets = [0, 192], sizes = [32, 64], strides = [1, 1]} : vector<32x256xbf16> to vector<32x64xbf16>
    %cst_80 = arith.constant dense<0.000000e+00> : vector<16x64xf32>
    %446 = tpu.matmul %444, %445, %cst_80 {dimension_numbers = #tpu.dot_dimension_numbers<[1], [0], [0], [1], [0, 0, 1, 1], [], []>} : vector<16x32xbf16>, vector<32x64xbf16>, vector<16x64xf32> -> vector<16x64xf32>
    %447 = vector.extract_strided_slice %250 {offsets = [1, 0], sizes = [1, 64], strides = [1, 1]} : vector<5x96xf32> to vector<1x64xf32>
    %448 = vector.broadcast %447 : vector<1x64xf32> to vector<16x64xf32>
    %449 = arith.addf %446, %448 : vector<16x64xf32>
    %cst_81 = arith.constant 0.000000e+00 : f32
    %450 = vector.broadcast %cst_81 : f32 to vector<16x64xf32>
    %451 = arith.maximumf %449, %450 : vector<16x64xf32>
    %452 = arith.truncf %451 : vector<16x64xf32> to vector<16x64xbf16>
    %c1_82 = arith.constant 1 : index
    %c0_83 = arith.constant 0 : index
    %c0_84 = arith.constant 0 : index
    %453 = vector.load %arg5[%c1_82, %c0_83, %c0_84] : memref<2x64x32xbf16, #tpu.memory_space<vmem>>, vector<1x64x32xbf16>
    %454 = vector.shape_cast %453 : vector<1x64x32xbf16> to vector<64x32xbf16>
    %cst_85 = arith.constant dense<0.000000e+00> : vector<16x32xf32>
    %455 = tpu.matmul %452, %454, %cst_85 {dimension_numbers = #tpu.dot_dimension_numbers<[1], [0], [0], [1], [0, 0, 1, 1], [], []>} : vector<16x64xbf16>, vector<64x32xbf16>, vector<16x32xf32> -> vector<16x32xf32>
    %456 = vector.extract_strided_slice %250 {offsets = [4, 0], sizes = [1, 32], strides = [1, 1]} : vector<5x96xf32> to vector<1x32xf32>
    %457 = vector.broadcast %456 : vector<1x32xf32> to vector<16x32xf32>
    %458 = arith.addf %455, %457 : vector<16x32xf32>
    %459 = arith.addf %443, %458 : vector<16x32xf32>
    %460 = vector.extract_strided_slice %250 {offsets = [4, 32], sizes = [1, 32], strides = [1, 1]} : vector<5x96xf32> to vector<1x32xf32>
    %461 = vector.extract_strided_slice %250 {offsets = [4, 64], sizes = [1, 32], strides = [1, 1]} : vector<5x96xf32> to vector<1x32xf32>
    %cst_86 = arith.constant dense<0.000000e+00> : vector<16xf32>
    %462 = vector.multi_reduction <add>, %459, %cst_86 [1] : vector<16x32xf32> to vector<16xf32>
    %463 = vector.shape_cast %462 : vector<16xf32> to vector<16x1xf32>
    %cst_87 = arith.constant 3.200000e+01 : f32
    %464 = vector.broadcast %cst_87 : f32 to vector<16x1xf32>
    %465 = arith.divf %463, %464 : vector<16x1xf32>
    %466 = arith.mulf %459, %459 : vector<16x32xf32>
    %cst_88 = arith.constant dense<0.000000e+00> : vector<16xf32>
    %467 = vector.multi_reduction <add>, %466, %cst_88 [1] : vector<16x32xf32> to vector<16xf32>
    %468 = vector.shape_cast %467 : vector<16xf32> to vector<16x1xf32>
    %cst_89 = arith.constant 3.200000e+01 : f32
    %469 = vector.broadcast %cst_89 : f32 to vector<16x1xf32>
    %470 = arith.divf %468, %469 : vector<16x1xf32>
    %471 = arith.mulf %465, %465 : vector<16x1xf32>
    %472 = arith.subf %470, %471 : vector<16x1xf32>
    %473 = vector.broadcast %465 : vector<16x1xf32> to vector<16x32xf32>
    %474 = arith.subf %459, %473 : vector<16x32xf32>
    %cst_90 = arith.constant 9.99999974E-6 : f32
    %475 = vector.broadcast %cst_90 : f32 to vector<16x1xf32>
    %476 = arith.addf %472, %475 : vector<16x1xf32>
    %477 = math.rsqrt %476 : vector<16x1xf32>
    %478 = vector.broadcast %477 : vector<16x1xf32> to vector<16x32xf32>
    %479 = arith.mulf %474, %478 : vector<16x32xf32>
    %480 = vector.broadcast %460 : vector<1x32xf32> to vector<16x32xf32>
    %481 = arith.mulf %479, %480 : vector<16x32xf32>
    %482 = vector.broadcast %461 : vector<1x32xf32> to vector<16x32xf32>
    %483 = arith.addf %481, %482 : vector<16x32xf32>
    %c1_91 = arith.constant 1 : index
    %c0_92 = arith.constant 0 : index
    %484 = vector.load %arg7[%c1_91, %c0_92] : memref<3x128xf32, #tpu.memory_space<vmem>>, vector<1x32xf32>
    %c2 = arith.constant 2 : index
    %c0_93 = arith.constant 0 : index
    %485 = vector.load %arg7[%c2, %c0_93] : memref<3x128xf32, #tpu.memory_space<vmem>>, vector<1x32xf32>
    %cst_94 = arith.constant dense<0.000000e+00> : vector<16xf32>
    %486 = vector.multi_reduction <add>, %483, %cst_94 [1] : vector<16x32xf32> to vector<16xf32>
    %487 = vector.shape_cast %486 : vector<16xf32> to vector<16x1xf32>
    %cst_95 = arith.constant 3.200000e+01 : f32
    %488 = vector.broadcast %cst_95 : f32 to vector<16x1xf32>
    %489 = arith.divf %487, %488 : vector<16x1xf32>
    %490 = arith.mulf %483, %483 : vector<16x32xf32>
    %cst_96 = arith.constant dense<0.000000e+00> : vector<16xf32>
    %491 = vector.multi_reduction <add>, %490, %cst_96 [1] : vector<16x32xf32> to vector<16xf32>
    %492 = vector.shape_cast %491 : vector<16xf32> to vector<16x1xf32>
    %cst_97 = arith.constant 3.200000e+01 : f32
    %493 = vector.broadcast %cst_97 : f32 to vector<16x1xf32>
    %494 = arith.divf %492, %493 : vector<16x1xf32>
    %495 = arith.mulf %489, %489 : vector<16x1xf32>
    %496 = arith.subf %494, %495 : vector<16x1xf32>
    %497 = vector.broadcast %489 : vector<16x1xf32> to vector<16x32xf32>
    %498 = arith.subf %483, %497 : vector<16x32xf32>
    %cst_98 = arith.constant 9.99999974E-6 : f32
    %499 = vector.broadcast %cst_98 : f32 to vector<16x1xf32>
    %500 = arith.addf %496, %499 : vector<16x1xf32>
    %501 = math.rsqrt %500 : vector<16x1xf32>
    %502 = vector.broadcast %501 : vector<16x1xf32> to vector<16x32xf32>
    %503 = arith.mulf %498, %502 : vector<16x32xf32>
    %504 = vector.broadcast %484 : vector<1x32xf32> to vector<16x32xf32>
    %505 = arith.mulf %503, %504 : vector<16x32xf32>
    %506 = vector.broadcast %485 : vector<1x32xf32> to vector<16x32xf32>
    %507 = arith.addf %505, %506 : vector<16x32xf32>
    %c0_99 = arith.constant 0 : index
    %c0_100 = arith.constant 0 : index
    %508 = vector.load %arg8[%c0_99, %c0_100] : memref<16x32xf32, #tpu.memory_space<vmem>>, vector<16x32xf32>
    tpu.vector_store %arg8[%c0_99, %c0_100], %507 {strides = array<i32>} : memref<16x32xf32, #tpu.memory_space<vmem>>, vector<16x32xf32>,
    return
  }
}

</mosaic_0001>

<llo_original>
// kernel: decoder_forward.1
$region0: #{decoder_forward.1}
  #allocation0 [shape = 'u32[]', space=smem, size = 0x4, offset = 0x4, fixed_abs, tag = 'smem constant byte address 0x4 - core index']
  #allocation1 [shape = 'u32[72,128]{1,0:T(1,128)}', space=vmem, size = 0x9000, scoped, tag = 'internal scratch']
  %s0 = inlined_call_operand.vmem [shape: f32[16,32], index: 0, kind: input, shape index: {}]
  %s1 = inlined_call_operand.vmem [shape: f32[16,32], index: 1, kind: input, shape index: {}]
  %s2 = inlined_call_operand.vmem [shape: f32[16,32], index: 2, kind: input, shape index: {}]
  %s3 = inlined_call_operand.vmem [shape: bf16[2,32,256], index: 3, kind: input, shape index: {}]
  %s4 = inlined_call_operand.vmem [shape: bf16[32,128], index: 4, kind: input, shape index: {}]
  %s5 = inlined_call_operand.vmem [shape: bf16[2,64,32], index: 5, kind: input, shape index: {}]
  %s6 = inlined_call_operand.vmem [shape: f32[2,5,96], index: 6, kind: input, shape index: {}]
  %s7 = inlined_call_operand.vmem [shape: f32[3,128], index: 7, kind: input, shape index: {}]
  %s8 = inlined_call_operand.hbm [shape: f32[16,32], index: 8, kind: output, shape index: {}]
  %s9 = sld [smem:[#allocation0]]
  $region42: #{decoder_forward.1} parent=0
    _
  %s11 = ssub.s32 1, %s9
  %s12 = scalar_select 0, %s11, %s9
  $region1: #{decoder_forward.1} parent=0
    #allocation2 [shape = 'u8[8192]{0}', space=vmem, size = 0x2000, scoped, tag = 'output window, operand 0, single buffered']
    #allocation3 [shape = 's32[1]{0}', space=sflag, size = 0x4, scoped, tag = 'scoped memory for decoder_forward.1']
    %13 = vsyncpa [#allocation3], 0
    // Predicated region
    $region2: #{decoder_forward.1} parent=1 // pred_check
      _
    $region3: #{decoder_forward.1} parent=1 // pred_check_branch
      %15 = sbr.rel (0) target = $region5
    $region4: #{decoder_forward.1} parent=1 // pred_region
      _
    $region5: #{decoder_forward.1} parent=1 // pred_fallthru
      _
    // Predicated region
    $region6: #{decoder_forward.1} parent=1 // pred_check
      _
    $region7: #{decoder_forward.1} parent=1 // pred_check_branch
      %17 = sbr.rel (0) target = $region9
    $region8: #{decoder_forward.1} parent=1 // pred_region
      _
    $region9: #{decoder_forward.1} parent=1 // pred_fallthru
      _
    // Predicated region
    $region10: #{decoder_forward.1} parent=1 // pred_check
      _
    $region11: #{decoder_forward.1} parent=1 // pred_check_branch
      %19 = sbr.rel (0) target = $region13
    $region12: #{decoder_forward.1} parent=1 // pred_region
      _
    $region13: #{decoder_forward.1} parent=1 // pred_fallthru
      _
    // Predicated region
    $region14: #{decoder_forward.1} parent=1 // pred_check
      _
    $region15: #{decoder_forward.1} parent=1 // pred_check_branch
      %21 = sbr.rel (0) target = $region17
    $region16: #{decoder_forward.1} parent=1 // pred_region
      _
    $region17: #{decoder_forward.1} parent=1 // pred_fallthru
      _
    // Predicated region
    $region18: #{decoder_forward.1} parent=1 // pred_check
      _
    $region19: #{decoder_forward.1} parent=1 // pred_check_branch
      %23 = sbr.rel (0) target = $region21
    $region20: #{decoder_forward.1} parent=1 // pred_region
      _
    $region21: #{decoder_forward.1} parent=1 // pred_fallthru
      _
    // Predicated region
    $region22: #{decoder_forward.1} parent=1 // pred_check
      _
    $region23: #{decoder_forward.1} parent=1 // pred_check_branch
      %25 = sbr.rel (0) target = $region25
    $region24: #{decoder_forward.1} parent=1 // pred_region
      _
    $region25: #{decoder_forward.1} parent=1 // pred_fallthru
      _
    // Predicated region
    $region26: #{decoder_forward.1} parent=1 // pred_check
      _
    $region27: #{decoder_forward.1} parent=1 // pred_check_branch
      %27 = sbr.rel (0) target = $region29
    $region28: #{decoder_forward.1} parent=1 // pred_region
      _
    $region29: #{decoder_forward.1} parent=1 // pred_fallthru
      _
    // Predicated region
    $region30: #{decoder_forward.1} parent=1 // pred_check
      _
    $region31: #{decoder_forward.1} parent=1 // pred_check_branch
      %29 = sbr.rel (0) target = $region33
    $region32: #{decoder_forward.1} parent=1 // pred_region
      _
    $region33: #{decoder_forward.1} parent=1 // pred_fallthru
      _
    %v31 = vld [vmem:[%s0] sm:$0xff]
    %v32 = vld [vmem:[%s0 + $0x8] sm:$0xff]
    %v33 = vld [vmem:[%s2] sm:$0xff]
    %v34 = vld [vmem:[%s2 + $0x8] sm:$0xff]
    %v35 = vld [vmem:[%s1] sm:$0xff]
    %v36 = vld [vmem:[%s1 + $0x8] sm:$0xff]
    %v37 = vpack.c.bf16 %v36, %v35
    %v38 = vld [vmem:[%s4] sm:$0xf]
    %v39 = vld [vmem:[%s4 + $0x4] sm:$0xf]
    %v40 = vld [vmem:[%s4 + $0x8] sm:$0xf]
    %v41 = vld [vmem:[%s4 + $0xc] sm:$0xf]
    %v42 = vld [vmem:[%s7] sm:$0x1]
    %v43 = vperm.slane %v42, 0
    %v48 = vunpack.c.l.b16 %v38
    %v49 = vunpack.c.l.b16 %v39
    %v50 = vunpack.c.l.b16 %v40
    %v51 = vunpack.c.l.b16 %v41
    %v52 = vpack.c.b16 %v49, %v48
    %v53 = vpack.c.b16 %v51, %v50
    %vm56 = vcmask 261120
    %v58 = vsel %vm56, %v37, 0
    %60 = vmatpush.bf16.msra.mxu0 0
    %61 = vmatpush.bf16.msra.mxu0 0
    %62 = vmatpush.bf16.msra.mxu0 0
    %63 = vmatpush.bf16.msra.mxu0 0
    %64 = vmatpush.bf16.msra.mxu0 0
    %65 = vmatpush.bf16.msra.mxu0 0
    %66 = vmatpush.bf16.msra.mxu0 %v53
    %67 = vmatpush.bf16.msra.mxu0 %v52
    %68 = vmatmul.bf16.gmra.mxu0 %v58
    %v69 = vpop.f32.mrf.mxu0
    %v70 = vadd.f32 %v43, %v69
    %v71 = vpop.f32.mrf.mxu0
    %v72 = vadd.f32 %v43, %v71
    %73 = vdwg.mxu0
    %v74 = vld [vmem:[%s3] sm:$0xff]
    %v75 = vld [vmem:[%s3 + $0x8] sm:$0xff]
    %v76 = vld [vmem:[%s3 + $0x10] sm:$0xff]
    %v77 = vld [vmem:[%s3 + $0x18] sm:$0xff]
    %v78 = vld [vmem:[%s6] sm:$0x1f]
    %v79 = vpack.c.bf16 %v32, %v31
    %v80 = vperm.slane %v78, 0
    %v85 = vunpack.c.l.b16 %v74
    %v86 = vunpack.c.l.b16 %v75
    %v87 = vunpack.c.l.b16 %v76
    %v88 = vunpack.c.l.b16 %v77
    %v89 = vpack.c.b16 %v86, %v85
    %v90 = vpack.c.b16 %v88, %v87
    %v94 = vsel %vm56, %v79, 0
    %96 = vmatpush.bf16.msra.mxu0 0
    %97 = vmatpush.bf16.msra.mxu0 0
    %98 = vmatpush.bf16.msra.mxu0 0
    %99 = vmatpush.bf16.msra.mxu0 0
    %100 = vmatpush.bf16.msra.mxu0 0
    %101 = vmatpush.bf16.msra.mxu0 0
    %102 = vmatpush.bf16.msra.mxu0 %v90
    %103 = vmatpush.bf16.msra.mxu0 %v89
    %104 = vmatmul.bf16.gmra.mxu0 %v94
    %v105 = vpop.f32.mrf.mxu0
    %v106 = vadd.f32 %v80, %v105
    %v107 = vpop.f32.mrf.mxu0
    %v108 = vadd.f32 %v80, %v107
    %109 = vdwg.mxu0
    %112 = vrot.lane.b32.xlu0 %v106, 120
    %v113 = vpop.permute.xlu0 %112
    %114 = vrot.lane.b32.xlu0 %v108, 120
    %v115 = vpop.permute.xlu0 %114
    %118 = vrot.lane.b32.xlu0 %v106, 112
    %v119 = vpop.permute.xlu0 %118
    %120 = vrot.lane.b32.xlu0 %v108, 112
    %v121 = vpop.permute.xlu0 %120
    %124 = vrot.lane.b32.xlu0 %v106, 104
    %v125 = vpop.permute.xlu0 %124
    %126 = vrot.lane.b32.xlu0 %v108, 104
    %v127 = vpop.permute.xlu0 %126
    %v130 = vpack.c.bf16 %v106, %v106
    %v131 = vpack.c.bf16 %v108, %v108
    %v132 = vpack.c.bf16 %v113, %v113
    %v133 = vpack.c.bf16 %v115, %v115
    %v134 = vpack.c.bf16 %v119, %v119
    %v135 = vpack.c.bf16 %v121, %v121
    %v136 = vpack.c.bf16 %v125, %v125
    %v137 = vpack.c.bf16 %v127, %v127
    %v140 = vunpack.c.l.b16 %v130
    %v141 = vunpack.c.l.b16 %v131
    %v142 = vpack.c.b16 %v141, %v140
    %143 = vrot.lane.b32.xlu0 %v142, 96
    %v144 = vpop.permute.xlu0 %143
    %vm145 = vcmask 64512
    %v147 = vsel %vm145, %v142, 0
    %v150 = vsel %vm145, %v144, 0
    %152 = vmatpush.bf16.xpose.msra.mxu0 0
    %153 = vmatpush.bf16.xpose.msra.mxu0 0
    %154 = vmatpush.bf16.xpose.msra.mxu0 0
    %155 = vmatpush.bf16.xpose.msra.mxu0 0
    %156 = vmatpush.bf16.xpose.msra.mxu0 0
    %157 = vmatpush.bf16.xpose.msra.mxu0 0
    %158 = vmatpush.bf16.xpose.msra.mxu0 0
    %159 = vmatpush.bf16.xpose.msra.mxu0 %v150
    %160 = vmatmul.bf16.gmra.mxu0 %v147
    %v161 = vpop.f32.mrf.mxu0
    %v162 = vadd.f32 0.0, %v161
    %v163 = vpop.f32.mrf.mxu0
    %v164 = vadd.f32 0.0, %v163
    %165 = vdwg.mxu0
    %v168 = vunpack.c.l.b16 %v132
    %v169 = vunpack.c.l.b16 %v133
    %v170 = vpack.c.b16 %v169, %v168
    %171 = vrot.lane.b32.xlu0 %v170, 96
    %v172 = vpop.permute.xlu0 %171
    %v174 = vsel %vm145, %v170, 0
    %v177 = vsel %vm145, %v172, 0
    %179 = vmatpush.bf16.xpose.msra.mxu0 0
    %180 = vmatpush.bf16.xpose.msra.mxu0 0
    %181 = vmatpush.bf16.xpose.msra.mxu0 0
    %182 = vmatpush.bf16.xpose.msra.mxu0 0
    %183 = vmatpush.bf16.xpose.msra.mxu0 0
    %184 = vmatpush.bf16.xpose.msra.mxu0 0
    %185 = vmatpush.bf16.xpose.msra.mxu0 0
    %186 = vmatpush.bf16.xpose.msra.mxu0 %v177
    %187 = vmatmul.bf16.gmra.mxu0 %v174
    %v188 = vpop.f32.mrf.mxu0
    %v189 = vadd.f32 0.0, %v188
    %v190 = vpop.f32.mrf.mxu0
    %v191 = vadd.f32 0.0, %v190
    %192 = vdwg.mxu0
    %v195 = vunpack.c.l.b16 %v134
    %v196 = vunpack.c.l.b16 %v135
    %v197 = vpack.c.b16 %v196, %v195
    %198 = vrot.lane.b32.xlu0 %v197, 96
    %v199 = vpop.permute.xlu0 %198
    %v201 = vsel %vm145, %v197, 0
    %v204 = vsel %vm145, %v199, 0
    %206 = vmatpush.bf16.xpose.msra.mxu0 0
    %207 = vmatpush.bf16.xpose.msra.mxu0 0
    %208 = vmatpush.bf16.xpose.msra.mxu0 0
    %209 = vmatpush.bf16.xpose.msra.mxu0 0
    %210 = vmatpush.bf16.xpose.msra.mxu0 0
    %211 = vmatpush.bf16.xpose.msra.mxu0 0
    %212 = vmatpush.bf16.xpose.msra.mxu0 0
    %213 = vmatpush.bf16.xpose.msra.mxu0 %v204
    %214 = vmatmul.bf16.gmra.mxu0 %v201
    %v215 = vpop.f32.mrf.mxu0
    %v216 = vadd.f32 0.0, %v215
    %v217 = vpop.f32.mrf.mxu0
    %v218 = vadd.f32 0.0, %v217
    %219 = vdwg.mxu0
    %v222 = vunpack.c.l.b16 %v136
    %v223 = vunpack.c.l.b16 %v137
    %v224 = vpack.c.b16 %v223, %v222
    %225 = vrot.lane.b32.xlu0 %v224, 96
    %v226 = vpop.permute.xlu0 %225
    %v228 = vsel %vm145, %v224, 0
    %v231 = vsel %vm145, %v226, 0
    %233 = vmatpush.bf16.xpose.msra.mxu0 0
    %234 = vmatpush.bf16.xpose.msra.mxu0 0
    %235 = vmatpush.bf16.xpose.msra.mxu0 0
    %236 = vmatpush.bf16.xpose.msra.mxu0 0
    %237 = vmatpush.bf16.xpose.msra.mxu0 0
    %238 = vmatpush.bf16.xpose.msra.mxu0 0
    %239 = vmatpush.bf16.xpose.msra.mxu0 0
    %240 = vmatpush.bf16.xpose.msra.mxu0 %v231
    %241 = vmatmul.bf16.gmra.mxu0 %v228
    %v242 = vpop.f32.mrf.mxu0
    %v243 = vadd.f32 0.0, %v242
    %v244 = vpop.f32.mrf.mxu0
    %v245 = vadd.f32 0.0, %v244
    %246 = vdwg.mxu0
    %v247 = vmul.f32 %v162, 0.35355338
    %v248 = vmul.f32 %v164, 0.35355338
    %v249 = vmul.f32 %v189, 0.35355338
    %v250 = vmul.f32 %v191, 0.35355338
    %v251 = vmul.f32 %v216, 0.35355338
    %v252 = vmul.f32 %v218, 0.35355338
    %v253 = vmul.f32 %v243, 0.35355338
    %v254 = vmul.f32 %v245, 0.35355338
    %v255 = vadd.f32 %v247, %v33
    %v256 = vadd.f32 %v248, %v34
    %v257 = vadd.f32 %v249, %v33
    %v258 = vadd.f32 %v250, %v34
    %v259 = vadd.f32 %v251, %v33
    %v260 = vadd.f32 %v252, %v34
    %v261 = vadd.f32 %v253, %v33
    %v262 = vadd.f32 %v254, %v34
    %vm263 = vcmask 130048
    %v264 = vsel %vm263, %v255, -inf
    %265 = vmax.xlane.f32.xlu0 %v264
    %v266 = vpop.xlane.xlu0 %265
    %v267 = vsel %vm263, %v256, -inf
    %268 = vmax.xlane.f32.xlu0 %v267
    %v269 = vpop.xlane.xlu0 %268
    %v270 = vsel %vm263, %v257, -inf
    %271 = vmax.xlane.f32.xlu0 %v270
    %v272 = vpop.xlane.xlu0 %271
    %v273 = vsel %vm263, %v258, -inf
    %274 = vmax.xlane.f32.xlu0 %v273
    %v275 = vpop.xlane.xlu0 %274
    %v276 = vsel %vm263, %v259, -inf
    %277 = vmax.xlane.f32.xlu0 %v276
    %v278 = vpop.xlane.xlu0 %277
    %v279 = vsel %vm263, %v260, -inf
    %280 = vmax.xlane.f32.xlu0 %v279
    %v281 = vpop.xlane.xlu0 %280
    %v282 = vsel %vm263, %v261, -inf
    %283 = vmax.xlane.f32.xlu0 %v282
    %v284 = vpop.xlane.xlu0 %283
    %v285 = vsel %vm263, %v262, -inf
    %286 = vmax.xlane.f32.xlu0 %v285
    %v287 = vpop.xlane.xlu0 %286
    %v288 = vsub.f32 %v255, %v266
    %v289 = vsub.f32 %v256, %v269
    %v290 = vsub.f32 %v257, %v272
    %v291 = vsub.f32 %v258, %v275
    %v292 = vsub.f32 %v259, %v278
    %v293 = vsub.f32 %v260, %v281
    %v294 = vsub.f32 %v261, %v284
    %v295 = vsub.f32 %v262, %v287
    %v296 = vmul.f32 %v288, 1.442695
    %v297 = vpow.pop %v296
    %v298 = vmul.f32 %v289, 1.442695
    %v299 = vpow.pop %v298
    %v300 = vmul.f32 %v290, 1.442695
    %v301 = vpow.pop %v300
    %v302 = vmul.f32 %v291, 1.442695
    %v303 = vpow.pop %v302
    %v304 = vmul.f32 %v292, 1.442695
    %v305 = vpow.pop %v304
    %v306 = vmul.f32 %v293, 1.442695
    %v307 = vpow.pop %v306
    %v308 = vmul.f32 %v294, 1.442695
    %v309 = vpow.pop %v308
    %v310 = vmul.f32 %v295, 1.442695
    %v311 = vpow.pop %v310
    %v312 = vsel %vm263, %v297, 0.0
    %313 = vadd.xlane.f32.xlu0 %v312
    %v314 = vpop.xlane.xlu0 %313
    %v315 = vsel %vm263, %v299, 0.0
    %316 = vadd.xlane.f32.xlu0 %v315
    %v317 = vpop.xlane.xlu0 %316
    %v318 = vsel %vm263, %v301, 0.0
    %319 = vadd.xlane.f32.xlu0 %v318
    %v320 = vpop.xlane.xlu0 %319
    %v321 = vsel %vm263, %v303, 0.0
    %322 = vadd.xlane.f32.xlu0 %v321
    %v323 = vpop.xlane.xlu0 %322
    %v324 = vsel %vm263, %v305, 0.0
    %325 = vadd.xlane.f32.xlu0 %v324
    %v326 = vpop.xlane.xlu0 %325
    %v327 = vsel %vm263, %v307, 0.0
    %328 = vadd.xlane.f32.xlu0 %v327
    %v329 = vpop.xlane.xlu0 %328
    %v330 = vsel %vm263, %v309, 0.0
    %331 = vadd.xlane.f32.xlu0 %v330
    %v332 = vpop.xlane.xlu0 %331
    %v333 = vsel %vm263, %v311, 0.0
    %334 = vadd.xlane.f32.xlu0 %v333
    %v335 = vpop.xlane.xlu0 %334
    %v336 = vrcp.pop %v314
    %v337 = vrcp.pop %v317
    %v338 = vrcp.pop %v320
    %v339 = vrcp.pop %v323
    %v340 = vrcp.pop %v326
    %v341 = vrcp.pop %v329
    %v342 = vrcp.pop %v332
    %v343 = vrcp.pop %v335
    %v344 = vmul.f32 %v297, %v336
    %v345 = vmul.f32 %v299, %v337
    %v346 = vmul.f32 %v301, %v338
    %v347 = vmul.f32 %v303, %v339
    %v348 = vmul.f32 %v305, %v340
    %v349 = vmul.f32 %v307, %v341
    %v350 = vmul.f32 %v309, %v342
    %v351 = vmul.f32 %v311, %v343
    %v352 = vpack.c.bf16 %v344, %v344
    %v353 = vpack.c.bf16 %v345, %v345
    %v354 = vpack.c.bf16 %v346, %v346
    %v355 = vpack.c.bf16 %v347, %v347
    %v356 = vpack.c.bf16 %v348, %v348
    %v357 = vpack.c.bf16 %v349, %v349
    %v358 = vpack.c.bf16 %v350, %v350
    %v359 = vpack.c.bf16 %v351, %v351
    %v362 = vunpack.c.l.b16 %v352
    %v363 = vunpack.c.l.b16 %v353
    %v364 = vpack.c.b16 %v363, %v362
    %365 = vrot.lane.b32.xlu0 %v142, 64
    %v366 = vpop.permute.xlu0 %365
    %v369 = vsel %vm263, %v364, 0
    %371 = vmatpush.bf16.msra.mxu0 0
    %372 = vmatpush.bf16.msra.mxu0 0
    %373 = vmatpush.bf16.msra.mxu0 0
    %374 = vmatpush.bf16.msra.mxu0 0
    %375 = vmatpush.bf16.msra.mxu0 0
    %376 = vmatpush.bf16.msra.mxu0 0
    %377 = vmatpush.bf16.msra.mxu0 0
    %378 = vmatpush.bf16.msra.mxu0 %v366
    %379 = vmatmul.bf16.gmra.mxu0 %v369
    %v380 = vpop.f32.mrf.mxu0
    %v381 = vadd.f32 0.0, %v380
    %v382 = vpop.f32.mrf.mxu0
    %v383 = vadd.f32 0.0, %v382
    %384 = vdwg.mxu0
    %v387 = vunpack.c.l.b16 %v354
    %v388 = vunpack.c.l.b16 %v355
    %v389 = vpack.c.b16 %v388, %v387
    %390 = vrot.lane.b32.xlu0 %v170, 64
    %v391 = vpop.permute.xlu0 %390
    %v394 = vsel %vm263, %v389, 0
    %396 = vmatpush.bf16.msra.mxu0 0
    %397 = vmatpush.bf16.msra.mxu0 0
    %398 = vmatpush.bf16.msra.mxu0 0
    %399 = vmatpush.bf16.msra.mxu0 0
    %400 = vmatpush.bf16.msra.mxu0 0
    %401 = vmatpush.bf16.msra.mxu0 0
    %402 = vmatpush.bf16.msra.mxu0 0
    %403 = vmatpush.bf16.msra.mxu0 %v391
    %404 = vmatmul.bf16.gmra.mxu0 %v394
    %v405 = vpop.f32.mrf.mxu0
    %v406 = vadd.f32 0.0, %v405
    %v407 = vpop.f32.mrf.mxu0
    %v408 = vadd.f32 0.0, %v407
    %409 = vdwg.mxu0
    %v412 = vunpack.c.l.b16 %v356
    %v413 = vunpack.c.l.b16 %v357
    %v414 = vpack.c.b16 %v413, %v412
    %415 = vrot.lane.b32.xlu0 %v197, 64
    %v416 = vpop.permute.xlu0 %415
    %v419 = vsel %vm263, %v414, 0
    %421 = vmatpush.bf16.msra.mxu0 0
    %422 = vmatpush.bf16.msra.mxu0 0
    %423 = vmatpush.bf16.msra.mxu0 0
    %424 = vmatpush.bf16.msra.mxu0 0
    %425 = vmatpush.bf16.msra.mxu0 0
    %426 = vmatpush.bf16.msra.mxu0 0
    %427 = vmatpush.bf16.msra.mxu0 0
    %428 = vmatpush.bf16.msra.mxu0 %v416
    %429 = vmatmul.bf16.gmra.mxu0 %v419
    %v430 = vpop.f32.mrf.mxu0
    %v431 = vadd.f32 0.0, %v430
    %v432 = vpop.f32.mrf.mxu0
    %v433 = vadd.f32 0.0, %v432
    %434 = vdwg.mxu0
    %v437 = vunpack.c.l.b16 %v358
    %v438 = vunpack.c.l.b16 %v359
    %v439 = vpack.c.b16 %v438, %v437
    %440 = vrot.lane.b32.xlu0 %v224, 64
    %v441 = vpop.permute.xlu0 %440
    %v444 = vsel %vm263, %v439, 0
    %446 = vmatpush.bf16.msra.mxu0 0
    %447 = vmatpush.bf16.msra.mxu0 0
    %448 = vmatpush.bf16.msra.mxu0 0
    %449 = vmatpush.bf16.msra.mxu0 0
    %450 = vmatpush.bf16.msra.mxu0 0
    %451 = vmatpush.bf16.msra.mxu0 0
    %452 = vmatpush.bf16.msra.mxu0 0
    %453 = vmatpush.bf16.msra.mxu0 %v441
    %454 = vmatmul.bf16.gmra.mxu0 %v444
    %v455 = vpop.f32.mrf.mxu0
    %v456 = vadd.f32 0.0, %v455
    %v457 = vpop.f32.mrf.mxu0
    %v458 = vadd.f32 0.0, %v457
    %459 = vdwg.mxu0
    %462 = vrot.lane.b32.xlu0 %v406, 8
    %v463 = vpop.permute.xlu0 %462
    %464 = vrot.lane.b32.xlu0 %v408, 8
    %v465 = vpop.permute.xlu0 %464
    %470 = vrot.lane.b32.xlu0 %v431, 16
    %v471 = vpop.permute.xlu0 %470
    %472 = vrot.lane.b32.xlu0 %v433, 16
    %v473 = vpop.permute.xlu0 %472
    %478 = vrot.lane.b32.xlu0 %v456, 24
    %v479 = vpop.permute.xlu0 %478
    %480 = vrot.lane.b32.xlu0 %v458, 24
    %v481 = vpop.permute.xlu0 %480
    %v484 = vsel %vm145, %v381, %v463
    %v485 = vsel %vm145, %v383, %v465
    %v486 = vsel %vm263, %v484, %v471
    %v487 = vsel %vm263, %v485, %v473
    %vm488 = vcmask 195584
    %v489 = vsel %vm488, %v486, %v479
    %v490 = vsel %vm488, %v487, %v481
    %v491 = vpack.c.bf16 %v490, %v489
    %v492 = vperm.slane %v78, 2
    %493 = vrot.lane.b32.xlu0 %v89, 32
    %v494 = vpop.permute.xlu0 %493
    %495 = vrot.lane.b32.xlu0 %v90, 32
    %v496 = vpop.permute.xlu0 %495
    %v500 = vsel %vm56, %v491, 0
    %502 = vmatpush.bf16.msra.mxu0 0
    %503 = vmatpush.bf16.msra.mxu0 0
    %504 = vmatpush.bf16.msra.mxu0 0
    %505 = vmatpush.bf16.msra.mxu0 0
    %506 = vmatpush.bf16.msra.mxu0 0
    %507 = vmatpush.bf16.msra.mxu0 0
    %508 = vmatpush.bf16.msra.mxu0 %v496
    %509 = vmatpush.bf16.msra.mxu0 %v494
    %510 = vmatmul.bf16.gmra.mxu0 %v500
    %v511 = vpop.f32.mrf.mxu0
    %v512 = vadd.f32 %v492, %v511
    %v513 = vpop.f32.mrf.mxu0
    %v514 = vadd.f32 %v492, %v513
    %515 = vdwg.mxu0
    %v516 = vadd.f32 %v31, %v512
    %v517 = vadd.f32 %v32, %v514
    %v518 = vsel %vm56, %v516, 0.0
    %519 = vadd.xlane.f32.xlu0 %v518
    %v520 = vpop.xlane.xlu0 %519
    %v521 = vsel %vm56, %v517, 0.0
    %522 = vadd.xlane.f32.xlu0 %v521
    %v523 = vpop.xlane.xlu0 %522
    %v524 = vrcp.pop 32.0
    %v525 = vmul.f32 32.0, %v524
    %v526 = vsub.f32 1.0, %v525
    %v527 = vmul.f32 %v524, %v526
    %v528 = vadd.f32 %v524, %v527
    %vm529 = vweird.f32 %v524
    %v530 = vsel %vm529, %v524, %v528
    %v531 = vmul.f32 %v520, %v530
    %v532 = vmul.f32 %v523, %v530
    %v533 = vmul.f32 %v516, %v516
    %v534 = vmul.f32 %v517, %v517
    %v535 = vsel %vm56, %v533, 0.0
    %536 = vadd.xlane.f32.xlu0 %v535
    %v537 = vpop.xlane.xlu0 %536
    %v538 = vsel %vm56, %v534, 0.0
    %539 = vadd.xlane.f32.xlu0 %v538
    %v540 = vpop.xlane.xlu0 %539
    %v541 = vmul.f32 %v537, %v530
    %v542 = vmul.f32 %v540, %v530
    %v543 = vmul.f32 %v531, %v531
    %v544 = vmul.f32 %v532, %v532
    %v545 = vsub.f32 %v541, %v543
    %v546 = vsub.f32 %v542, %v544
    %v547 = vsub.f32 %v516, %v531
    %v548 = vsub.f32 %v517, %v532
    %v549 = vadd.f32 %v545, 1e-05
    %v550 = vadd.f32 %v546, 1e-05
    %v551 = vrsqrt.pop %v549
    %v552 = vmul.f32 %v551, %v549
    %v553 = vmul.f32 %v552, %v551
    %v554 = vmul.f32 0.5, %v553
    %v555 = vsub.f32 1.5, %v554
    %v556 = vmul.f32 %v551, %v555
    %vm557 = vweird.f32 %v549
    %vm558 = vweird.f32 %v551
    %vm559 = vmor %vm557, %vm558
    %v560 = vsel %vm559, %v551, %v556
    %v561 = vrsqrt.pop %v550
    %v562 = vmul.f32 %v561, %v550
    %v563 = vmul.f32 %v562, %v561
    %v564 = vmul.f32 0.5, %v563
    %v565 = vsub.f32 1.5, %v564
    %v566 = vmul.f32 %v561, %v565
    %vm567 = vweird.f32 %v550
    %vm568 = vweird.f32 %v561
    %vm569 = vmor %vm567, %vm568
    %v570 = vsel %vm569, %v561, %v566
    %v571 = vmul.f32 %v547, %v560
    %v572 = vmul.f32 %v548, %v570
    %574 = vrot.lane.b32.xlu0 %v492, 96
    %v575 = vpop.permute.xlu0 %574
    %v577 = vmul.f32 %v571, %v575
    %v578 = vmul.f32 %v572, %v575
    %579 = vrot.lane.b32.xlu0 %v492, 64
    %v580 = vpop.permute.xlu0 %579
    %v582 = vadd.f32 %v577, %v580
    %v583 = vadd.f32 %v578, %v580
    %v584 = vpack.c.bf16 %v583, %v582
    %v585 = vperm.slane %v78, 1
    %v586 = vunpack.c.h.b16 %v74
    %v587 = vunpack.c.h.b16 %v75
    %v588 = vunpack.c.h.b16 %v76
    %v589 = vunpack.c.h.b16 %v77
    %v590 = vpack.c.b16 %v587, %v586
    %v591 = vpack.c.b16 %v589, %v588
    %595 = vrot.lane.b32.xlu0 %v585, 64
    %v596 = vpop.permute.xlu0 %595
    %v599 = vsel %vm56, %v584, 0
    %601 = vmatpush.bf16.msra.mxu0 0
    %602 = vmatpush.bf16.msra.mxu0 0
    %603 = vmatpush.bf16.msra.mxu0 0
    %604 = vmatpush.bf16.msra.mxu0 0
    %605 = vmatpush.bf16.msra.mxu0 0
    %606 = vmatpush.bf16.msra.mxu0 0
    %607 = vmatpush.bf16.msra.mxu0 %v591
    %608 = vmatpush.bf16.msra.mxu0 %v590
    %609 = vmatmul.bf16.gmra.mxu0 %v599
    %v610 = vpop.f32.mrf.mxu0
    %v611 = vadd.f32 %v596, %v610
    %v612 = vpop.f32.mrf.mxu0
    %v613 = vadd.f32 %v596, %v612
    %614 = vdwg.mxu0
    %617 = vrot.lane.b32.xlu0 %v611, 120
    %v618 = vpop.permute.xlu0 %617
    %619 = vrot.lane.b32.xlu0 %v613, 120
    %v620 = vpop.permute.xlu0 %619
    %623 = vrot.lane.b32.xlu0 %v611, 112
    %v624 = vpop.permute.xlu0 %623
    %625 = vrot.lane.b32.xlu0 %v613, 112
    %v626 = vpop.permute.xlu0 %625
    %629 = vrot.lane.b32.xlu0 %v611, 104
    %v630 = vpop.permute.xlu0 %629
    %631 = vrot.lane.b32.xlu0 %v613, 104
    %v632 = vpop.permute.xlu0 %631
    %v635 = vpack.c.bf16 %v611, %v611
    %v636 = vpack.c.bf16 %v613, %v613
    %v637 = vpack.c.bf16 %v618, %v618
    %v638 = vpack.c.bf16 %v620, %v620
    %v639 = vpack.c.bf16 %v624, %v624
    %v640 = vpack.c.bf16 %v626, %v626
    %v641 = vpack.c.bf16 %v630, %v630
    %v642 = vpack.c.bf16 %v632, %v632
    %645 = vrot.lane.b32.xlu0 %v70, 120
    %v646 = vpop.permute.xlu0 %645
    %647 = vrot.lane.b32.xlu0 %v72, 120
    %v648 = vpop.permute.xlu0 %647
    %651 = vrot.lane.b32.xlu0 %v70, 112
    %v652 = vpop.permute.xlu0 %651
    %653 = vrot.lane.b32.xlu0 %v72, 112
    %v654 = vpop.permute.xlu0 %653
    %657 = vrot.lane.b32.xlu0 %v70, 104
    %v658 = vpop.permute.xlu0 %657
    %659 = vrot.lane.b32.xlu0 %v72, 104
    %v660 = vpop.permute.xlu0 %659
    %v663 = vpack.c.bf16 %v70, %v70
    %v664 = vpack.c.bf16 %v72, %v72
    %v665 = vpack.c.bf16 %v646, %v646
    %v666 = vpack.c.bf16 %v648, %v648
    %v667 = vpack.c.bf16 %v652, %v652
    %v668 = vpack.c.bf16 %v654, %v654
    %v669 = vpack.c.bf16 %v658, %v658
    %v670 = vpack.c.bf16 %v660, %v660
    %v673 = vunpack.c.l.b16 %v635
    %v674 = vunpack.c.l.b16 %v636
    %v675 = vpack.c.b16 %v674, %v673
    %v678 = vunpack.c.l.b16 %v663
    %v679 = vunpack.c.l.b16 %v664
    %v680 = vpack.c.b16 %v679, %v678
    %v682 = vsel %vm145, %v675, 0
    %v685 = vsel %vm145, %v680, 0
    %687 = vmatpush.bf16.xpose.msra.mxu0 0
    %688 = vmatpush.bf16.xpose.msra.mxu0 0
    %689 = vmatpush.bf16.xpose.msra.mxu0 0
    %690 = vmatpush.bf16.xpose.msra.mxu0 0
    %691 = vmatpush.bf16.xpose.msra.mxu0 0
    %692 = vmatpush.bf16.xpose.msra.mxu0 0
    %693 = vmatpush.bf16.xpose.msra.mxu0 0
    %694 = vmatpush.bf16.xpose.msra.mxu0 %v685
    %695 = vmatmul.bf16.gmra.mxu0 %v682
    %v696 = vpop.f32.mrf.mxu0
    %v697 = vadd.f32 0.0, %v696
    %v698 = vpop.f32.mrf.mxu0
    %v699 = vadd.f32 0.0, %v698
    %700 = vdwg.mxu0
    %v703 = vunpack.c.l.b16 %v637
    %v704 = vunpack.c.l.b16 %v638
    %v705 = vpack.c.b16 %v704, %v703
    %v708 = vunpack.c.l.b16 %v665
    %v709 = vunpack.c.l.b16 %v666
    %v710 = vpack.c.b16 %v709, %v708
    %v712 = vsel %vm145, %v705, 0
    %v715 = vsel %vm145, %v710, 0
    %717 = vmatpush.bf16.xpose.msra.mxu0 0
    %718 = vmatpush.bf16.xpose.msra.mxu0 0
    %719 = vmatpush.bf16.xpose.msra.mxu0 0
    %720 = vmatpush.bf16.xpose.msra.mxu0 0
    %721 = vmatpush.bf16.xpose.msra.mxu0 0
    %722 = vmatpush.bf16.xpose.msra.mxu0 0
    %723 = vmatpush.bf16.xpose.msra.mxu0 0
    %724 = vmatpush.bf16.xpose.msra.mxu0 %v715
    %725 = vmatmul.bf16.gmra.mxu0 %v712
    %v726 = vpop.f32.mrf.mxu0
    %v727 = vadd.f32 0.0, %v726
    %v728 = vpop.f32.mrf.mxu0
    %v729 = vadd.f32 0.0, %v728
    %730 = vdwg.mxu0
    %v733 = vunpack.c.l.b16 %v639
    %v734 = vunpack.c.l.b16 %v640
    %v735 = vpack.c.b16 %v734, %v733
    %v738 = vunpack.c.l.b16 %v667
    %v739 = vunpack.c.l.b16 %v668
    %v740 = vpack.c.b16 %v739, %v738
    %v742 = vsel %vm145, %v735, 0
    %v745 = vsel %vm145, %v740, 0
    %747 = vmatpush.bf16.xpose.msra.mxu0 0
    %748 = vmatpush.bf16.xpose.msra.mxu0 0
    %749 = vmatpush.bf16.xpose.msra.mxu0 0
    %750 = vmatpush.bf16.xpose.msra.mxu0 0
    %751 = vmatpush.bf16.xpose.msra.mxu0 0
    %752 = vmatpush.bf16.xpose.msra.mxu0 0
    %753 = vmatpush.bf16.xpose.msra.mxu0 0
    %754 = vmatpush.bf16.xpose.msra.mxu0 %v745
    %755 = vmatmul.bf16.gmra.mxu0 %v742
    %v756 = vpop.f32.mrf.mxu0
    %v757 = vadd.f32 0.0, %v756
    %v758 = vpop.f32.mrf.mxu0
    %v759 = vadd.f32 0.0, %v758
    %760 = vdwg.mxu0
    %v763 = vunpack.c.l.b16 %v641
    %v764 = vunpack.c.l.b16 %v642
    %v765 = vpack.c.b16 %v764, %v763
    %v768 = vunpack.c.l.b16 %v669
    %v769 = vunpack.c.l.b16 %v670
    %v770 = vpack.c.b16 %v769, %v768
    %v772 = vsel %vm145, %v765, 0
    %v775 = vsel %vm145, %v770, 0
    %777 = vmatpush.bf16.xpose.msra.mxu0 0
    %778 = vmatpush.bf16.xpose.msra.mxu0 0
    %779 = vmatpush.bf16.xpose.msra.mxu0 0
    %780 = vmatpush.bf16.xpose.msra.mxu0 0
    %781 = vmatpush.bf16.xpose.msra.mxu0 0
    %782 = vmatpush.bf16.xpose.msra.mxu0 0
    %783 = vmatpush.bf16.xpose.msra.mxu0 0
    %784 = vmatpush.bf16.xpose.msra.mxu0 %v775
    %785 = vmatmul.bf16.gmra.mxu0 %v772
    %v786 = vpop.f32.mrf.mxu0
    %v787 = vadd.f32 0.0, %v786
    %v788 = vpop.f32.mrf.mxu0
    %v789 = vadd.f32 0.0, %v788
    %790 = vdwg.mxu0
    %v791 = vmul.f32 %v697, 0.35355338
    %v792 = vmul.f32 %v699, 0.35355338
    %v793 = vmul.f32 %v727, 0.35355338
    %v794 = vmul.f32 %v729, 0.35355338
    %v795 = vmul.f32 %v757, 0.35355338
    %v796 = vmul.f32 %v759, 0.35355338
    %v797 = vmul.f32 %v787, 0.35355338
    %v798 = vmul.f32 %v789, 0.35355338
    %801 = vrot.lane.b32.xlu0 %v33, 112
    %v802 = vpop.permute.xlu0 %801
    %803 = vrot.lane.b32.xlu0 %v34, 112
    %v804 = vpop.permute.xlu0 %803
    %v807 = vadd.f32 %v791, %v802
    %v808 = vadd.f32 %v792, %v804
    %v809 = vadd.f32 %v793, %v802
    %v810 = vadd.f32 %v794, %v804
    %v811 = vadd.f32 %v795, %v802
    %v812 = vadd.f32 %v796, %v804
    %v813 = vadd.f32 %v797, %v802
    %v814 = vadd.f32 %v798, %v804
    %v815 = vsel %vm263, %v807, -inf
    %816 = vmax.xlane.f32.xlu0 %v815
    %v817 = vpop.xlane.xlu0 %816
    %v818 = vsel %vm263, %v808, -inf
    %819 = vmax.xlane.f32.xlu0 %v818
    %v820 = vpop.xlane.xlu0 %819
    %v821 = vsel %vm263, %v809, -inf
    %822 = vmax.xlane.f32.xlu0 %v821
    %v823 = vpop.xlane.xlu0 %822
    %v824 = vsel %vm263, %v810, -inf
    %825 = vmax.xlane.f32.xlu0 %v824
    %v826 = vpop.xlane.xlu0 %825
    %v827 = vsel %vm263, %v811, -inf
    %828 = vmax.xlane.f32.xlu0 %v827
    %v829 = vpop.xlane.xlu0 %828
    %v830 = vsel %vm263, %v812, -inf
    %831 = vmax.xlane.f32.xlu0 %v830
    %v832 = vpop.xlane.xlu0 %831
    %v833 = vsel %vm263, %v813, -inf
    %834 = vmax.xlane.f32.xlu0 %v833
    %v835 = vpop.xlane.xlu0 %834
    %v836 = vsel %vm263, %v814, -inf
    %837 = vmax.xlane.f32.xlu0 %v836
    %v838 = vpop.xlane.xlu0 %837
    %v839 = vsub.f32 %v807, %v817
    %v840 = vsub.f32 %v808, %v820
    %v841 = vsub.f32 %v809, %v823
    %v842 = vsub.f32 %v810, %v826
    %v843 = vsub.f32 %v811, %v829
    %v844 = vsub.f32 %v812, %v832
    %v845 = vsub.f32 %v813, %v835
    %v846 = vsub.f32 %v814, %v838
    %v847 = vmul.f32 %v839, 1.442695
    %v848 = vpow.pop %v847
    %v849 = vmul.f32 %v840, 1.442695
    %v850 = vpow.pop %v849
    %v851 = vmul.f32 %v841, 1.442695
    %v852 = vpow.pop %v851
    %v853 = vmul.f32 %v842, 1.442695
    %v854 = vpow.pop %v853
    %v855 = vmul.f32 %v843, 1.442695
    %v856 = vpow.pop %v855
    %v857 = vmul.f32 %v844, 1.442695
    %v858 = vpow.pop %v857
    %v859 = vmul.f32 %v845, 1.442695
    %v860 = vpow.pop %v859
    %v861 = vmul.f32 %v846, 1.442695
    %v862 = vpow.pop %v861
    %v863 = vsel %vm263, %v848, 0.0
    %864 = vadd.xlane.f32.xlu0 %v863
    %v865 = vpop.xlane.xlu0 %864
    %v866 = vsel %vm263, %v850, 0.0
    %867 = vadd.xlane.f32.xlu0 %v866
    %v868 = vpop.xlane.xlu0 %867
    %v869 = vsel %vm263, %v852, 0.0
    %870 = vadd.xlane.f32.xlu0 %v869
    %v871 = vpop.xlane.xlu0 %870
    %v872 = vsel %vm263, %v854, 0.0
    %873 = vadd.xlane.f32.xlu0 %v872
    %v874 = vpop.xlane.xlu0 %873
    %v875 = vsel %vm263, %v856, 0.0
    %876 = vadd.xlane.f32.xlu0 %v875
    %v877 = vpop.xlane.xlu0 %876
    %v878 = vsel %vm263, %v858, 0.0
    %879 = vadd.xlane.f32.xlu0 %v878
    %v880 = vpop.xlane.xlu0 %879
    %v881 = vsel %vm263, %v860, 0.0
    %882 = vadd.xlane.f32.xlu0 %v881
    %v883 = vpop.xlane.xlu0 %882
    %v884 = vsel %vm263, %v862, 0.0
    %885 = vadd.xlane.f32.xlu0 %v884
    %v886 = vpop.xlane.xlu0 %885
    %v887 = vrcp.pop %v865
    %v888 = vrcp.pop %v868
    %v889 = vrcp.pop %v871
    %v890 = vrcp.pop %v874
    %v891 = vrcp.pop %v877
    %v892 = vrcp.pop %v880
    %v893 = vrcp.pop %v883
    %v894 = vrcp.pop %v886
    %v895 = vmul.f32 %v848, %v887
    %v896 = vmul.f32 %v850, %v888
    %v897 = vmul.f32 %v852, %v889
    %v898 = vmul.f32 %v854, %v890
    %v899 = vmul.f32 %v856, %v891
    %v900 = vmul.f32 %v858, %v892
    %v901 = vmul.f32 %v860, %v893
    %v902 = vmul.f32 %v862, %v894
    %v903 = vpack.c.bf16 %v895, %v895
    %v904 = vpack.c.bf16 %v896, %v896
    %v905 = vpack.c.bf16 %v897, %v897
    %v906 = vpack.c.bf16 %v898, %v898
    %v907 = vpack.c.bf16 %v899, %v899
    %v908 = vpack.c.bf16 %v900, %v900
    %v909 = vpack.c.bf16 %v901, %v901
    %v910 = vpack.c.bf16 %v902, %v902
    %v913 = vunpack.c.l.b16 %v903
    %v914 = vunpack.c.l.b16 %v904
    %v915 = vpack.c.b16 %v914, %v913
    %916 = vrot.lane.b32.xlu0 %v680, 96
    %v917 = vpop.permute.xlu0 %916
    %v920 = vsel %vm263, %v915, 0
    %922 = vmatpush.bf16.msra.mxu0 0
    %923 = vmatpush.bf16.msra.mxu0 0
    %924 = vmatpush.bf16.msra.mxu0 0
    %925 = vmatpush.bf16.msra.mxu0 0
    %926 = vmatpush.bf16.msra.mxu0 0
    %927 = vmatpush.bf16.msra.mxu0 0
    %928 = vmatpush.bf16.msra.mxu0 0
    %929 = vmatpush.bf16.msra.mxu0 %v917
    %930 = vmatmul.bf16.gmra.mxu0 %v920
    %v931 = vpop.f32.mrf.mxu0
    %v932 = vadd.f32 0.0, %v931
    %v933 = vpop.f32.mrf.mxu0
    %v934 = vadd.f32 0.0, %v933
    %935 = vdwg.mxu0
    %v938 = vunpack.c.l.b16 %v905
    %v939 = vunpack.c.l.b16 %v906
    %v940 = vpack.c.b16 %v939, %v938
    %941 = vrot.lane.b32.xlu0 %v710, 96
    %v942 = vpop.permute.xlu0 %941
    %v945 = vsel %vm263, %v940, 0
    %947 = vmatpush.bf16.msra.mxu0 0
    %948 = vmatpush.bf16.msra.mxu0 0
    %949 = vmatpush.bf16.msra.mxu0 0
    %950 = vmatpush.bf16.msra.mxu0 0
    %951 = vmatpush.bf16.msra.mxu0 0
    %952 = vmatpush.bf16.msra.mxu0 0
    %953 = vmatpush.bf16.msra.mxu0 0
    %954 = vmatpush.bf16.msra.mxu0 %v942
    %955 = vmatmul.bf16.gmra.mxu0 %v945
    %v956 = vpop.f32.mrf.mxu0
    %v957 = vadd.f32 0.0, %v956
    %v958 = vpop.f32.mrf.mxu0
    %v959 = vadd.f32 0.0, %v958
    %960 = vdwg.mxu0
    %v963 = vunpack.c.l.b16 %v907
    %v964 = vunpack.c.l.b16 %v908
    %v965 = vpack.c.b16 %v964, %v963
    %966 = vrot.lane.b32.xlu0 %v740, 96
    %v967 = vpop.permute.xlu0 %966
    %v970 = vsel %vm263, %v965, 0
    %972 = vmatpush.bf16.msra.mxu0 0
    %973 = vmatpush.bf16.msra.mxu0 0
    %974 = vmatpush.bf16.msra.mxu0 0
    %975 = vmatpush.bf16.msra.mxu0 0
    %976 = vmatpush.bf16.msra.mxu0 0
    %977 = vmatpush.bf16.msra.mxu0 0
    %978 = vmatpush.bf16.msra.mxu0 0
    %979 = vmatpush.bf16.msra.mxu0 %v967
    %980 = vmatmul.bf16.gmra.mxu0 %v970
    %v981 = vpop.f32.mrf.mxu0
    %v982 = vadd.f32 0.0, %v981
    %v983 = vpop.f32.mrf.mxu0
    %v984 = vadd.f32 0.0, %v983
    %985 = vdwg.mxu0
    %v988 = vunpack.c.l.b16 %v909
    %v989 = vunpack.c.l.b16 %v910
    %v990 = vpack.c.b16 %v989, %v988
    %991 = vrot.lane.b32.xlu0 %v770, 96
    %v992 = vpop.permute.xlu0 %991
    %v995 = vsel %vm263, %v990, 0
    %997 = vmatpush.bf16.msra.mxu0 0
    %998 = vmatpush.bf16.msra.mxu0 0
    %999 = vmatpush.bf16.msra.mxu0 0
    %1000 = vmatpush.bf16.msra.mxu0 0
    %1001 = vmatpush.bf16.msra.mxu0 0
    %1002 = vmatpush.bf16.msra.mxu0 0
    %1003 = vmatpush.bf16.msra.mxu0 0
    %1004 = vmatpush.bf16.msra.mxu0 %v992
    %1005 = vmatmul.bf16.gmra.mxu0 %v995
    %v1006 = vpop.f32.mrf.mxu0
    %v1007 = vadd.f32 0.0, %v1006
    %v1008 = vpop.f32.mrf.mxu0
    %v1009 = vadd.f32 0.0, %v1008
    %1010 = vdwg.mxu0
    %1013 = vrot.lane.b32.xlu0 %v957, 8
    %v1014 = vpop.permute.xlu0 %1013
    %1015 = vrot.lane.b32.xlu0 %v959, 8
    %v1016 = vpop.permute.xlu0 %1015
    %1021 = vrot.lane.b32.xlu0 %v982, 16
    %v1022 = vpop.permute.xlu0 %1021
    %1023 = vrot.lane.b32.xlu0 %v984, 16
    %v1024 = vpop.permute.xlu0 %1023
    %1029 = vrot.lane.b32.xlu0 %v1007, 24
    %v1030 = vpop.permute.xlu0 %1029
    %1031 = vrot.lane.b32.xlu0 %v1009, 24
    %v1032 = vpop.permute.xlu0 %1031
    %v1035 = vsel %vm145, %v932, %v1014
    %v1036 = vsel %vm145, %v934, %v1016
    %v1037 = vsel %vm263, %v1035, %v1022
    %v1038 = vsel %vm263, %v1036, %v1024
    %v1039 = vsel %vm488, %v1037, %v1030
    %v1040 = vsel %vm488, %v1038, %v1032
    %v1041 = vpack.c.bf16 %v1040, %v1039
    %v1042 = vperm.slane %v78, 3
    %1043 = vrot.lane.b32.xlu0 %v590, 96
    %v1044 = vpop.permute.xlu0 %1043
    %1045 = vrot.lane.b32.xlu0 %v591, 96
    %v1046 = vpop.permute.xlu0 %1045
    %v1050 = vsel %vm56, %v1041, 0
    %1052 = vmatpush.bf16.msra.mxu0 0
    %1053 = vmatpush.bf16.msra.mxu0 0
    %1054 = vmatpush.bf16.msra.mxu0 0
    %1055 = vmatpush.bf16.msra.mxu0 0
    %1056 = vmatpush.bf16.msra.mxu0 0
    %1057 = vmatpush.bf16.msra.mxu0 0
    %1058 = vmatpush.bf16.msra.mxu0 %v1046
    %1059 = vmatpush.bf16.msra.mxu0 %v1044
    %1060 = vmatmul.bf16.gmra.mxu0 %v1050
    %v1061 = vpop.f32.mrf.mxu0
    %v1062 = vadd.f32 %v1042, %v1061
    %v1063 = vpop.f32.mrf.mxu0
    %v1064 = vadd.f32 %v1042, %v1063
    %1065 = vdwg.mxu0
    %v1066 = vadd.f32 %v582, %v1062
    %v1067 = vadd.f32 %v583, %v1064
    %v1068 = vsel %vm56, %v1066, 0.0
    %1069 = vadd.xlane.f32.xlu0 %v1068
    %v1070 = vpop.xlane.xlu0 %1069
    %v1071 = vsel %vm56, %v1067, 0.0
    %1072 = vadd.xlane.f32.xlu0 %v1071
    %v1073 = vpop.xlane.xlu0 %1072
    %v1074 = vmul.f32 %v1070, %v530
    %v1075 = vmul.f32 %v1073, %v530
    %v1076 = vmul.f32 %v1066, %v1066
    %v1077 = vmul.f32 %v1067, %v1067
    %v1078 = vsel %vm56, %v1076, 0.0
    %1079 = vadd.xlane.f32.xlu0 %v1078
    %v1080 = vpop.xlane.xlu0 %1079
    %v1081 = vsel %vm56, %v1077, 0.0
    %1082 = vadd.xlane.f32.xlu0 %v1081
    %v1083 = vpop.xlane.xlu0 %1082
    %v1084 = vmul.f32 %v1080, %v530
    %v1085 = vmul.f32 %v1083, %v530
    %v1086 = vmul.f32 %v1074, %v1074
    %v1087 = vmul.f32 %v1075, %v1075
    %v1088 = vsub.f32 %v1084, %v1086
    %v1089 = vsub.f32 %v1085, %v1087
    %v1090 = vsub.f32 %v1066, %v1074
    %v1091 = vsub.f32 %v1067, %v1075
    %v1092 = vadd.f32 %v1088, 1e-05
    %v1093 = vadd.f32 %v1089, 1e-05
    %v1094 = vrsqrt.pop %v1092
    %v1095 = vmul.f32 %v1094, %v1092
    %v1096 = vmul.f32 %v1095, %v1094
    %v1097 = vmul.f32 0.5, %v1096
    %v1098 = vsub.f32 1.5, %v1097
    %v1099 = vmul.f32 %v1094, %v1098
    %vm1100 = vweird.f32 %v1092
    %vm1101 = vweird.f32 %v1094
    %vm1102 = vmor %vm1100, %vm1101
    %v1103 = vsel %vm1102, %v1094, %v1099
    %v1104 = vrsqrt.pop %v1093
    %v1105 = vmul.f32 %v1104, %v1093
    %v1106 = vmul.f32 %v1105, %v1104
    %v1107 = vmul.f32 0.5, %v1106
    %v1108 = vsub.f32 1.5, %v1107
    %v1109 = vmul.f32 %v1104, %v1108
    %vm1110 = vweird.f32 %v1093
    %vm1111 = vweird.f32 %v1104
    %vm1112 = vmor %vm1110, %vm1111
    %v1113 = vsel %vm1112, %v1104, %v1109
    %v1114 = vmul.f32 %v1090, %v1103
    %v1115 = vmul.f32 %v1091, %v1113
    %1117 = vrot.lane.b32.xlu0 %v1042, 96
    %v1118 = vpop.permute.xlu0 %1117
    %v1120 = vmul.f32 %v1114, %v1118
    %v1121 = vmul.f32 %v1115, %v1118
    %1122 = vrot.lane.b32.xlu0 %v1042, 64
    %v1123 = vpop.permute.xlu0 %1122
    %v1125 = vadd.f32 %v1120, %v1123
    %v1126 = vadd.f32 %v1121, %v1123
    %v1127 = vpack.c.bf16 %v1126, %v1125
    %1128 = vrot.lane.b32.xlu0 %v590, 64
    %v1129 = vpop.permute.xlu0 %1128
    %1130 = vrot.lane.b32.xlu0 %v591, 64
    %v1131 = vpop.permute.xlu0 %1130
    %v1135 = vsel %vm56, %v1127, 0
    %1137 = vmatpush.bf16.msra.mxu0 0
    %1138 = vmatpush.bf16.msra.mxu0 0
    %1139 = vmatpush.bf16.msra.mxu0 0
    %1140 = vmatpush.bf16.msra.mxu0 0
    %1141 = vmatpush.bf16.msra.mxu0 0
    %1142 = vmatpush.bf16.msra.mxu0 0
    %1143 = vmatpush.bf16.msra.mxu0 %v1131
    %1144 = vmatpush.bf16.msra.mxu0 %v1129
    %1145 = vmatmul.bf16.gmra.mxu0 %v1135
    %v1146 = vpop.f32.mrf.mxu0
    %v1147 = vadd.f32 %v585, %v1146
    %v1148 = vpop.f32.mrf.mxu0
    %v1149 = vadd.f32 %v585, %v1148
    %1150 = vdwg.mxu0
    %v1151 = vmax.f32 %v1147, 0.0
    %v1152 = vmax.f32 %v1149, 0.0
    %v1153 = vpack.c.bf16 %v1152, %v1151
    %v1154 = vld [vmem:[%s5] sm:$0xf]
    %v1155 = vld [vmem:[%s5 + $0x4] sm:$0xf]
    %v1156 = vld [vmem:[%s5 + $0x8] sm:$0xf]
    %v1157 = vld [vmem:[%s5 + $0xc] sm:$0xf]
    %v1158 = vld [vmem:[%s5 + $0x10] sm:$0xf]
    %v1159 = vld [vmem:[%s5 + $0x14] sm:$0xf]
    %v1160 = vld [vmem:[%s5 + $0x18] sm:$0xf]
    %v1161 = vld [vmem:[%s5 + $0x1c] sm:$0xf]
    %v1162 = vperm.slane %v78, 4
    %v1171 = vunpack.c.l.b16 %v1154
    %v1172 = vunpack.c.l.b16 %v1155
    %v1173 = vunpack.c.l.b16 %v1156
    %v1174 = vunpack.c.l.b16 %v1157
    %v1175 = vunpack.c.l.b16 %v1158
    %v1176 = vunpack.c.l.b16 %v1159
    %v1177 = vunpack.c.l.b16 %v1160
    %v1178 = vunpack.c.l.b16 %v1161
    %v1179 = vpack.c.b16 %v1172, %v1171
    %v1180 = vpack.c.b16 %v1174, %v1173
    %v1181 = vpack.c.b16 %v1176, %v1175
    %v1182 = vpack.c.b16 %v1178, %v1177
    %vm1187 = vcmask 523264
    %v1189 = vsel %vm1187, %v1153, 0
    %1191 = vmatpush.bf16.msra.mxu0 0
    %1192 = vmatpush.bf16.msra.mxu0 0
    %1193 = vmatpush.bf16.msra.mxu0 0
    %1194 = vmatpush.bf16.msra.mxu0 0
    %1195 = vmatpush.bf16.msra.mxu0 %v1182
    %1196 = vmatpush.bf16.msra.mxu0 %v1181
    %1197 = vmatpush.bf16.msra.mxu0 %v1180
    %1198 = vmatpush.bf16.msra.mxu0 %v1179
    %1199 = vmatmul.bf16.gmra.mxu0 %v1189
    %v1200 = vpop.f32.mrf.mxu0
    %v1201 = vadd.f32 %v1162, %v1200
    %v1202 = vpop.f32.mrf.mxu0
    %v1203 = vadd.f32 %v1162, %v1202
    %1204 = vdwg.mxu0
    %v1205 = vadd.f32 %v1125, %v1201
    %v1206 = vadd.f32 %v1126, %v1203
    %v1207 = vsel %vm56, %v1205, 0.0
    %1208 = vadd.xlane.f32.xlu0 %v1207
    %v1209 = vpop.xlane.xlu0 %1208
    %v1210 = vsel %vm56, %v1206, 0.0
    %1211 = vadd.xlane.f32.xlu0 %v1210
    %v1212 = vpop.xlane.xlu0 %1211
    %v1213 = vmul.f32 %v1209, %v530
    %v1214 = vmul.f32 %v1212, %v530
    %v1215 = vmul.f32 %v1205, %v1205
    %v1216 = vmul.f32 %v1206, %v1206
    %v1217 = vsel %vm56, %v1215, 0.0
    %1218 = vadd.xlane.f32.xlu0 %v1217
    %v1219 = vpop.xlane.xlu0 %1218
    %v1220 = vsel %vm56, %v1216, 0.0
    %1221 = vadd.xlane.f32.xlu0 %v1220
    %v1222 = vpop.xlane.xlu0 %1221
    %v1223 = vmul.f32 %v1219, %v530
    %v1224 = vmul.f32 %v1222, %v530
    %v1225 = vmul.f32 %v1213, %v1213
    %v1226 = vmul.f32 %v1214, %v1214
    %v1227 = vsub.f32 %v1223, %v1225
    %v1228 = vsub.f32 %v1224, %v1226
    %v1229 = vsub.f32 %v1205, %v1213
    %v1230 = vsub.f32 %v1206, %v1214
    %v1231 = vadd.f32 %v1227, 1e-05
    %v1232 = vadd.f32 %v1228, 1e-05
    %v1233 = vrsqrt.pop %v1231
    %v1234 = vmul.f32 %v1233, %v1231
    %v1235 = vmul.f32 %v1234, %v1233
    %v1236 = vmul.f32 0.5, %v1235
    %v1237 = vsub.f32 1.5, %v1236
    %v1238 = vmul.f32 %v1233, %v1237
    %vm1239 = vweird.f32 %v1231
    %vm1240 = vweird.f32 %v1233
    %vm1241 = vmor %vm1239, %vm1240
    %v1242 = vsel %vm1241, %v1233, %v1238
    %v1243 = vrsqrt.pop %v1232
    %v1244 = vmul.f32 %v1243, %v1232
    %v1245 = vmul.f32 %v1244, %v1243
    %v1246 = vmul.f32 0.5, %v1245
    %v1247 = vsub.f32 1.5, %v1246
    %v1248 = vmul.f32 %v1243, %v1247
    %vm1249 = vweird.f32 %v1232
    %vm1250 = vweird.f32 %v1243
    %vm1251 = vmor %vm1249, %vm1250
    %v1252 = vsel %vm1251, %v1243, %v1248
    %v1253 = vmul.f32 %v1229, %v1242
    %v1254 = vmul.f32 %v1230, %v1252
    %1256 = vrot.lane.b32.xlu0 %v1162, 96
    %v1257 = vpop.permute.xlu0 %1256
    %v1259 = vmul.f32 %v1253, %v1257
    %v1260 = vmul.f32 %v1254, %v1257
    %1261 = vrot.lane.b32.xlu0 %v1162, 64
    %v1262 = vpop.permute.xlu0 %1261
    %v1264 = vadd.f32 %v1259, %v1262
    %v1265 = vadd.f32 %v1260, %v1262
    %s1266 = scalar_lea.vmem %s3, 32
    %v1267 = vld [vmem:[%s1266] sm:$0xff]
    %v1268 = vld [vmem:[%s1266 + $0x8] sm:$0xff]
    %v1269 = vld [vmem:[%s1266 + $0x10] sm:$0xff]
    %v1270 = vld [vmem:[%s1266 + $0x18] sm:$0xff]
    %s1271 = scalar_lea.vmem %s6, 8
    %v1272 = vld [vmem:[%s1271] sm:$0x1f]
    %v1273 = vpack.c.bf16 %v1265, %v1264
    %v1274 = vperm.slane %v1272, 0
    %v1279 = vunpack.c.l.b16 %v1267
    %v1280 = vunpack.c.l.b16 %v1268
    %v1281 = vunpack.c.l.b16 %v1269
    %v1282 = vunpack.c.l.b16 %v1270
    %v1283 = vpack.c.b16 %v1280, %v1279
    %v1284 = vpack.c.b16 %v1282, %v1281
    %v1288 = vsel %vm56, %v1273, 0
    %1290 = vmatpush.bf16.msra.mxu0 0
    %1291 = vmatpush.bf16.msra.mxu0 0
    %1292 = vmatpush.bf16.msra.mxu0 0
    %1293 = vmatpush.bf16.msra.mxu0 0
    %1294 = vmatpush.bf16.msra.mxu0 0
    %1295 = vmatpush.bf16.msra.mxu0 0
    %1296 = vmatpush.bf16.msra.mxu0 %v1284
    %1297 = vmatpush.bf16.msra.mxu0 %v1283
    %1298 = vmatmul.bf16.gmra.mxu0 %v1288
    %v1299 = vpop.f32.mrf.mxu0
    %v1300 = vadd.f32 %v1274, %v1299
    %v1301 = vpop.f32.mrf.mxu0
    %v1302 = vadd.f32 %v1274, %v1301
    %1303 = vdwg.mxu0
    %1306 = vrot.lane.b32.xlu0 %v1300, 120
    %v1307 = vpop.permute.xlu0 %1306
    %1308 = vrot.lane.b32.xlu0 %v1302, 120
    %v1309 = vpop.permute.xlu0 %1308
    %1312 = vrot.lane.b32.xlu0 %v1300, 112
    %v1313 = vpop.permute.xlu0 %1312
    %1314 = vrot.lane.b32.xlu0 %v1302, 112
    %v1315 = vpop.permute.xlu0 %1314
    %1318 = vrot.lane.b32.xlu0 %v1300, 104
    %v1319 = vpop.permute.xlu0 %1318
    %1320 = vrot.lane.b32.xlu0 %v1302, 104
    %v1321 = vpop.permute.xlu0 %1320
    %v1324 = vpack.c.bf16 %v1300, %v1300
    %v1325 = vpack.c.bf16 %v1302, %v1302
    %v1326 = vpack.c.bf16 %v1307, %v1307
    %v1327 = vpack.c.bf16 %v1309, %v1309
    %v1328 = vpack.c.bf16 %v1313, %v1313
    %v1329 = vpack.c.bf16 %v1315, %v1315
    %v1330 = vpack.c.bf16 %v1319, %v1319
    %v1331 = vpack.c.bf16 %v1321, %v1321
    %v1334 = vunpack.c.l.b16 %v1324
    %v1335 = vunpack.c.l.b16 %v1325
    %v1336 = vpack.c.b16 %v1335, %v1334
    %1337 = vrot.lane.b32.xlu0 %v1336, 96
    %v1338 = vpop.permute.xlu0 %1337
    %v1340 = vsel %vm145, %v1336, 0
    %v1343 = vsel %vm145, %v1338, 0
    %1345 = vmatpush.bf16.xpose.msra.mxu0 0
    %1346 = vmatpush.bf16.xpose.msra.mxu0 0
    %1347 = vmatpush.bf16.xpose.msra.mxu0 0
    %1348 = vmatpush.bf16.xpose.msra.mxu0 0
    %1349 = vmatpush.bf16.xpose.msra.mxu0 0
    %1350 = vmatpush.bf16.xpose.msra.mxu0 0
    %1351 = vmatpush.bf16.xpose.msra.mxu0 0
    %1352 = vmatpush.bf16.xpose.msra.mxu0 %v1343
    %1353 = vmatmul.bf16.gmra.mxu0 %v1340
    %v1354 = vpop.f32.mrf.mxu0
    %v1355 = vadd.f32 0.0, %v1354
    %v1356 = vpop.f32.mrf.mxu0
    %v1357 = vadd.f32 0.0, %v1356
    %1358 = vdwg.mxu0
    %v1361 = vunpack.c.l.b16 %v1326
    %v1362 = vunpack.c.l.b16 %v1327
    %v1363 = vpack.c.b16 %v1362, %v1361
    %1364 = vrot.lane.b32.xlu0 %v1363, 96
    %v1365 = vpop.permute.xlu0 %1364
    %v1367 = vsel %vm145, %v1363, 0
    %v1370 = vsel %vm145, %v1365, 0
    %1372 = vmatpush.bf16.xpose.msra.mxu0 0
    %1373 = vmatpush.bf16.xpose.msra.mxu0 0
    %1374 = vmatpush.bf16.xpose.msra.mxu0 0
    %1375 = vmatpush.bf16.xpose.msra.mxu0 0
    %1376 = vmatpush.bf16.xpose.msra.mxu0 0
    %1377 = vmatpush.bf16.xpose.msra.mxu0 0
    %1378 = vmatpush.bf16.xpose.msra.mxu0 0
    %1379 = vmatpush.bf16.xpose.msra.mxu0 %v1370
    %1380 = vmatmul.bf16.gmra.mxu0 %v1367
    %v1381 = vpop.f32.mrf.mxu0
    %v1382 = vadd.f32 0.0, %v1381
    %v1383 = vpop.f32.mrf.mxu0
    %v1384 = vadd.f32 0.0, %v1383
    %1385 = vdwg.mxu0
    %v1388 = vunpack.c.l.b16 %v1328
    %v1389 = vunpack.c.l.b16 %v1329
    %v1390 = vpack.c.b16 %v1389, %v1388
    %1391 = vrot.lane.b32.xlu0 %v1390, 96
    %v1392 = vpop.permute.xlu0 %1391
    %v1394 = vsel %vm145, %v1390, 0
    %v1397 = vsel %vm145, %v1392, 0
    %1399 = vmatpush.bf16.xpose.msra.mxu0 0
    %1400 = vmatpush.bf16.xpose.msra.mxu0 0
    %1401 = vmatpush.bf16.xpose.msra.mxu0 0
    %1402 = vmatpush.bf16.xpose.msra.mxu0 0
    %1403 = vmatpush.bf16.xpose.msra.mxu0 0
    %1404 = vmatpush.bf16.xpose.msra.mxu0 0
    %1405 = vmatpush.bf16.xpose.msra.mxu0 0
    %1406 = vmatpush.bf16.xpose.msra.mxu0 %v1397
    %1407 = vmatmul.bf16.gmra.mxu0 %v1394
    %v1408 = vpop.f32.mrf.mxu0
    %v1409 = vadd.f32 0.0, %v1408
    %v1410 = vpop.f32.mrf.mxu0
    %v1411 = vadd.f32 0.0, %v1410
    %1412 = vdwg.mxu0
    %v1415 = vunpack.c.l.b16 %v1330
    %v1416 = vunpack.c.l.b16 %v1331
    %v1417 = vpack.c.b16 %v1416, %v1415
    %1418 = vrot.lane.b32.xlu0 %v1417, 96
    %v1419 = vpop.permute.xlu0 %1418
    %v1421 = vsel %vm145, %v1417, 0
    %v1424 = vsel %vm145, %v1419, 0
    %1426 = vmatpush.bf16.xpose.msra.mxu0 0
    %1427 = vmatpush.bf16.xpose.msra.mxu0 0
    %1428 = vmatpush.bf16.xpose.msra.mxu0 0
    %1429 = vmatpush.bf16.xpose.msra.mxu0 0
    %1430 = vmatpush.bf16.xpose.msra.mxu0 0
    %1431 = vmatpush.bf16.xpose.msra.mxu0 0
    %1432 = vmatpush.bf16.xpose.msra.mxu0 0
    %1433 = vmatpush.bf16.xpose.msra.mxu0 %v1424
    %1434 = vmatmul.bf16.gmra.mxu0 %v1421
    %v1435 = vpop.f32.mrf.mxu0
    %v1436 = vadd.f32 0.0, %v1435
    %v1437 = vpop.f32.mrf.mxu0
    %v1438 = vadd.f32 0.0, %v1437
    %1439 = vdwg.mxu0
    %v1440 = vmul.f32 %v1355, 0.35355338
    %v1441 = vmul.f32 %v1357, 0.35355338
    %v1442 = vmul.f32 %v1382, 0.35355338
    %v1443 = vmul.f32 %v1384, 0.35355338
    %v1444 = vmul.f32 %v1409, 0.35355338
    %v1445 = vmul.f32 %v1411, 0.35355338
    %v1446 = vmul.f32 %v1436, 0.35355338
    %v1447 = vmul.f32 %v1438, 0.35355338
    %v1448 = vadd.f32 %v1440, %v33
    %v1449 = vadd.f32 %v1441, %v34
    %v1450 = vadd.f32 %v1442, %v33
    %v1451 = vadd.f32 %v1443, %v34
    %v1452 = vadd.f32 %v1444, %v33
    %v1453 = vadd.f32 %v1445, %v34
    %v1454 = vadd.f32 %v1446, %v33
    %v1455 = vadd.f32 %v1447, %v34
    %v1456 = vsel %vm263, %v1448, -inf
    %1457 = vmax.xlane.f32.xlu0 %v1456
    %v1458 = vpop.xlane.xlu0 %1457
    %v1459 = vsel %vm263, %v1449, -inf
    %1460 = vmax.xlane.f32.xlu0 %v1459
    %v1461 = vpop.xlane.xlu0 %1460
    %v1462 = vsel %vm263, %v1450, -inf
    %1463 = vmax.xlane.f32.xlu0 %v1462
    %v1464 = vpop.xlane.xlu0 %1463
    %v1465 = vsel %vm263, %v1451, -inf
    %1466 = vmax.xlane.f32.xlu0 %v1465
    %v1467 = vpop.xlane.xlu0 %1466
    %v1468 = vsel %vm263, %v1452, -inf
    %1469 = vmax.xlane.f32.xlu0 %v1468
    %v1470 = vpop.xlane.xlu0 %1469
    %v1471 = vsel %vm263, %v1453, -inf
    %1472 = vmax.xlane.f32.xlu0 %v1471
    %v1473 = vpop.xlane.xlu0 %1472
    %v1474 = vsel %vm263, %v1454, -inf
    %1475 = vmax.xlane.f32.xlu0 %v1474
    %v1476 = vpop.xlane.xlu0 %1475
    %v1477 = vsel %vm263, %v1455, -inf
    %1478 = vmax.xlane.f32.xlu0 %v1477
    %v1479 = vpop.xlane.xlu0 %1478
    %v1480 = vsub.f32 %v1448, %v1458
    %v1481 = vsub.f32 %v1449, %v1461
    %v1482 = vsub.f32 %v1450, %v1464
    %v1483 = vsub.f32 %v1451, %v1467
    %v1484 = vsub.f32 %v1452, %v1470
    %v1485 = vsub.f32 %v1453, %v1473
    %v1486 = vsub.f32 %v1454, %v1476
    %v1487 = vsub.f32 %v1455, %v1479
    %v1488 = vmul.f32 %v1480, 1.442695
    %v1489 = vpow.pop %v1488
    %v1490 = vmul.f32 %v1481, 1.442695
    %v1491 = vpow.pop %v1490
    %v1492 = vmul.f32 %v1482, 1.442695
    %v1493 = vpow.pop %v1492
    %v1494 = vmul.f32 %v1483, 1.442695
    %v1495 = vpow.pop %v1494
    %v1496 = vmul.f32 %v1484, 1.442695
    %v1497 = vpow.pop %v1496
    %v1498 = vmul.f32 %v1485, 1.442695
    %v1499 = vpow.pop %v1498
    %v1500 = vmul.f32 %v1486, 1.442695
    %v1501 = vpow.pop %v1500
    %v1502 = vmul.f32 %v1487, 1.442695
    %v1503 = vpow.pop %v1502
    %v1504 = vsel %vm263, %v1489, 0.0
    %1505 = vadd.xlane.f32.xlu0 %v1504
    %v1506 = vpop.xlane.xlu0 %1505
    %v1507 = vsel %vm263, %v1491, 0.0
    %1508 = vadd.xlane.f32.xlu0 %v1507
    %v1509 = vpop.xlane.xlu0 %1508
    %v1510 = vsel %vm263, %v1493, 0.0
    %1511 = vadd.xlane.f32.xlu0 %v1510
    %v1512 = vpop.xlane.xlu0 %1511
    %v1513 = vsel %vm263, %v1495, 0.0
    %1514 = vadd.xlane.f32.xlu0 %v1513
    %v1515 = vpop.xlane.xlu0 %1514
    %v1516 = vsel %vm263, %v1497, 0.0
    %1517 = vadd.xlane.f32.xlu0 %v1516
    %v1518 = vpop.xlane.xlu0 %1517
    %v1519 = vsel %vm263, %v1499, 0.0
    %1520 = vadd.xlane.f32.xlu0 %v1519
    %v1521 = vpop.xlane.xlu0 %1520
    %v1522 = vsel %vm263, %v1501, 0.0
    %1523 = vadd.xlane.f32.xlu0 %v1522
    %v1524 = vpop.xlane.xlu0 %1523
    %v1525 = vsel %vm263, %v1503, 0.0
    %1526 = vadd.xlane.f32.xlu0 %v1525
    %v1527 = vpop.xlane.xlu0 %1526
    %v1528 = vrcp.pop %v1506
    %v1529 = vrcp.pop %v1509
    %v1530 = vrcp.pop %v1512
    %v1531 = vrcp.pop %v1515
    %v1532 = vrcp.pop %v1518
    %v1533 = vrcp.pop %v1521
    %v1534 = vrcp.pop %v1524
    %v1535 = vrcp.pop %v1527
    %v1536 = vmul.f32 %v1489, %v1528
    %v1537 = vmul.f32 %v1491, %v1529
    %v1538 = vmul.f32 %v1493, %v1530
    %v1539 = vmul.f32 %v1495, %v1531
    %v1540 = vmul.f32 %v1497, %v1532
    %v1541 = vmul.f32 %v1499, %v1533
    %v1542 = vmul.f32 %v1501, %v1534
    %v1543 = vmul.f32 %v1503, %v1535
    %v1544 = vpack.c.bf16 %v1536, %v1536
    %v1545 = vpack.c.bf16 %v1537, %v1537
    %v1546 = vpack.c.bf16 %v1538, %v1538
    %v1547 = vpack.c.bf16 %v1539, %v1539
    %v1548 = vpack.c.bf16 %v1540, %v1540
    %v1549 = vpack.c.bf16 %v1541, %v1541
    %v1550 = vpack.c.bf16 %v1542, %v1542
    %v1551 = vpack.c.bf16 %v1543, %v1543
    %v1554 = vunpack.c.l.b16 %v1544
    %v1555 = vunpack.c.l.b16 %v1545
    %v1556 = vpack.c.b16 %v1555, %v1554
    %1557 = vrot.lane.b32.xlu0 %v1336, 64
    %v1558 = vpop.permute.xlu0 %1557
    %v1561 = vsel %vm263, %v1556, 0
    %1563 = vmatpush.bf16.msra.mxu0 0
    %1564 = vmatpush.bf16.msra.mxu0 0
    %1565 = vmatpush.bf16.msra.mxu0 0
    %1566 = vmatpush.bf16.msra.mxu0 0
    %1567 = vmatpush.bf16.msra.mxu0 0
    %1568 = vmatpush.bf16.msra.mxu0 0
    %1569 = vmatpush.bf16.msra.mxu0 0
    %1570 = vmatpush.bf16.msra.mxu0 %v1558
    %1571 = vmatmul.bf16.gmra.mxu0 %v1561
    %v1572 = vpop.f32.mrf.mxu0
    %v1573 = vadd.f32 0.0, %v1572
    %v1574 = vpop.f32.mrf.mxu0
    %v1575 = vadd.f32 0.0, %v1574
    %1576 = vdwg.mxu0
    %v1579 = vunpack.c.l.b16 %v1546
    %v1580 = vunpack.c.l.b16 %v1547
    %v1581 = vpack.c.b16 %v1580, %v1579
    %1582 = vrot.lane.b32.xlu0 %v1363, 64
    %v1583 = vpop.permute.xlu0 %1582
    %v1586 = vsel %vm263, %v1581, 0
    %1588 = vmatpush.bf16.msra.mxu0 0
    %1589 = vmatpush.bf16.msra.mxu0 0
    %1590 = vmatpush.bf16.msra.mxu0 0
    %1591 = vmatpush.bf16.msra.mxu0 0
    %1592 = vmatpush.bf16.msra.mxu0 0
    %1593 = vmatpush.bf16.msra.mxu0 0
    %1594 = vmatpush.bf16.msra.mxu0 0
    %1595 = vmatpush.bf16.msra.mxu0 %v1583
    %1596 = vmatmul.bf16.gmra.mxu0 %v1586
    %v1597 = vpop.f32.mrf.mxu0
    %v1598 = vadd.f32 0.0, %v1597
    %v1599 = vpop.f32.mrf.mxu0
    %v1600 = vadd.f32 0.0, %v1599
    %1601 = vdwg.mxu0
    %v1604 = vunpack.c.l.b16 %v1548
    %v1605 = vunpack.c.l.b16 %v1549
    %v1606 = vpack.c.b16 %v1605, %v1604
    %1607 = vrot.lane.b32.xlu0 %v1390, 64
    %v1608 = vpop.permute.xlu0 %1607
    %v1611 = vsel %vm263, %v1606, 0
    %1613 = vmatpush.bf16.msra.mxu0 0
    %1614 = vmatpush.bf16.msra.mxu0 0
    %1615 = vmatpush.bf16.msra.mxu0 0
    %1616 = vmatpush.bf16.msra.mxu0 0
    %1617 = vmatpush.bf16.msra.mxu0 0
    %1618 = vmatpush.bf16.msra.mxu0 0
    %1619 = vmatpush.bf16.msra.mxu0 0
    %1620 = vmatpush.bf16.msra.mxu0 %v1608
    %1621 = vmatmul.bf16.gmra.mxu0 %v1611
    %v1622 = vpop.f32.mrf.mxu0
    %v1623 = vadd.f32 0.0, %v1622
    %v1624 = vpop.f32.mrf.mxu0
    %v1625 = vadd.f32 0.0, %v1624
    %1626 = vdwg.mxu0
    %v1629 = vunpack.c.l.b16 %v1550
    %v1630 = vunpack.c.l.b16 %v1551
    %v1631 = vpack.c.b16 %v1630, %v1629
    %1632 = vrot.lane.b32.xlu0 %v1417, 64
    %v1633 = vpop.permute.xlu0 %1632
    %v1636 = vsel %vm263, %v1631, 0
    %1638 = vmatpush.bf16.msra.mxu0 0
    %1639 = vmatpush.bf16.msra.mxu0 0
    %1640 = vmatpush.bf16.msra.mxu0 0
    %1641 = vmatpush.bf16.msra.mxu0 0
    %1642 = vmatpush.bf16.msra.mxu0 0
    %1643 = vmatpush.bf16.msra.mxu0 0
    %1644 = vmatpush.bf16.msra.mxu0 0
    %1645 = vmatpush.bf16.msra.mxu0 %v1633
    %1646 = vmatmul.bf16.gmra.mxu0 %v1636
    %v1647 = vpop.f32.mrf.mxu0
    %v1648 = vadd.f32 0.0, %v1647
    %v1649 = vpop.f32.mrf.mxu0
    %v1650 = vadd.f32 0.0, %v1649
    %1651 = vdwg.mxu0
    %1654 = vrot.lane.b32.xlu0 %v1598, 8
    %v1655 = vpop.permute.xlu0 %1654
    %1656 = vrot.lane.b32.xlu0 %v1600, 8
    %v1657 = vpop.permute.xlu0 %1656
    %1662 = vrot.lane.b32.xlu0 %v1623, 16
    %v1663 = vpop.permute.xlu0 %1662
    %1664 = vrot.lane.b32.xlu0 %v1625, 16
    %v1665 = vpop.permute.xlu0 %1664
    %1670 = vrot.lane.b32.xlu0 %v1648, 24
    %v1671 = vpop.permute.xlu0 %1670
    %1672 = vrot.lane.b32.xlu0 %v1650, 24
    %v1673 = vpop.permute.xlu0 %1672
    %v1676 = vsel %vm145, %v1573, %v1655
    %v1677 = vsel %vm145, %v1575, %v1657
    %v1678 = vsel %vm263, %v1676, %v1663
    %v1679 = vsel %vm263, %v1677, %v1665
    %v1680 = vsel %vm488, %v1678, %v1671
    %v1681 = vsel %vm488, %v1679, %v1673
    %v1682 = vpack.c.bf16 %v1681, %v1680
    %v1683 = vperm.slane %v1272, 2
    %1684 = vrot.lane.b32.xlu0 %v1283, 32
    %v1685 = vpop.permute.xlu0 %1684
    %1686 = vrot.lane.b32.xlu0 %v1284, 32
    %v1687 = vpop.permute.xlu0 %1686
    %v1691 = vsel %vm56, %v1682, 0
    %1693 = vmatpush.bf16.msra.mxu0 0
    %1694 = vmatpush.bf16.msra.mxu0 0
    %1695 = vmatpush.bf16.msra.mxu0 0
    %1696 = vmatpush.bf16.msra.mxu0 0
    %1697 = vmatpush.bf16.msra.mxu0 0
    %1698 = vmatpush.bf16.msra.mxu0 0
    %1699 = vmatpush.bf16.msra.mxu0 %v1687
    %1700 = vmatpush.bf16.msra.mxu0 %v1685
    %1701 = vmatmul.bf16.gmra.mxu0 %v1691
    %v1702 = vpop.f32.mrf.mxu0
    %v1703 = vadd.f32 %v1683, %v1702
    %v1704 = vpop.f32.mrf.mxu0
    %v1705 = vadd.f32 %v1683, %v1704
    %1706 = vdwg.mxu0
    %v1707 = vadd.f32 %v1264, %v1703
    %v1708 = vadd.f32 %v1265, %v1705
    %v1709 = vsel %vm56, %v1707, 0.0
    %1710 = vadd.xlane.f32.xlu0 %v1709
    %v1711 = vpop.xlane.xlu0 %1710
    %v1712 = vsel %vm56, %v1708, 0.0
    %1713 = vadd.xlane.f32.xlu0 %v1712
    %v1714 = vpop.xlane.xlu0 %1713
    %v1715 = vmul.f32 %v1711, %v530
    %v1716 = vmul.f32 %v1714, %v530
    %v1717 = vmul.f32 %v1707, %v1707
    %v1718 = vmul.f32 %v1708, %v1708
    %v1719 = vsel %vm56, %v1717, 0.0
    %1720 = vadd.xlane.f32.xlu0 %v1719
    %v1721 = vpop.xlane.xlu0 %1720
    %v1722 = vsel %vm56, %v1718, 0.0
    %1723 = vadd.xlane.f32.xlu0 %v1722
    %v1724 = vpop.xlane.xlu0 %1723
    %v1725 = vmul.f32 %v1721, %v530
    %v1726 = vmul.f32 %v1724, %v530
    %v1727 = vmul.f32 %v1715, %v1715
    %v1728 = vmul.f32 %v1716, %v1716
    %v1729 = vsub.f32 %v1725, %v1727
    %v1730 = vsub.f32 %v1726, %v1728
    %v1731 = vsub.f32 %v1707, %v1715
    %v1732 = vsub.f32 %v1708, %v1716
    %v1733 = vadd.f32 %v1729, 1e-05
    %v1734 = vadd.f32 %v1730, 1e-05
    %v1735 = vrsqrt.pop %v1733
    %v1736 = vmul.f32 %v1735, %v1733
    %v1737 = vmul.f32 %v1736, %v1735
    %v1738 = vmul.f32 0.5, %v1737
    %v1739 = vsub.f32 1.5, %v1738
    %v1740 = vmul.f32 %v1735, %v1739
    %vm1741 = vweird.f32 %v1733
    %vm1742 = vweird.f32 %v1735
    %vm1743 = vmor %vm1741, %vm1742
    %v1744 = vsel %vm1743, %v1735, %v1740
    %v1745 = vrsqrt.pop %v1734
    %v1746 = vmul.f32 %v1745, %v1734
    %v1747 = vmul.f32 %v1746, %v1745
    %v1748 = vmul.f32 0.5, %v1747
    %v1749 = vsub.f32 1.5, %v1748
    %v1750 = vmul.f32 %v1745, %v1749
    %vm1751 = vweird.f32 %v1734
    %vm1752 = vweird.f32 %v1745
    %vm1753 = vmor %vm1751, %vm1752
    %v1754 = vsel %vm1753, %v1745, %v1750
    %v1755 = vmul.f32 %v1731, %v1744
    %v1756 = vmul.f32 %v1732, %v1754
    %1758 = vrot.lane.b32.xlu0 %v1683, 96
    %v1759 = vpop.permute.xlu0 %1758
    %v1761 = vmul.f32 %v1755, %v1759
    %v1762 = vmul.f32 %v1756, %v1759
    %1763 = vrot.lane.b32.xlu0 %v1683, 64
    %v1764 = vpop.permute.xlu0 %1763
    %v1766 = vadd.f32 %v1761, %v1764
    %v1767 = vadd.f32 %v1762, %v1764
    %v1768 = vpack.c.bf16 %v1767, %v1766
    %v1769 = vperm.slane %v1272, 1
    %v1770 = vunpack.c.h.b16 %v1267
    %v1771 = vunpack.c.h.b16 %v1268
    %v1772 = vunpack.c.h.b16 %v1269
    %v1773 = vunpack.c.h.b16 %v1270
    %v1774 = vpack.c.b16 %v1771, %v1770
    %v1775 = vpack.c.b16 %v1773, %v1772
    %1779 = vrot.lane.b32.xlu0 %v1769, 64
    %v1780 = vpop.permute.xlu0 %1779
    %v1783 = vsel %vm56, %v1768, 0
    %1785 = vmatpush.bf16.msra.mxu0 0
    %1786 = vmatpush.bf16.msra.mxu0 0
    %1787 = vmatpush.bf16.msra.mxu0 0
    %1788 = vmatpush.bf16.msra.mxu0 0
    %1789 = vmatpush.bf16.msra.mxu0 0
    %1790 = vmatpush.bf16.msra.mxu0 0
    %1791 = vmatpush.bf16.msra.mxu0 %v1775
    %1792 = vmatpush.bf16.msra.mxu0 %v1774
    %1793 = vmatmul.bf16.gmra.mxu0 %v1783
    %v1794 = vpop.f32.mrf.mxu0
    %v1795 = vadd.f32 %v1780, %v1794
    %v1796 = vpop.f32.mrf.mxu0
    %v1797 = vadd.f32 %v1780, %v1796
    %1798 = vdwg.mxu0
    %1801 = vrot.lane.b32.xlu0 %v1795, 120
    %v1802 = vpop.permute.xlu0 %1801
    %1803 = vrot.lane.b32.xlu0 %v1797, 120
    %v1804 = vpop.permute.xlu0 %1803
    %1807 = vrot.lane.b32.xlu0 %v1795, 112
    %v1808 = vpop.permute.xlu0 %1807
    %1809 = vrot.lane.b32.xlu0 %v1797, 112
    %v1810 = vpop.permute.xlu0 %1809
    %1813 = vrot.lane.b32.xlu0 %v1795, 104
    %v1814 = vpop.permute.xlu0 %1813
    %1815 = vrot.lane.b32.xlu0 %v1797, 104
    %v1816 = vpop.permute.xlu0 %1815
    %v1819 = vpack.c.bf16 %v1795, %v1795
    %v1820 = vpack.c.bf16 %v1797, %v1797
    %v1821 = vpack.c.bf16 %v1802, %v1802
    %v1822 = vpack.c.bf16 %v1804, %v1804
    %v1823 = vpack.c.bf16 %v1808, %v1808
    %v1824 = vpack.c.bf16 %v1810, %v1810
    %v1825 = vpack.c.bf16 %v1814, %v1814
    %v1826 = vpack.c.bf16 %v1816, %v1816
    %v1829 = vunpack.c.l.b16 %v1819
    %v1830 = vunpack.c.l.b16 %v1820
    %v1831 = vpack.c.b16 %v1830, %v1829
    %1832 = vrot.lane.b32.xlu0 %v680, 64
    %v1833 = vpop.permute.xlu0 %1832
    %v1835 = vsel %vm145, %v1831, 0
    %v1838 = vsel %vm145, %v1833, 0
    %1840 = vmatpush.bf16.xpose.msra.mxu0 0
    %1841 = vmatpush.bf16.xpose.msra.mxu0 0
    %1842 = vmatpush.bf16.xpose.msra.mxu0 0
    %1843 = vmatpush.bf16.xpose.msra.mxu0 0
    %1844 = vmatpush.bf16.xpose.msra.mxu0 0
    %1845 = vmatpush.bf16.xpose.msra.mxu0 0
    %1846 = vmatpush.bf16.xpose.msra.mxu0 0
    %1847 = vmatpush.bf16.xpose.msra.mxu0 %v1838
    %1848 = vmatmul.bf16.gmra.mxu0 %v1835
    %v1849 = vpop.f32.mrf.mxu0
    %v1850 = vadd.f32 0.0, %v1849
    %v1851 = vpop.f32.mrf.mxu0
    %v1852 = vadd.f32 0.0, %v1851
    %1853 = vdwg.mxu0
    %v1856 = vunpack.c.l.b16 %v1821
    %v1857 = vunpack.c.l.b16 %v1822
    %v1858 = vpack.c.b16 %v1857, %v1856
    %1859 = vrot.lane.b32.xlu0 %v710, 64
    %v1860 = vpop.permute.xlu0 %1859
    %v1862 = vsel %vm145, %v1858, 0
    %v1865 = vsel %vm145, %v1860, 0
    %1867 = vmatpush.bf16.xpose.msra.mxu0 0
    %1868 = vmatpush.bf16.xpose.msra.mxu0 0
    %1869 = vmatpush.bf16.xpose.msra.mxu0 0
    %1870 = vmatpush.bf16.xpose.msra.mxu0 0
    %1871 = vmatpush.bf16.xpose.msra.mxu0 0
    %1872 = vmatpush.bf16.xpose.msra.mxu0 0
    %1873 = vmatpush.bf16.xpose.msra.mxu0 0
    %1874 = vmatpush.bf16.xpose.msra.mxu0 %v1865
    %1875 = vmatmul.bf16.gmra.mxu0 %v1862
    %v1876 = vpop.f32.mrf.mxu0
    %v1877 = vadd.f32 0.0, %v1876
    %v1878 = vpop.f32.mrf.mxu0
    %v1879 = vadd.f32 0.0, %v1878
    %1880 = vdwg.mxu0
    %v1883 = vunpack.c.l.b16 %v1823
    %v1884 = vunpack.c.l.b16 %v1824
    %v1885 = vpack.c.b16 %v1884, %v1883
    %1886 = vrot.lane.b32.xlu0 %v740, 64
    %v1887 = vpop.permute.xlu0 %1886
    %v1889 = vsel %vm145, %v1885, 0
    %v1892 = vsel %vm145, %v1887, 0
    %1894 = vmatpush.bf16.xpose.msra.mxu0 0
    %1895 = vmatpush.bf16.xpose.msra.mxu0 0
    %1896 = vmatpush.bf16.xpose.msra.mxu0 0
    %1897 = vmatpush.bf16.xpose.msra.mxu0 0
    %1898 = vmatpush.bf16.xpose.msra.mxu0 0
    %1899 = vmatpush.bf16.xpose.msra.mxu0 0
    %1900 = vmatpush.bf16.xpose.msra.mxu0 0
    %1901 = vmatpush.bf16.xpose.msra.mxu0 %v1892
    %1902 = vmatmul.bf16.gmra.mxu0 %v1889
    %v1903 = vpop.f32.mrf.mxu0
    %v1904 = vadd.f32 0.0, %v1903
    %v1905 = vpop.f32.mrf.mxu0
    %v1906 = vadd.f32 0.0, %v1905
    %1907 = vdwg.mxu0
    %v1910 = vunpack.c.l.b16 %v1825
    %v1911 = vunpack.c.l.b16 %v1826
    %v1912 = vpack.c.b16 %v1911, %v1910
    %1913 = vrot.lane.b32.xlu0 %v770, 64
    %v1914 = vpop.permute.xlu0 %1913
    %v1916 = vsel %vm145, %v1912, 0
    %v1919 = vsel %vm145, %v1914, 0
    %1921 = vmatpush.bf16.xpose.msra.mxu0 0
    %1922 = vmatpush.bf16.xpose.msra.mxu0 0
    %1923 = vmatpush.bf16.xpose.msra.mxu0 0
    %1924 = vmatpush.bf16.xpose.msra.mxu0 0
    %1925 = vmatpush.bf16.xpose.msra.mxu0 0
    %1926 = vmatpush.bf16.xpose.msra.mxu0 0
    %1927 = vmatpush.bf16.xpose.msra.mxu0 0
    %1928 = vmatpush.bf16.xpose.msra.mxu0 %v1919
    %1929 = vmatmul.bf16.gmra.mxu0 %v1916
    %v1930 = vpop.f32.mrf.mxu0
    %v1931 = vadd.f32 0.0, %v1930
    %v1932 = vpop.f32.mrf.mxu0
    %v1933 = vadd.f32 0.0, %v1932
    %1934 = vdwg.mxu0
    %v1935 = vmul.f32 %v1850, 0.35355338
    %v1936 = vmul.f32 %v1852, 0.35355338
    %v1937 = vmul.f32 %v1877, 0.35355338
    %v1938 = vmul.f32 %v1879, 0.35355338
    %v1939 = vmul.f32 %v1904, 0.35355338
    %v1940 = vmul.f32 %v1906, 0.35355338
    %v1941 = vmul.f32 %v1931, 0.35355338
    %v1942 = vmul.f32 %v1933, 0.35355338
    %v1943 = vadd.f32 %v1935, %v802
    %v1944 = vadd.f32 %v1936, %v804
    %v1945 = vadd.f32 %v1937, %v802
    %v1946 = vadd.f32 %v1938, %v804
    %v1947 = vadd.f32 %v1939, %v802
    %v1948 = vadd.f32 %v1940, %v804
    %v1949 = vadd.f32 %v1941, %v802
    %v1950 = vadd.f32 %v1942, %v804
    %v1951 = vsel %vm263, %v1943, -inf
    %1952 = vmax.xlane.f32.xlu0 %v1951
    %v1953 = vpop.xlane.xlu0 %1952
    %v1954 = vsel %vm263, %v1944, -inf
    %1955 = vmax.xlane.f32.xlu0 %v1954
    %v1956 = vpop.xlane.xlu0 %1955
    %v1957 = vsel %vm263, %v1945, -inf
    %1958 = vmax.xlane.f32.xlu0 %v1957
    %v1959 = vpop.xlane.xlu0 %1958
    %v1960 = vsel %vm263, %v1946, -inf
    %1961 = vmax.xlane.f32.xlu0 %v1960
    %v1962 = vpop.xlane.xlu0 %1961
    %v1963 = vsel %vm263, %v1947, -inf
    %1964 = vmax.xlane.f32.xlu0 %v1963
    %v1965 = vpop.xlane.xlu0 %1964
    %v1966 = vsel %vm263, %v1948, -inf
    %1967 = vmax.xlane.f32.xlu0 %v1966
    %v1968 = vpop.xlane.xlu0 %1967
    %v1969 = vsel %vm263, %v1949, -inf
    %1970 = vmax.xlane.f32.xlu0 %v1969
    %v1971 = vpop.xlane.xlu0 %1970
    %v1972 = vsel %vm263, %v1950, -inf
    %1973 = vmax.xlane.f32.xlu0 %v1972
    %v1974 = vpop.xlane.xlu0 %1973
    %v1975 = vsub.f32 %v1943, %v1953
    %v1976 = vsub.f32 %v1944, %v1956
    %v1977 = vsub.f32 %v1945, %v1959
    %v1978 = vsub.f32 %v1946, %v1962
    %v1979 = vsub.f32 %v1947, %v1965
    %v1980 = vsub.f32 %v1948, %v1968
    %v1981 = vsub.f32 %v1949, %v1971
    %v1982 = vsub.f32 %v1950, %v1974
    %v1983 = vmul.f32 %v1975, 1.442695
    %v1984 = vpow.pop %v1983
    %v1985 = vmul.f32 %v1976, 1.442695
    %v1986 = vpow.pop %v1985
    %v1987 = vmul.f32 %v1977, 1.442695
    %v1988 = vpow.pop %v1987
    %v1989 = vmul.f32 %v1978, 1.442695
    %v1990 = vpow.pop %v1989
    %v1991 = vmul.f32 %v1979, 1.442695
    %v1992 = vpow.pop %v1991
    %v1993 = vmul.f32 %v1980, 1.442695
    %v1994 = vpow.pop %v1993
    %v1995 = vmul.f32 %v1981, 1.442695
    %v1996 = vpow.pop %v1995
    %v1997 = vmul.f32 %v1982, 1.442695
    %v1998 = vpow.pop %v1997
    %v1999 = vsel %vm263, %v1984, 0.0
    %2000 = vadd.xlane.f32.xlu0 %v1999
    %v2001 = vpop.xlane.xlu0 %2000
    %v2002 = vsel %vm263, %v1986, 0.0
    %2003 = vadd.xlane.f32.xlu0 %v2002
    %v2004 = vpop.xlane.xlu0 %2003
    %v2005 = vsel %vm263, %v1988, 0.0
    %2006 = vadd.xlane.f32.xlu0 %v2005
    %v2007 = vpop.xlane.xlu0 %2006
    %v2008 = vsel %vm263, %v1990, 0.0
    %2009 = vadd.xlane.f32.xlu0 %v2008
    %v2010 = vpop.xlane.xlu0 %2009
    %v2011 = vsel %vm263, %v1992, 0.0
    %2012 = vadd.xlane.f32.xlu0 %v2011
    %v2013 = vpop.xlane.xlu0 %2012
    %v2014 = vsel %vm263, %v1994, 0.0
    %2015 = vadd.xlane.f32.xlu0 %v2014
    %v2016 = vpop.xlane.xlu0 %2015
    %v2017 = vsel %vm263, %v1996, 0.0
    %2018 = vadd.xlane.f32.xlu0 %v2017
    %v2019 = vpop.xlane.xlu0 %2018
    %v2020 = vsel %vm263, %v1998, 0.0
    %2021 = vadd.xlane.f32.xlu0 %v2020
    %v2022 = vpop.xlane.xlu0 %2021
    %v2023 = vrcp.pop %v2001
    %v2024 = vrcp.pop %v2004
    %v2025 = vrcp.pop %v2007
    %v2026 = vrcp.pop %v2010
    %v2027 = vrcp.pop %v2013
    %v2028 = vrcp.pop %v2016
    %v2029 = vrcp.pop %v2019
    %v2030 = vrcp.pop %v2022
    %v2031 = vmul.f32 %v1984, %v2023
    %v2032 = vmul.f32 %v1986, %v2024
    %v2033 = vmul.f32 %v1988, %v2025
    %v2034 = vmul.f32 %v1990, %v2026
    %v2035 = vmul.f32 %v1992, %v2027
    %v2036 = vmul.f32 %v1994, %v2028
    %v2037 = vmul.f32 %v1996, %v2029
    %v2038 = vmul.f32 %v1998, %v2030
    %v2039 = vpack.c.bf16 %v2031, %v2031
    %v2040 = vpack.c.bf16 %v2032, %v2032
    %v2041 = vpack.c.bf16 %v2033, %v2033
    %v2042 = vpack.c.bf16 %v2034, %v2034
    %v2043 = vpack.c.bf16 %v2035, %v2035
    %v2044 = vpack.c.bf16 %v2036, %v2036
    %v2045 = vpack.c.bf16 %v2037, %v2037
    %v2046 = vpack.c.bf16 %v2038, %v2038
    %v2049 = vunpack.c.l.b16 %v2039
    %v2050 = vunpack.c.l.b16 %v2040
    %v2051 = vpack.c.b16 %v2050, %v2049
    %2052 = vrot.lane.b32.xlu0 %v680, 32
    %v2053 = vpop.permute.xlu0 %2052
    %v2056 = vsel %vm263, %v2051, 0
    %2058 = vmatpush.bf16.msra.mxu0 0
    %2059 = vmatpush.bf16.msra.mxu0 0
    %2060 = vmatpush.bf16.msra.mxu0 0
    %2061 = vmatpush.bf16.msra.mxu0 0
    %2062 = vmatpush.bf16.msra.mxu0 0
    %2063 = vmatpush.bf16.msra.mxu0 0
    %2064 = vmatpush.bf16.msra.mxu0 0
    %2065 = vmatpush.bf16.msra.mxu0 %v2053
    %2066 = vmatmul.bf16.gmra.mxu0 %v2056
    %v2067 = vpop.f32.mrf.mxu0
    %v2068 = vadd.f32 0.0, %v2067
    %v2069 = vpop.f32.mrf.mxu0
    %v2070 = vadd.f32 0.0, %v2069
    %2071 = vdwg.mxu0
    %v2074 = vunpack.c.l.b16 %v2041
    %v2075 = vunpack.c.l.b16 %v2042
    %v2076 = vpack.c.b16 %v2075, %v2074
    %2077 = vrot.lane.b32.xlu0 %v710, 32
    %v2078 = vpop.permute.xlu0 %2077
    %v2081 = vsel %vm263, %v2076, 0
    %2083 = vmatpush.bf16.msra.mxu0 0
    %2084 = vmatpush.bf16.msra.mxu0 0
    %2085 = vmatpush.bf16.msra.mxu0 0
    %2086 = vmatpush.bf16.msra.mxu0 0
    %2087 = vmatpush.bf16.msra.mxu0 0
    %2088 = vmatpush.bf16.msra.mxu0 0
    %2089 = vmatpush.bf16.msra.mxu0 0
    %2090 = vmatpush.bf16.msra.mxu0 %v2078
    %2091 = vmatmul.bf16.gmra.mxu0 %v2081
    %v2092 = vpop.f32.mrf.mxu0
    %v2093 = vadd.f32 0.0, %v2092
    %v2094 = vpop.f32.mrf.mxu0
    %v2095 = vadd.f32 0.0, %v2094
    %2096 = vdwg.mxu0
    %v2099 = vunpack.c.l.b16 %v2043
    %v2100 = vunpack.c.l.b16 %v2044
    %v2101 = vpack.c.b16 %v2100, %v2099
    %2102 = vrot.lane.b32.xlu0 %v740, 32
    %v2103 = vpop.permute.xlu0 %2102
    %v2106 = vsel %vm263, %v2101, 0
    %2108 = vmatpush.bf16.msra.mxu0 0
    %2109 = vmatpush.bf16.msra.mxu0 0
    %2110 = vmatpush.bf16.msra.mxu0 0
    %2111 = vmatpush.bf16.msra.mxu0 0
    %2112 = vmatpush.bf16.msra.mxu0 0
    %2113 = vmatpush.bf16.msra.mxu0 0
    %2114 = vmatpush.bf16.msra.mxu0 0
    %2115 = vmatpush.bf16.msra.mxu0 %v2103
    %2116 = vmatmul.bf16.gmra.mxu0 %v2106
    %v2117 = vpop.f32.mrf.mxu0
    %v2118 = vadd.f32 0.0, %v2117
    %v2119 = vpop.f32.mrf.mxu0
    %v2120 = vadd.f32 0.0, %v2119
    %2121 = vdwg.mxu0
    %v2124 = vunpack.c.l.b16 %v2045
    %v2125 = vunpack.c.l.b16 %v2046
    %v2126 = vpack.c.b16 %v2125, %v2124
    %2127 = vrot.lane.b32.xlu0 %v770, 32
    %v2128 = vpop.permute.xlu0 %2127
    %v2131 = vsel %vm263, %v2126, 0
    %2133 = vmatpush.bf16.msra.mxu0 0
    %2134 = vmatpush.bf16.msra.mxu0 0
    %2135 = vmatpush.bf16.msra.mxu0 0
    %2136 = vmatpush.bf16.msra.mxu0 0
    %2137 = vmatpush.bf16.msra.mxu0 0
    %2138 = vmatpush.bf16.msra.mxu0 0
    %2139 = vmatpush.bf16.msra.mxu0 0
    %2140 = vmatpush.bf16.msra.mxu0 %v2128
    %2141 = vmatmul.bf16.gmra.mxu0 %v2131
    %v2142 = vpop.f32.mrf.mxu0
    %v2143 = vadd.f32 0.0, %v2142
    %v2144 = vpop.f32.mrf.mxu0
    %v2145 = vadd.f32 0.0, %v2144
    %2146 = vdwg.mxu0
    %2149 = vrot.lane.b32.xlu0 %v2093, 8
    %v2150 = vpop.permute.xlu0 %2149
    %2151 = vrot.lane.b32.xlu0 %v2095, 8
    %v2152 = vpop.permute.xlu0 %2151
    %2157 = vrot.lane.b32.xlu0 %v2118, 16
    %v2158 = vpop.permute.xlu0 %2157
    %2159 = vrot.lane.b32.xlu0 %v2120, 16
    %v2160 = vpop.permute.xlu0 %2159
    %2165 = vrot.lane.b32.xlu0 %v2143, 24
    %v2166 = vpop.permute.xlu0 %2165
    %2167 = vrot.lane.b32.xlu0 %v2145, 24
    %v2168 = vpop.permute.xlu0 %2167
    %v2171 = vsel %vm145, %v2068, %v2150
    %v2172 = vsel %vm145, %v2070, %v2152
    %v2173 = vsel %vm263, %v2171, %v2158
    %v2174 = vsel %vm263, %v2172, %v2160
    %v2175 = vsel %vm488, %v2173, %v2166
    %v2176 = vsel %vm488, %v2174, %v2168
    %v2177 = vpack.c.bf16 %v2176, %v2175
    %v2178 = vperm.slane %v1272, 3
    %2179 = vrot.lane.b32.xlu0 %v1774, 96
    %v2180 = vpop.permute.xlu0 %2179
    %2181 = vrot.lane.b32.xlu0 %v1775, 96
    %v2182 = vpop.permute.xlu0 %2181
    %v2186 = vsel %vm56, %v2177, 0
    %2188 = vmatpush.bf16.msra.mxu0 0
    %2189 = vmatpush.bf16.msra.mxu0 0
    %2190 = vmatpush.bf16.msra.mxu0 0
    %2191 = vmatpush.bf16.msra.mxu0 0
    %2192 = vmatpush.bf16.msra.mxu0 0
    %2193 = vmatpush.bf16.msra.mxu0 0
    %2194 = vmatpush.bf16.msra.mxu0 %v2182
    %2195 = vmatpush.bf16.msra.mxu0 %v2180
    %2196 = vmatmul.bf16.gmra.mxu0 %v2186
    %v2197 = vpop.f32.mrf.mxu0
    %v2198 = vadd.f32 %v2178, %v2197
    %v2199 = vpop.f32.mrf.mxu0
    %v2200 = vadd.f32 %v2178, %v2199
    %2201 = vdwg.mxu0
    %v2202 = vadd.f32 %v1766, %v2198
    %v2203 = vadd.f32 %v1767, %v2200
    %v2204 = vsel %vm56, %v2202, 0.0
    %2205 = vadd.xlane.f32.xlu0 %v2204
    %v2206 = vpop.xlane.xlu0 %2205
    %v2207 = vsel %vm56, %v2203, 0.0
    %2208 = vadd.xlane.f32.xlu0 %v2207
    %v2209 = vpop.xlane.xlu0 %2208
    %v2210 = vmul.f32 %v2206, %v530
    %v2211 = vmul.f32 %v2209, %v530
    %v2212 = vmul.f32 %v2202, %v2202
    %v2213 = vmul.f32 %v2203, %v2203
    %v2214 = vsel %vm56, %v2212, 0.0
    %2215 = vadd.xlane.f32.xlu0 %v2214
    %v2216 = vpop.xlane.xlu0 %2215
    %v2217 = vsel %vm56, %v2213, 0.0
    %2218 = vadd.xlane.f32.xlu0 %v2217
    %v2219 = vpop.xlane.xlu0 %2218
    %v2220 = vmul.f32 %v2216, %v530
    %v2221 = vmul.f32 %v2219, %v530
    %v2222 = vmul.f32 %v2210, %v2210
    %v2223 = vmul.f32 %v2211, %v2211
    %v2224 = vsub.f32 %v2220, %v2222
    %v2225 = vsub.f32 %v2221, %v2223
    %v2226 = vsub.f32 %v2202, %v2210
    %v2227 = vsub.f32 %v2203, %v2211
    %v2228 = vadd.f32 %v2224, 1e-05
    %v2229 = vadd.f32 %v2225, 1e-05
    %v2230 = vrsqrt.pop %v2228
    %v2231 = vmul.f32 %v2230, %v2228
    %v2232 = vmul.f32 %v2231, %v2230
    %v2233 = vmul.f32 0.5, %v2232
    %v2234 = vsub.f32 1.5, %v2233
    %v2235 = vmul.f32 %v2230, %v2234
    %vm2236 = vweird.f32 %v2228
    %vm2237 = vweird.f32 %v2230
    %vm2238 = vmor %vm2236, %vm2237
    %v2239 = vsel %vm2238, %v2230, %v2235
    %v2240 = vrsqrt.pop %v2229
    %v2241 = vmul.f32 %v2240, %v2229
    %v2242 = vmul.f32 %v2241, %v2240
    %v2243 = vmul.f32 0.5, %v2242
    %v2244 = vsub.f32 1.5, %v2243
    %v2245 = vmul.f32 %v2240, %v2244
    %vm2246 = vweird.f32 %v2229
    %vm2247 = vweird.f32 %v2240
    %vm2248 = vmor %vm2246, %vm2247
    %v2249 = vsel %vm2248, %v2240, %v2245
    %v2250 = vmul.f32 %v2226, %v2239
    %v2251 = vmul.f32 %v2227, %v2249
    %2253 = vrot.lane.b32.xlu0 %v2178, 96
    %v2254 = vpop.permute.xlu0 %2253
    %v2256 = vmul.f32 %v2250, %v2254
    %v2257 = vmul.f32 %v2251, %v2254
    %2258 = vrot.lane.b32.xlu0 %v2178, 64
    %v2259 = vpop.permute.xlu0 %2258
    %v2261 = vadd.f32 %v2256, %v2259
    %v2262 = vadd.f32 %v2257, %v2259
    %v2263 = vpack.c.bf16 %v2262, %v2261
    %2264 = vrot.lane.b32.xlu0 %v1774, 64
    %v2265 = vpop.permute.xlu0 %2264
    %2266 = vrot.lane.b32.xlu0 %v1775, 64
    %v2267 = vpop.permute.xlu0 %2266
    %v2271 = vsel %vm56, %v2263, 0
    %2273 = vmatpush.bf16.msra.mxu0 0
    %2274 = vmatpush.bf16.msra.mxu0 0
    %2275 = vmatpush.bf16.msra.mxu0 0
    %2276 = vmatpush.bf16.msra.mxu0 0
    %2277 = vmatpush.bf16.msra.mxu0 0
    %2278 = vmatpush.bf16.msra.mxu0 0
    %2279 = vmatpush.bf16.msra.mxu0 %v2267
    %2280 = vmatpush.bf16.msra.mxu0 %v2265
    %2281 = vmatmul.bf16.gmra.mxu0 %v2271
    %v2282 = vpop.f32.mrf.mxu0
    %v2283 = vadd.f32 %v1769, %v2282
    %v2284 = vpop.f32.mrf.mxu0
    %v2285 = vadd.f32 %v1769, %v2284
    %2286 = vdwg.mxu0
    %v2287 = vmax.f32 %v2283, 0.0
    %v2288 = vmax.f32 %v2285, 0.0
    %v2289 = vpack.c.bf16 %v2288, %v2287
    %s2290 = scalar_lea.vmem %s5, 32
    %v2291 = vld [vmem:[%s2290] sm:$0xf]
    %v2292 = vld [vmem:[%s2290 + $0x4] sm:$0xf]
    %v2293 = vld [vmem:[%s2290 + $0x8] sm:$0xf]
    %v2294 = vld [vmem:[%s2290 + $0xc] sm:$0xf]
    %v2295 = vld [vmem:[%s2290 + $0x10] sm:$0xf]
    %v2296 = vld [vmem:[%s2290 + $0x14] sm:$0xf]
    %v2297 = vld [vmem:[%s2290 + $0x18] sm:$0xf]
    %v2298 = vld [vmem:[%s2290 + $0x1c] sm:$0xf]
    %v2299 = vperm.slane %v1272, 4
    %v2308 = vunpack.c.l.b16 %v2291
    %v2309 = vunpack.c.l.b16 %v2292
    %v2310 = vunpack.c.l.b16 %v2293
    %v2311 = vunpack.c.l.b16 %v2294
    %v2312 = vunpack.c.l.b16 %v2295
    %v2313 = vunpack.c.l.b16 %v2296
    %v2314 = vunpack.c.l.b16 %v2297
    %v2315 = vunpack.c.l.b16 %v2298
    %v2316 = vpack.c.b16 %v2309, %v2308
    %v2317 = vpack.c.b16 %v2311, %v2310
    %v2318 = vpack.c.b16 %v2313, %v2312
    %v2319 = vpack.c.b16 %v2315, %v2314
    %v2325 = vsel %vm1187, %v2289, 0
    %2327 = vmatpush.bf16.msra.mxu0 0
    %2328 = vmatpush.bf16.msra.mxu0 0
    %2329 = vmatpush.bf16.msra.mxu0 0
    %2330 = vmatpush.bf16.msra.mxu0 0
    %2331 = vmatpush.bf16.msra.mxu0 %v2319
    %2332 = vmatpush.bf16.msra.mxu0 %v2318
    %2333 = vmatpush.bf16.msra.mxu0 %v2317
    %2334 = vmatpush.bf16.msra.mxu0 %v2316
    %2335 = vmatmul.bf16.gmra.mxu0 %v2325
    %v2336 = vpop.f32.mrf.mxu0
    %v2337 = vadd.f32 %v2299, %v2336
    %v2338 = vpop.f32.mrf.mxu0
    %v2339 = vadd.f32 %v2299, %v2338
    %2340 = vdwg.mxu0
    %v2341 = vadd.f32 %v2261, %v2337
    %v2342 = vadd.f32 %v2262, %v2339
    %v2343 = vsel %vm56, %v2341, 0.0
    %2344 = vadd.xlane.f32.xlu0 %v2343
    %v2345 = vpop.xlane.xlu0 %2344
    %v2346 = vsel %vm56, %v2342, 0.0
    %2347 = vadd.xlane.f32.xlu0 %v2346
    %v2348 = vpop.xlane.xlu0 %2347
    %v2349 = vmul.f32 %v2345, %v530
    %v2350 = vmul.f32 %v2348, %v530
    %v2351 = vmul.f32 %v2341, %v2341
    %v2352 = vmul.f32 %v2342, %v2342
    %v2353 = vsel %vm56, %v2351, 0.0
    %2354 = vadd.xlane.f32.xlu0 %v2353
    %v2355 = vpop.xlane.xlu0 %2354
    %v2356 = vsel %vm56, %v2352, 0.0
    %2357 = vadd.xlane.f32.xlu0 %v2356
    %v2358 = vpop.xlane.xlu0 %2357
    %v2359 = vmul.f32 %v2355, %v530
    %v2360 = vmul.f32 %v2358, %v530
    %v2361 = vmul.f32 %v2349, %v2349
    %v2362 = vmul.f32 %v2350, %v2350
    %v2363 = vsub.f32 %v2359, %v2361
    %v2364 = vsub.f32 %v2360, %v2362
    %v2365 = vsub.f32 %v2341, %v2349
    %v2366 = vsub.f32 %v2342, %v2350
    %v2367 = vadd.f32 %v2363, 1e-05
    %v2368 = vadd.f32 %v2364, 1e-05
    %v2369 = vrsqrt.pop %v2367
    %v2370 = vmul.f32 %v2369, %v2367
    %v2371 = vmul.f32 %v2370, %v2369
    %v2372 = vmul.f32 0.5, %v2371
    %v2373 = vsub.f32 1.5, %v2372
    %v2374 = vmul.f32 %v2369, %v2373
    %vm2375 = vweird.f32 %v2367
    %vm2376 = vweird.f32 %v2369
    %vm2377 = vmor %vm2375, %vm2376
    %v2378 = vsel %vm2377, %v2369, %v2374
    %v2379 = vrsqrt.pop %v2368
    %v2380 = vmul.f32 %v2379, %v2368
    %v2381 = vmul.f32 %v2380, %v2379
    %v2382 = vmul.f32 0.5, %v2381
    %v2383 = vsub.f32 1.5, %v2382
    %v2384 = vmul.f32 %v2379, %v2383
    %vm2385 = vweird.f32 %v2368
    %vm2386 = vweird.f32 %v2379
    %vm2387 = vmor %vm2385, %vm2386
    %v2388 = vsel %vm2387, %v2379, %v2384
    %v2389 = vmul.f32 %v2365, %v2378
    %v2390 = vmul.f32 %v2366, %v2388
    %2392 = vrot.lane.b32.xlu0 %v2299, 96
    %v2393 = vpop.permute.xlu0 %2392
    %v2395 = vmul.f32 %v2389, %v2393
    %v2396 = vmul.f32 %v2390, %v2393
    %2397 = vrot.lane.b32.xlu0 %v2299, 64
    %v2398 = vpop.permute.xlu0 %2397
    %v2400 = vadd.f32 %v2395, %v2398
    %v2401 = vadd.f32 %v2396, %v2398
    %v2402 = vld [vmem:[%s7 + $0x1] sm:$0x1]
    %v2403 = vld [vmem:[%s7 + $0x2] sm:$0x1]
    %v2404 = vsel %vm56, %v2400, 0.0
    %2405 = vadd.xlane.f32.xlu0 %v2404
    %v2406 = vpop.xlane.xlu0 %2405
    %v2407 = vsel %vm56, %v2401, 0.0
    %2408 = vadd.xlane.f32.xlu0 %v2407
    %v2409 = vpop.xlane.xlu0 %2408
    %v2410 = vmul.f32 %v2406, %v530
    %v2411 = vmul.f32 %v2409, %v530
    %v2412 = vmul.f32 %v2400, %v2400
    %v2413 = vmul.f32 %v2401, %v2401
    %v2414 = vsel %vm56, %v2412, 0.0
    %2415 = vadd.xlane.f32.xlu0 %v2414
    %v2416 = vpop.xlane.xlu0 %2415
    %v2417 = vsel %vm56, %v2413, 0.0
    %2418 = vadd.xlane.f32.xlu0 %v2417
    %v2419 = vpop.xlane.xlu0 %2418
    %v2420 = vmul.f32 %v2416, %v530
    %v2421 = vmul.f32 %v2419, %v530
    %v2422 = vmul.f32 %v2410, %v2410
    %v2423 = vmul.f32 %v2411, %v2411
    %v2424 = vsub.f32 %v2420, %v2422
    %v2425 = vsub.f32 %v2421, %v2423
    %v2426 = vsub.f32 %v2400, %v2410
    %v2427 = vsub.f32 %v2401, %v2411
    %v2428 = vadd.f32 %v2424, 1e-05
    %v2429 = vadd.f32 %v2425, 1e-05
    %v2430 = vrsqrt.pop %v2428
    %v2431 = vmul.f32 %v2430, %v2428
    %v2432 = vmul.f32 %v2431, %v2430
    %v2433 = vmul.f32 0.5, %v2432
    %v2434 = vsub.f32 1.5, %v2433
    %v2435 = vmul.f32 %v2430, %v2434
    %vm2436 = vweird.f32 %v2428
    %vm2437 = vweird.f32 %v2430
    %vm2438 = vmor %vm2436, %vm2437
    %v2439 = vsel %vm2438, %v2430, %v2435
    %v2440 = vrsqrt.pop %v2429
    %v2441 = vmul.f32 %v2440, %v2429
    %v2442 = vmul.f32 %v2441, %v2440
    %v2443 = vmul.f32 0.5, %v2442
    %v2444 = vsub.f32 1.5, %v2443
    %v2445 = vmul.f32 %v2440, %v2444
    %vm2446 = vweird.f32 %v2429
    %vm2447 = vweird.f32 %v2440
    %vm2448 = vmor %vm2446, %vm2447
    %v2449 = vsel %vm2448, %v2440, %v2445
    %v2450 = vmul.f32 %v2426, %v2439
    %v2451 = vmul.f32 %v2427, %v2449
    %v2452 = vperm.slane %v2402, 0
    %v2453 = vmul.f32 %v2450, %v2452
    %v2454 = vmul.f32 %v2451, %v2452
    %v2455 = vperm.slane %v2403, 0
    %v2456 = vadd.f32 %v2453, %v2455
    %v2457 = vadd.f32 %v2454, %v2455
    %2458 = vst.msk [vmem:[#allocation2] sm:$0xff] %vm56, %v2456
    %2459 = vst.msk [vmem:[#allocation2 + $0x8] sm:$0xff] %vm56, %v2457
    // Predicated region
    $region34: #{decoder_forward.1} parent=1 // pred_check
      _
    $region35: #{decoder_forward.1} parent=1 // pred_check_branch
      %2461 = sbr.rel (0) target = $region37
    $region36: #{decoder_forward.1} parent=1 // pred_region
      %2463 = vsyncadd [#allocation3], 0
      %s2464 = sshll.u32 [#allocation2], 4
      %s2465 = int_to_ptr.vmem [resolvable:$true] %s2464
      %s2466 = sshll.u32 %s8, 4
      %s2467 = int_to_ptr.hbm [resolvable:$true] %s2466
      %2472 = dma.vmem_to_hbm [thread:$0]  %s2465, 256, %s2467, [#allocation3], 128, 128, 8
    $region37: #{decoder_forward.1} parent=1 // pred_fallthru
      _
    // Predicated region
    $region38: #{decoder_forward.1} parent=1 // pred_check
      _
    $region39: #{decoder_forward.1} parent=1 // pred_check_branch
      %2474 = sbr.rel (0) target = $region41
    $region40: #{decoder_forward.1} parent=1 // pred_region
      %2476 = dma.done [#allocation3], 256
    $region41: #{decoder_forward.1} parent=1 // pred_fallthru
      _
    %2477 = vsyncpa [#allocation3], 1

</llo_original>
